<compile_context>
chip_gen: v6e
topology: v6e:2x2x1
jax: 0.10.0
libtpu: 0.0.40
codegen_flags: <defaults>
</compile_context>

<pallas_src>
import functools
import math

import jax
import jax.numpy as jnp
from jax.experimental import pallas as pl
from jax.experimental.pallas import tpu as pltpu


# --------------------------------------------------------------------------
# Tiling helpers
# --------------------------------------------------------------------------

_VMEM_BUDGET = 12 << 20  # conservative: below default scoped VMEM on v5e/v6e/v7x


def _pick_bm(M, row_bytes, fixed_bytes=0, budget=_VMEM_BUDGET):
    """Largest M-tile that divides M, fits the VMEM budget (double-buffered),
    preferring a grid of >=2 steps so v7x's second TensorCore is not idle."""
    best = None
    for c in (1024, 512, 256, 128, 64, 32, 16, 8):
        if M % c:
            continue
        if fixed_bytes + 2 * c * row_bytes > budget:
            continue
        if best is None:
            best = c
        if M // c >= 2:
            return c
    return best if best is not None else M  # full-array block (always legal)


def _compiler_params(semantics, est_vmem_bytes):
    kwargs = dict(dimension_semantics=semantics)
    if est_vmem_bytes > _VMEM_BUDGET:
        # Raise the scoped-VMEM limit only when tiles actually need it
        # (cap well below v7x's 64 MiB physical VMEM).
        kwargs["vmem_limit_bytes"] = int(min(2 * est_vmem_bytes, 48 << 20))
    return pltpu.CompilerParams(**kwargs)


# --------------------------------------------------------------------------
# Pallas kernels
# --------------------------------------------------------------------------

def _linear_kernel(x_ref, w_ref, b_ref, o_ref, *, relu):
    acc = jnp.dot(x_ref[...].astype(jnp.bfloat16), w_ref[...],
                  preferred_element_type=jnp.float32)
    acc = acc + b_ref[...]
    if relu:
        acc = jnp.maximum(acc, 0.0)
    o_ref[...] = acc.astype(o_ref.dtype)


def pallas_linear(x, w, b, relu=False, out_dtype=None):
    """(M, K) @ (K, N) + (N,) -> (M, N). Weights bf16, f32 accumulation."""
    M, K = x.shape
    N = w.shape[1]
    out_dtype = jnp.dtype(out_dtype) if out_dtype is not None else x.dtype
    row = K * x.dtype.itemsize + N * out_dtype.itemsize
    fixed = K * N * w.dtype.itemsize + N * 4
    bm = _pick_bm(M, row, fixed)
    est = fixed + 2 * bm * row
    kern = functools.partial(_linear_kernel, relu=relu)
    # TODO(synk): for very large (K, N) weights, tile K/N with a VMEM
    #             accumulator instead of keeping the full weight resident.
    return pl.pallas_call(
        kern,
        out_shape=jax.ShapeDtypeStruct((M, N), out_dtype),
        grid=(M // bm,),
        in_specs=[
            pl.BlockSpec((bm, K), lambda i: (i, 0)),
            pl.BlockSpec((K, N), lambda i: (0, 0)),
            pl.BlockSpec((1, N), lambda i: (0, 0)),
        ],
        out_specs=pl.BlockSpec((bm, N), lambda i: (i, 0)),
        compiler_params=_compiler_params(("parallel",), est),
    )(x, w, b.reshape(1, N))


def _attn_oproj_ln_kernel(qkv_ref, res_ref, wo_ref, bo_ref, g_ref, b_ref, o_ref,
                          *, head_num, temp, eps):
    """Per-batch: multi-head attention + output projection + residual + LN."""
    L, C3 = qkv_ref.shape
    C = C3 // 3
    D = C // head_num
    qkv = qkv_ref[...]                                     # (L, 3C) bf16
    scale = 1.0 / temp

    head_outs = []
    for h in range(head_num):                              # static unroll
        q = qkv[:, h * D:(h + 1) * D].astype(jnp.float32) * scale
        k = qkv[:, C + h * D:C + (h + 1) * D]
        v = qkv[:, 2 * C + h * D:2 * C + (h + 1) * D]
        # NT matmul: contract the last dim of both operands (no K transpose).
        s = jax.lax.dot_general(
            q.astype(jnp.bfloat16), k,
            dimension_numbers=(((1,), (1,)), ((), ())),
            preferred_element_type=jnp.float32)            # (L, L)
        m = jnp.max(s, axis=-1, keepdims=True)
        e = jnp.exp(s - m)
        denom = jnp.sum(e, axis=-1, keepdims=True)
        p = e * pl.reciprocal(denom, approx=True)          # divide on the EUP
        head_outs.append(
            jnp.dot(p.astype(jnp.bfloat16), v,
                    preferred_element_type=jnp.float32))   # (L, D)

    att = jnp.concatenate(head_outs, axis=-1)              # (L, C) f32
    att = jnp.dot(att.astype(jnp.bfloat16), wo_ref[...],
                  preferred_element_type=jnp.float32) + bo_ref[...]

    z = att + res_ref[...].astype(jnp.float32)
    mu = jnp.mean(z, axis=-1, keepdims=True)
    var = jnp.mean((z - mu) ** 2, axis=-1, keepdims=True)
    zn = (z - mu) * jax.lax.rsqrt(var + eps)
    o_ref[...] = (zn * g_ref[...] + b_ref[...]).astype(o_ref.dtype)


def attention_block(qkv, tokens, wo, bo, gamma, beta, head_num, temp, eps=1e-5):
    """qkv: (B, L, 3C) bf16, tokens: (B, L, C) f32 residual -> LN(att+tokens)."""
    B, L, C3 = qkv.shape
    C = C3 // 3
    kern = functools.partial(_attn_oproj_ln_kernel,
                             head_num=head_num, temp=temp, eps=eps)
    est = 2 * L * (C3 * 2 + 2 * C * 4) + C * C * 2 + 4 * C * 4
    return pl.pallas_call(
        kern,
        out_shape=jax.ShapeDtypeStruct((B, L, C), jnp.float32),
        grid=(B,),
        in_specs=[
            pl.BlockSpec((None, L, C3), lambda b: (b, 0, 0)),
            pl.BlockSpec((None, L, C), lambda b: (b, 0, 0)),
            pl.BlockSpec((C, C), lambda b: (0, 0)),
            pl.BlockSpec((1, C), lambda b: (0, 0)),
            pl.BlockSpec((1, C), lambda b: (0, 0)),
            pl.BlockSpec((1, C), lambda b: (0, 0)),
        ],
        out_specs=pl.BlockSpec((None, L, C), lambda b: (b, 0, 0)),
        compiler_params=_compiler_params(("parallel",), est),
    )(qkv, tokens, wo, bo.reshape(1, C), gamma.reshape(1, C), beta.reshape(1, C))


def _ffn_ln_kernel(x_ref, w1_ref, b1_ref, w2_ref, b2_ref, g_ref, bt_ref, o_ref,
                   *, eps):
    """Linear->ReLU->Linear->ReLU (as in the reference FF) + residual + LN."""
    x = x_ref[...]
    h = jnp.dot(x.astype(jnp.bfloat16), w1_ref[...],
                preferred_element_type=jnp.float32) + b1_ref[...]
    h = jnp.maximum(h, 0.0)
    y = jnp.dot(h.astype(jnp.bfloat16), w2_ref[...],
                preferred_element_type=jnp.float32) + b2_ref[...]
    y = jnp.maximum(y, 0.0)
    z = y + x.astype(jnp.float32)
    mu = jnp.mean(z, axis=-1, keepdims=True)
    var = jnp.mean((z - mu) ** 2, axis=-1, keepdims=True)
    zn = (z - mu) * jax.lax.rsqrt(var + eps)
    o_ref[...] = (zn * g_ref[...] + bt_ref[...]).astype(o_ref.dtype)


def ffn_block(x, ff1, ff2, gamma, beta, eps=1e-5):
    M, C = x.shape
    w1, b1 = ff1
    w2, b2 = ff2
    Fs = w1.shape[1]
    row = C * 4 + Fs * 4 + C * 4
    fixed = 2 * C * Fs * 2 + (Fs + 3 * C) * 4
    bm = _pick_bm(M, row, fixed)
    est = fixed + 2 * bm * row
    kern = functools.partial(_ffn_ln_kernel, eps=eps)
    return pl.pallas_call(
        kern,
        out_shape=jax.ShapeDtypeStruct((M, C), jnp.float32),
        grid=(M // bm,),
        in_specs=[
            pl.BlockSpec((bm, C), lambda i: (i, 0)),
            pl.BlockSpec((C, Fs), lambda i: (0, 0)),
            pl.BlockSpec((1, Fs), lambda i: (0, 0)),
            pl.BlockSpec((Fs, C), lambda i: (0, 0)),
            pl.BlockSpec((1, C), lambda i: (0, 0)),
            pl.BlockSpec((1, C), lambda i: (0, 0)),
            pl.BlockSpec((1, C), lambda i: (0, 0)),
        ],
        out_specs=pl.BlockSpec((bm, C), lambda i: (i, 0)),
        compiler_params=_compiler_params(("parallel",), est),
    )(x, w1, b1.reshape(1, Fs), w2, b2.reshape(1, C),
      gamma.reshape(1, C), beta.reshape(1, C))


# --------------------------------------------------------------------------
# Shallow CNN stem (stand-in for the undefined TimmModel)
# --------------------------------------------------------------------------

def conv3x3_bn_relu(x, w_hwio, bn):
    """3x3 conv (stride 1, SAME) + inference BatchNorm folded + ReLU."""
    gamma, beta, mean, var = bn
    scale = gamma / jnp.sqrt(var + 1e-5)
    bias = beta - mean * scale
    w = w_hwio * scale[None, None, None, :]
    y = jax.lax.conv_general_dilated(
        x, w, window_strides=(1, 1), padding="SAME",
        dimension_numbers=("NHWC", "HWIO", "NHWC"))
    return jnp.maximum(y + bias, 0.0)


def maxpool2x2(x):
    B, H, W, C = x.shape
    return x.reshape(B, H // 2, 2, W // 2, 2, C).max(axis=(2, 4))


# --------------------------------------------------------------------------
# Positional encoding 2D (table generation is glue; linears use Pallas)
# --------------------------------------------------------------------------

def generate_encoder(in_channels, max_len):
    pos = jnp.arange(max_len, dtype=jnp.float32)[:, None]
    i = jnp.arange(in_channels, dtype=jnp.float32)[None, :]
    angle_rates = 1.0 / jnp.power(10000.0, 2.0 * jnp.floor(i / 2.0) / in_channels)
    pe = pos * angle_rates
    pe = pe.at[:, 0::2].set(jnp.sin(pe[:, 0::2]))
    pe = pe.at[:, 1::2].set(jnp.cos(pe[:, 1::2]))
    return pe


# --------------------------------------------------------------------------
# Transformer encoder layer & full forward
# --------------------------------------------------------------------------

def encoder_layer(tokens, lp, head_num):
    B, L, C = tokens.shape
    D = C // head_num
    temp = float(math.sqrt(head_num * D))   # matches reference: sqrt(head_num*head_dim)
    x2 = tokens.reshape(B * L, C)

    # Fused QKV projection (one matmul, bf16 output kept only as a matmul operand).
    qkv = pallas_linear(x2, *lp["qkv"], out_dtype=jnp.bfloat16).reshape(B, L, 3 * C)

    # Attention + output projection + residual + LayerNorm (fused, grid over batch).
    out1 = attention_block(qkv, tokens, lp["o"][0], lp["o"][1],
                           lp["ln1_g"], lp["ln1_b"], head_num, temp)

    # Feedforward (Linear->ReLU->Linear->ReLU, as in the reference) + residual + LN.
    out2 = ffn_block(out1.reshape(B * L, C), lp["ff1"], lp["ff2"],
                     lp["ln2_g"], lp["ln2_b"])
    return out2.reshape(B, L, C)


def transformer_encoder_2d(x_nchw, params, head_num):
    # NCHW -> NHWC
    x = jnp.transpose(x_nchw, (0, 2, 3, 1)).astype(jnp.float32)

    # shallow CNN (stand-in for TimmModel)
    x = conv3x3_bn_relu(x, params["conv1_w"], params["bn1"])
    x = maxpool2x2(x)
    x = conv3x3_bn_relu(x, params["conv2_w"], params["bn2"])
    x = maxpool2x2(x)

    B, H, W, C = x.shape
    half = C // 2

    # positional encoding 2D
    pe_h = generate_encoder(half, 64)[:H]        # (H, C/2)
    pe_w = generate_encoder(half, 128)[:W]       # (W, C/2)
    h_enc = pallas_linear(pe_h, *params["h_lin"])
    w_enc = pallas_linear(pe_w, *params["w_lin"])
    pos = jnp.concatenate(
        [jnp.broadcast_to(h_enc[:, None, :], (H, W, half)),
         jnp.broadcast_to(w_enc[None, :, :], (H, W, half))],
        axis=-1)                                 # (H, W, C)
    x = x + pos[None]                            # dropout = identity (eval)

    # flatten to tokens: (B, H*W, C)  (matches view(b,c,h*w).transpose(1,2))
    tokens = x.reshape(B, H * W, C)
    for lp in params["layers"]:
        tokens = encoder_layer(tokens, lp, head_num)
    return tokens


# --------------------------------------------------------------------------
# Deterministic parameter initialization
# --------------------------------------------------------------------------

def init_params(key, input_size, hidden_dim, filter_size, head_num, layer_num):
    keys = iter(jax.random.split(key, 128))

    def lin(kin, kout):
        bound = 1.0 / math.sqrt(kin)
        w = jax.random.uniform(next(keys), (kin, kout), jnp.float32, -bound, bound)
        b = jax.random.uniform(next(keys), (kout,), jnp.float32, -bound, bound)
        return (w.astype(jnp.bfloat16), b)       # bf16 weights, f32 bias

    half = hidden_dim // 2
    params = {
        "conv1_w": jax.random.normal(next(keys), (3, 3, input_size, half),
                                     jnp.float32) * (1.0 / math.sqrt(9 * input_size)),
        "bn1": (jnp.ones((half,)), jnp.zeros((half,)),
                jnp.zeros((half,)), jnp.ones((half,))),
        "conv2_w": jax.random.normal(next(keys), (3, 3, half, hidden_dim),
                                     jnp.float32) * (1.0 / math.sqrt(9 * half)),
        "bn2": (jnp.ones((hidden_dim,)), jnp.zeros((hidden_dim,)),
                jnp.zeros((hidden_dim,)), jnp.ones((hidden_dim,))),
        "h_lin": lin(half, half),
        "w_lin": lin(half, half),
    }

    layers = []
    for _ in range(layer_num):
        lp = {
            "qkv": lin(hidden_dim, 3 * hidden_dim),   # fused Q/K/V projection
            "o": lin(hidden_dim, hidden_dim),
            "ln1_g": jnp.ones((hidden_dim,)), "ln1_b": jnp.zeros((hidden_dim,)),
            "ff1": lin(hidden_dim, filter_size),
            "ff2": lin(filter_size, hidden_dim),
            "ln2_g": jnp.ones((hidden_dim,)), "ln2_b": jnp.zeros((hidden_dim,)),
        }
        layers.append(lp)
    params["layers"] = layers
    return params


# --------------------------------------------------------------------------

if __name__ == "__main__":
    input_size, hidden_dim, filter_size, head_num, layer_num = 4, 32, 64, 4, 2

    key = jax.random.PRNGKey(0)
    kp, kx = jax.random.split(key)
    params = init_params(kp, input_size, hidden_dim, filter_size, head_num, layer_num)

    # PyTorch-convention NCHW input: (batch=2, channels=4, H=16, W=16)
    x = jax.random.normal(kx, (2, input_size, 16, 16), jnp.float32)

    fwd = jax.jit(functools.partial(transformer_encoder_2d, head_num=head_num))
    out = fwd(x, params)
    jax.block_until_ready(out)

    # after two 2x2 maxpools: H=W=4 -> 16 tokens of dim hidden_dim
    assert out.shape == (2, 16, hidden_dim), out.shape
    assert bool(jnp.all(jnp.isfinite(out)))
    print("KERNEL_OK")
</pallas_src>

<mosaic_0001>
module attributes {stable_mosaic.version = 11 : i64} {
  func.func @_linear_kernel(%arg0: i32, %arg1: memref<4x16xf32, #tpu.memory_space<vmem>>, %arg2: memref<16x16xbf16, #tpu.memory_space<vmem>>, %arg3: memref<1x16xf32, #tpu.memory_space<vmem>>, %arg4: memref<4x16xf32, #tpu.memory_space<vmem>>) attributes {dimension_semantics = [#tpu.dimension_semantics<parallel>], iteration_bounds = array<i64: 1>, scalar_prefetch = 0 : i64, scratch_operands = 0 : i64, tpu.core_type = #tpu.core_type<tc>, window_params = [{transform_indices = @transform_0, window_bounds = array<i64: 4, 16>}, {pipeline_mode = #tpu.pipeline_mode<synchronous>, transform_indices = @transform_1, window_bounds = array<i64: 16, 16>}, {pipeline_mode = #tpu.pipeline_mode<synchronous>, transform_indices = @transform_2, window_bounds = array<i64: 1, 16>}, {transform_indices = @transform_3, window_bounds = array<i64: 4, 16>}]} {
    %c0 = arith.constant 0 : index
    %c0_0 = arith.constant 0 : index
    %0 = vector.load %arg1[%c0, %c0_0] : memref<4x16xf32, #tpu.memory_space<vmem>>, vector<4x16xf32>
    %1 = arith.truncf %0 : vector<4x16xf32> to vector<4x16xbf16>
    %c0_1 = arith.constant 0 : index
    %c0_2 = arith.constant 0 : index
    %2 = vector.load %arg2[%c0_1, %c0_2] : memref<16x16xbf16, #tpu.memory_space<vmem>>, vector<16x16xbf16>
    %cst = arith.constant dense<0.000000e+00> : vector<4x16xf32>
    %3 = tpu.matmul %1, %2, %cst {dimension_numbers = #tpu.dot_dimension_numbers<[1], [0], [0], [1], [0, 0, 1, 1], [], []>} : vector<4x16xbf16>, vector<16x16xbf16>, vector<4x16xf32> -> vector<4x16xf32>
    %c0_3 = arith.constant 0 : index
    %c0_4 = arith.constant 0 : index
    %4 = vector.load %arg3[%c0_3, %c0_4] : memref<1x16xf32, #tpu.memory_space<vmem>>, vector<1x16xf32>
    %5 = vector.broadcast %4 : vector<1x16xf32> to vector<4x16xf32>
    %6 = arith.addf %3, %5 : vector<4x16xf32>
    %c0_5 = arith.constant 0 : index
    %c0_6 = arith.constant 0 : index
    %7 = vector.load %arg4[%c0_5, %c0_6] : memref<4x16xf32, #tpu.memory_space<vmem>>, vector<4x16xf32>
    tpu.vector_store %arg4[%c0_5, %c0_6], %6 {strides = array<i32>} : memref<4x16xf32, #tpu.memory_space<vmem>>, vector<4x16xf32>,
    return
  }
  func.func @transform_0(%arg0: i32) -> (i32, i32) {
    %c0_i32 = arith.constant 0 : i32
    %c0_i32_0 = arith.constant 0 : i32
    return %arg0, %c0_i32 : i32, i32
  }
  func.func @transform_1(%arg0: i32) -> (i32, i32) {
    %c0_i32 = arith.constant 0 : i32
    %c0_i32_0 = arith.constant 0 : i32
    %c0_i32_1 = arith.constant 0 : i32
    return %c0_i32, %c0_i32_0 : i32, i32
  }
  func.func @transform_2(%arg0: i32) -> (i32, i32) {
    %c0_i32 = arith.constant 0 : i32
    %c0_i32_0 = arith.constant 0 : i32
    %c0_i32_1 = arith.constant 0 : i32
    return %c0_i32, %c0_i32_0 : i32, i32
  }
  func.func @transform_3(%arg0: i32) -> (i32, i32) {
    %c0_i32 = arith.constant 0 : i32
    %c0_i32_0 = arith.constant 0 : i32
    return %arg0, %c0_i32 : i32, i32
  }
}

module attributes {stable_mosaic.version = 11 : i64} {
  func.func @_linear_kernel(%arg0: i32, %arg1: memref<16x32xf32, #tpu.memory_space<vmem>>, %arg2: memref<32x96xbf16, #tpu.memory_space<vmem>>, %arg3: memref<1x96xf32, #tpu.memory_space<vmem>>, %arg4: memref<16x96xbf16, #tpu.memory_space<vmem>>) attributes {dimension_semantics = [#tpu.dimension_semantics<parallel>], iteration_bounds = array<i64: 2>, scalar_prefetch = 0 : i64, scratch_operands = 0 : i64, tpu.core_type = #tpu.core_type<tc>, window_params = [{transform_indices = @transform_0, window_bounds = array<i64: 16, 32>}, {pipeline_mode = #tpu.pipeline_mode<synchronous>, transform_indices = @transform_1, window_bounds = array<i64: 32, 96>}, {pipeline_mode = #tpu.pipeline_mode<synchronous>, transform_indices = @transform_2, window_bounds = array<i64: 1, 96>}, {transform_indices = @transform_3, window_bounds = array<i64: 16, 96>}]} {
    %c0 = arith.constant 0 : index
    %c0_0 = arith.constant 0 : index
    %0 = vector.load %arg1[%c0, %c0_0] : memref<16x32xf32, #tpu.memory_space<vmem>>, vector<16x32xf32>
    %1 = arith.truncf %0 : vector<16x32xf32> to vector<16x32xbf16>
    %c0_1 = arith.constant 0 : index
    %c0_2 = arith.constant 0 : index
    %2 = vector.load %arg2[%c0_1, %c0_2] : memref<32x96xbf16, #tpu.memory_space<vmem>>, vector<32x96xbf16>
    %cst = arith.constant dense<0.000000e+00> : vector<16x96xf32>
    %3 = tpu.matmul %1, %2, %cst {dimension_numbers = #tpu.dot_dimension_numbers<[1], [0], [0], [1], [0, 0, 1, 1], [], []>} : vector<16x32xbf16>, vector<32x96xbf16>, vector<16x96xf32> -> vector<16x96xf32>
    %c0_3 = arith.constant 0 : index
    %c0_4 = arith.constant 0 : index
    %4 = vector.load %arg3[%c0_3, %c0_4] : memref<1x96xf32, #tpu.memory_space<vmem>>, vector<1x96xf32>
    %5 = vector.broadcast %4 : vector<1x96xf32> to vector<16x96xf32>
    %6 = arith.addf %3, %5 : vector<16x96xf32>
    %7 = arith.truncf %6 : vector<16x96xf32> to vector<16x96xbf16>
    %c0_5 = arith.constant 0 : index
    %c0_6 = arith.constant 0 : index
    %8 = vector.load %arg4[%c0_5, %c0_6] : memref<16x96xbf16, #tpu.memory_space<vmem>>, vector<16x96xbf16>
    tpu.vector_store %arg4[%c0_5, %c0_6], %7 {strides = array<i32>} : memref<16x96xbf16, #tpu.memory_space<vmem>>, vector<16x96xbf16>,
    return
  }
  func.func @transform_0(%arg0: i32) -> (i32, i32) {
    %c0_i32 = arith.constant 0 : i32
    %c0_i32_0 = arith.constant 0 : i32
    return %arg0, %c0_i32 : i32, i32
  }
  func.func @transform_1(%arg0: i32) -> (i32, i32) {
    %c0_i32 = arith.constant 0 : i32
    %c0_i32_0 = arith.constant 0 : i32
    %c0_i32_1 = arith.constant 0 : i32
    return %c0_i32, %c0_i32_0 : i32, i32
  }
  func.func @transform_2(%arg0: i32) -> (i32, i32) {
    %c0_i32 = arith.constant 0 : i32
    %c0_i32_0 = arith.constant 0 : i32
    %c0_i32_1 = arith.constant 0 : i32
    return %c0_i32, %c0_i32_0 : i32, i32
  }
  func.func @transform_3(%arg0: i32) -> (i32, i32) {
    %c0_i32 = arith.constant 0 : i32
    %c0_i32_0 = arith.constant 0 : i32
    return %arg0, %c0_i32 : i32, i32
  }
}

module attributes {stable_mosaic.version = 11 : i64} {
  func.func @_ffn_ln_kernel(%arg0: i32, %arg1: memref<16x32xf32, #tpu.memory_space<vmem>>, %arg2: memref<32x64xbf16, #tpu.memory_space<vmem>>, %arg3: memref<1x64xf32, #tpu.memory_space<vmem>>, %arg4: memref<64x32xbf16, #tpu.memory_space<vmem>>, %arg5: memref<1x32xf32, #tpu.memory_space<vmem>>, %arg6: memref<1x32xf32, #tpu.memory_space<vmem>>, %arg7: memref<1x32xf32, #tpu.memory_space<vmem>>, %arg8: memref<16x32xf32, #tpu.memory_space<vmem>>) attributes {dimension_semantics = [#tpu.dimension_semantics<parallel>], iteration_bounds = array<i64: 2>, scalar_prefetch = 0 : i64, scratch_operands = 0 : i64, tpu.core_type = #tpu.core_type<tc>, window_params = [{transform_indices = @transform_0, window_bounds = array<i64: 16, 32>}, {pipeline_mode = #tpu.pipeline_mode<synchronous>, transform_indices = @transform_1, window_bounds = array<i64: 32, 64>}, {pipeline_mode = #tpu.pipeline_mode<synchronous>, transform_indices = @transform_2, window_bounds = array<i64: 1, 64>}, {pipeline_mode = #tpu.pipeline_mode<synchronous>, transform_indices = @transform_3, window_bounds = array<i64: 64, 32>}, {pipeline_mode = #tpu.pipeline_mode<synchronous>, transform_indices = @transform_4, window_bounds = array<i64: 1, 32>}, {pipeline_mode = #tpu.pipeline_mode<synchronous>, transform_indices = @transform_5, window_bounds = array<i64: 1, 32>}, {pipeline_mode = #tpu.pipeline_mode<synchronous>, transform_indices = @transform_6, window_bounds = array<i64: 1, 32>}, {transform_indices = @transform_7, window_bounds = array<i64: 16, 32>}]} {
    %c0 = arith.constant 0 : index
    %c0_0 = arith.constant 0 : index
    %0 = vector.load %arg1[%c0, %c0_0] : memref<16x32xf32, #tpu.memory_space<vmem>>, vector<16x32xf32>
    %1 = arith.truncf %0 : vector<16x32xf32> to vector<16x32xbf16>
    %c0_1 = arith.constant 0 : index
    %c0_2 = arith.constant 0 : index
    %2 = vector.load %arg2[%c0_1, %c0_2] : memref<32x64xbf16, #tpu.memory_space<vmem>>, vector<32x64xbf16>
    %cst = arith.constant dense<0.000000e+00> : vector<16x64xf32>
    %3 = tpu.matmul %1, %2, %cst {dimension_numbers = #tpu.dot_dimension_numbers<[1], [0], [0], [1], [0, 0, 1, 1], [], []>} : vector<16x32xbf16>, vector<32x64xbf16>, vector<16x64xf32> -> vector<16x64xf32>
    %c0_3 = arith.constant 0 : index
    %c0_4 = arith.constant 0 : index
    %4 = vector.load %arg3[%c0_3, %c0_4] : memref<1x64xf32, #tpu.memory_space<vmem>>, vector<1x64xf32>
    %5 = vector.broadcast %4 : vector<1x64xf32> to vector<16x64xf32>
    %6 = arith.addf %3, %5 : vector<16x64xf32>
    %cst_5 = arith.constant 0.000000e+00 : f32
    %7 = vector.broadcast %cst_5 : f32 to vector<16x64xf32>
    %8 = arith.maximumf %6, %7 : vector<16x64xf32>
    %9 = arith.truncf %8 : vector<16x64xf32> to vector<16x64xbf16>
    %c0_6 = arith.constant 0 : index
    %c0_7 = arith.constant 0 : index
    %10 = vector.load %arg4[%c0_6, %c0_7] : memref<64x32xbf16, #tpu.memory_space<vmem>>, vector<64x32xbf16>
    %cst_8 = arith.constant dense<0.000000e+00> : vector<16x32xf32>
    %11 = tpu.matmul %9, %10, %cst_8 {dimension_numbers = #tpu.dot_dimension_numbers<[1], [0], [0], [1], [0, 0, 1, 1], [], []>} : vector<16x64xbf16>, vector<64x32xbf16>, vector<16x32xf32> -> vector<16x32xf32>
    %c0_9 = arith.constant 0 : index
    %c0_10 = arith.constant 0 : index
    %12 = vector.load %arg5[%c0_9, %c0_10] : memref<1x32xf32, #tpu.memory_space<vmem>>, vector<1x32xf32>
    %13 = vector.broadcast %12 : vector<1x32xf32> to vector<16x32xf32>
    %14 = arith.addf %11, %13 : vector<16x32xf32>
    %cst_11 = arith.constant 0.000000e+00 : f32
    %15 = vector.broadcast %cst_11 : f32 to vector<16x32xf32>
    %16 = arith.maximumf %14, %15 : vector<16x32xf32>
    %17 = arith.addf %16, %0 : vector<16x32xf32>
    %cst_12 = arith.constant dense<0.000000e+00> : vector<16xf32>
    %18 = vector.multi_reduction <add>, %17, %cst_12 [1] : vector<16x32xf32> to vector<16xf32>
    %19 = vector.shape_cast %18 : vector<16xf32> to vector<16x1xf32>
    %cst_13 = arith.constant 3.200000e+01 : f32
    %20 = vector.broadcast %cst_13 : f32 to vector<16x1xf32>
    %21 = arith.divf %19, %20 : vector<16x1xf32>
    %22 = vector.broadcast %21 : vector<16x1xf32> to vector<16x32xf32>
    %23 = arith.subf %17, %22 : vector<16x32xf32>
    %24 = arith.mulf %23, %23 : vector<16x32xf32>
    %cst_14 = arith.constant dense<0.000000e+00> : vector<16xf32>
    %25 = vector.multi_reduction <add>, %24, %cst_14 [1] : vector<16x32xf32> to vector<16xf32>
    %26 = vector.shape_cast %25 : vector<16xf32> to vector<16x1xf32>
    %cst_15 = arith.constant 3.200000e+01 : f32
    %27 = vector.broadcast %cst_15 : f32 to vector<16x1xf32>
    %28 = arith.divf %26, %27 : vector<16x1xf32>
    %29 = vector.broadcast %21 : vector<16x1xf32> to vector<16x32xf32>
    %30 = arith.subf %17, %29 : vector<16x32xf32>
    %cst_16 = arith.constant 9.99999974E-6 : f32
    %31 = vector.broadcast %cst_16 : f32 to vector<16x1xf32>
    %32 = arith.addf %28, %31 : vector<16x1xf32>
    %33 = math.rsqrt %32 : vector<16x1xf32>
    %34 = vector.broadcast %33 : vector<16x1xf32> to vector<16x32xf32>
    %35 = arith.mulf %30, %34 : vector<16x32xf32>
    %c0_17 = arith.constant 0 : index
    %c0_18 = arith.constant 0 : index
    %36 = vector.load %arg6[%c0_17, %c0_18] : memref<1x32xf32, #tpu.memory_space<vmem>>, vector<1x32xf32>
    %37 = vector.broadcast %36 : vector<1x32xf32> to vector<16x32xf32>
    %38 = arith.mulf %35, %37 : vector<16x32xf32>
    %c0_19 = arith.constant 0 : index
    %c0_20 = arith.constant 0 : index
    %39 = vector.load %arg7[%c0_19, %c0_20] : memref<1x32xf32, #tpu.memory_space<vmem>>, vector<1x32xf32>
    %40 = vector.broadcast %39 : vector<1x32xf32> to vector<16x32xf32>
    %41 = arith.addf %38, %40 : vector<16x32xf32>
    %c0_21 = arith.constant 0 : index
    %c0_22 = arith.constant 0 : index
    %42 = vector.load %arg8[%c0_21, %c0_22] : memref<16x32xf32, #tpu.memory_space<vmem>>, vector<16x32xf32>
    tpu.vector_store %arg8[%c0_21, %c0_22], %41 {strides = array<i32>} : memref<16x32xf32, #tpu.memory_space<vmem>>, vector<16x32xf32>,
    return
  }
  func.func @transform_0(%arg0: i32) -> (i32, i32) {
    %c0_i32 = arith.constant 0 : i32
    %c0_i32_0 = arith.constant 0 : i32
    return %arg0, %c0_i32 : i32, i32
  }
  func.func @transform_1(%arg0: i32) -> (i32, i32) {
    %c0_i32 = arith.constant 0 : i32
    %c0_i32_0 = arith.constant 0 : i32
    %c0_i32_1 = arith.constant 0 : i32
    return %c0_i32, %c0_i32_0 : i32, i32
  }
  func.func @transform_2(%arg0: i32) -> (i32, i32) {
    %c0_i32 = arith.constant 0 : i32
    %c0_i32_0 = arith.constant 0 : i32
    %c0_i32_1 = arith.constant 0 : i32
    return %c0_i32, %c0_i32_0 : i32, i32
  }
  func.func @transform_3(%arg0: i32) -> (i32, i32) {
    %c0_i32 = arith.constant 0 : i32
    %c0_i32_0 = arith.constant 0 : i32
    %c0_i32_1 = arith.constant 0 : i32
    return %c0_i32, %c0_i32_0 : i32, i32
  }
  func.func @transform_4(%arg0: i32) -> (i32, i32) {
    %c0_i32 = arith.constant 0 : i32
    %c0_i32_0 = arith.constant 0 : i32
    %c0_i32_1 = arith.constant 0 : i32
    return %c0_i32, %c0_i32_0 : i32, i32
  }
  func.func @transform_5(%arg0: i32) -> (i32, i32) {
    %c0_i32 = arith.constant 0 : i32
    %c0_i32_0 = arith.constant 0 : i32
    %c0_i32_1 = arith.constant 0 : i32
    return %c0_i32, %c0_i32_0 : i32, i32
  }
  func.func @transform_6(%arg0: i32) -> (i32, i32) {
    %c0_i32 = arith.constant 0 : i32
    %c0_i32_0 = arith.constant 0 : i32
    %c0_i32_1 = arith.constant 0 : i32
    return %c0_i32, %c0_i32_0 : i32, i32
  }
  func.func @transform_7(%arg0: i32) -> (i32, i32) {
    %c0_i32 = arith.constant 0 : i32
    %c0_i32_0 = arith.constant 0 : i32
    return %arg0, %c0_i32 : i32, i32
  }
}

module attributes {stable_mosaic.version = 11 : i64} {
  func.func @_attn_oproj_ln_kernel(%arg0: i32, %arg1: memref<1x16x96xbf16, #tpu.memory_space<vmem>>, %arg2: memref<1x16x32xf32, #tpu.memory_space<vmem>>, %arg3: memref<32x32xbf16, #tpu.memory_space<vmem>>, %arg4: memref<1x32xf32, #tpu.memory_space<vmem>>, %arg5: memref<1x32xf32, #tpu.memory_space<vmem>>, %arg6: memref<1x32xf32, #tpu.memory_space<vmem>>, %arg7: memref<1x16x32xf32, #tpu.memory_space<vmem>>) attributes {dimension_semantics = [#tpu.dimension_semantics<parallel>], iteration_bounds = array<i64: 2>, scalar_prefetch = 0 : i64, scratch_operands = 0 : i64, tpu.core_type = #tpu.core_type<tc>, window_params = [{transform_indices = @transform_0, window_bounds = array<i64: 1, 16, 96>}, {transform_indices = @transform_1, window_bounds = array<i64: 1, 16, 32>}, {pipeline_mode = #tpu.pipeline_mode<synchronous>, transform_indices = @transform_2, window_bounds = array<i64: 32, 32>}, {pipeline_mode = #tpu.pipeline_mode<synchronous>, transform_indices = @transform_3, window_bounds = array<i64: 1, 32>}, {pipeline_mode = #tpu.pipeline_mode<synchronous>, transform_indices = @transform_4, window_bounds = array<i64: 1, 32>}, {pipeline_mode = #tpu.pipeline_mode<synchronous>, transform_indices = @transform_5, window_bounds = array<i64: 1, 32>}, {transform_indices = @transform_6, window_bounds = array<i64: 1, 16, 32>}]} {
    %c0 = arith.constant 0 : index
    %c0_0 = arith.constant 0 : index
    %c0_1 = arith.constant 0 : index
    %0 = vector.load %arg1[%c0, %c0_0, %c0_1] : memref<1x16x96xbf16, #tpu.memory_space<vmem>>, vector<1x16x96xbf16>
    %1 = vector.shape_cast %0 : vector<1x16x96xbf16> to vector<16x96xbf16>
    %2 = vector.extract_strided_slice %1 {offsets = [0, 0], sizes = [16, 8], strides = [1, 1]} : vector<16x96xbf16> to vector<16x8xbf16>
    %3 = arith.extf %2 : vector<16x8xbf16> to vector<16x8xf32>
    %cst = arith.constant 0.176776692 : f32
    %4 = vector.broadcast %cst : f32 to vector<16x8xf32>
    %5 = arith.mulf %3, %4 : vector<16x8xf32>
    %6 = vector.extract_strided_slice %1 {offsets = [0, 32], sizes = [16, 8], strides = [1, 1]} : vector<16x96xbf16> to vector<16x8xbf16>
    %7 = vector.extract_strided_slice %1 {offsets = [0, 64], sizes = [16, 8], strides = [1, 1]} : vector<16x96xbf16> to vector<16x8xbf16>
    %8 = arith.truncf %5 : vector<16x8xf32> to vector<16x8xbf16>
    %cst_2 = arith.constant dense<0.000000e+00> : vector<16x16xf32>
    %9 = tpu.matmul %8, %6, %cst_2 {dimension_numbers = #tpu.dot_dimension_numbers<[1], [1], [0], [0], [0, 0, 1, 0], [], []>} : vector<16x8xbf16>, vector<16x8xbf16>, vector<16x16xf32> -> vector<16x16xf32>
    %cst_3 = arith.constant dense<0xFF800000> : vector<16xf32>
    %10 = vector.multi_reduction <maximumf>, %9, %cst_3 [1] : vector<16x16xf32> to vector<16xf32>
    %11 = vector.shape_cast %10 : vector<16xf32> to vector<16x1xf32>
    %12 = vector.broadcast %11 : vector<16x1xf32> to vector<16x16xf32>
    %13 = arith.subf %9, %12 : vector<16x16xf32>
    %14 = math.exp %13 : vector<16x16xf32>
    %cst_4 = arith.constant dense<0.000000e+00> : vector<16xf32>
    %15 = vector.multi_reduction <add>, %14, %cst_4 [1] : vector<16x16xf32> to vector<16xf32>
    %16 = vector.shape_cast %15 : vector<16xf32> to vector<16x1xf32>
    %17 = tpu.reciprocal %16 {approx = true} : vector<16x1xf32> -> vector<16x1xf32>
    %18 = vector.broadcast %17 : vector<16x1xf32> to vector<16x16xf32>
    %19 = arith.mulf %14, %18 : vector<16x16xf32>
    %20 = arith.truncf %19 : vector<16x16xf32> to vector<16x16xbf16>
    %cst_5 = arith.constant dense<0.000000e+00> : vector<16x8xf32>
    %21 = tpu.matmul %20, %7, %cst_5 {dimension_numbers = #tpu.dot_dimension_numbers<[1], [0], [0], [1], [0, 0, 1, 1], [], []>} : vector<16x16xbf16>, vector<16x8xbf16>, vector<16x8xf32> -> vector<16x8xf32>
    %22 = vector.extract_strided_slice %1 {offsets = [0, 8], sizes = [16, 8], strides = [1, 1]} : vector<16x96xbf16> to vector<16x8xbf16>
    %23 = arith.extf %22 : vector<16x8xbf16> to vector<16x8xf32>
    %cst_6 = arith.constant 0.176776692 : f32
    %24 = vector.broadcast %cst_6 : f32 to vector<16x8xf32>
    %25 = arith.mulf %23, %24 : vector<16x8xf32>
    %26 = vector.extract_strided_slice %1 {offsets = [0, 40], sizes = [16, 8], strides = [1, 1]} : vector<16x96xbf16> to vector<16x8xbf16>
    %27 = vector.extract_strided_slice %1 {offsets = [0, 72], sizes = [16, 8], strides = [1, 1]} : vector<16x96xbf16> to vector<16x8xbf16>
    %28 = arith.truncf %25 : vector<16x8xf32> to vector<16x8xbf16>
    %cst_7 = arith.constant dense<0.000000e+00> : vector<16x16xf32>
    %29 = tpu.matmul %28, %26, %cst_7 {dimension_numbers = #tpu.dot_dimension_numbers<[1], [1], [0], [0], [0, 0, 1, 0], [], []>} : vector<16x8xbf16>, vector<16x8xbf16>, vector<16x16xf32> -> vector<16x16xf32>
    %cst_8 = arith.constant dense<0xFF800000> : vector<16xf32>
    %30 = vector.multi_reduction <maximumf>, %29, %cst_8 [1] : vector<16x16xf32> to vector<16xf32>
    %31 = vector.shape_cast %30 : vector<16xf32> to vector<16x1xf32>
    %32 = vector.broadcast %31 : vector<16x1xf32> to vector<16x16xf32>
    %33 = arith.subf %29, %32 : vector<16x16xf32>
    %34 = math.exp %33 : vector<16x16xf32>
    %cst_9 = arith.constant dense<0.000000e+00> : vector<16xf32>
    %35 = vector.multi_reduction <add>, %34, %cst_9 [1] : vector<16x16xf32> to vector<16xf32>
    %36 = vector.shape_cast %35 : vector<16xf32> to vector<16x1xf32>
    %37 = tpu.reciprocal %36 {approx = true} : vector<16x1xf32> -> vector<16x1xf32>
    %38 = vector.broadcast %37 : vector<16x1xf32> to vector<16x16xf32>
    %39 = arith.mulf %34, %38 : vector<16x16xf32>
    %40 = arith.truncf %39 : vector<16x16xf32> to vector<16x16xbf16>
    %cst_10 = arith.constant dense<0.000000e+00> : vector<16x8xf32>
    %41 = tpu.matmul %40, %27, %cst_10 {dimension_numbers = #tpu.dot_dimension_numbers<[1], [0], [0], [1], [0, 0, 1, 1], [], []>} : vector<16x16xbf16>, vector<16x8xbf16>, vector<16x8xf32> -> vector<16x8xf32>
    %42 = vector.extract_strided_slice %1 {offsets = [0, 16], sizes = [16, 8], strides = [1, 1]} : vector<16x96xbf16> to vector<16x8xbf16>
    %43 = arith.extf %42 : vector<16x8xbf16> to vector<16x8xf32>
    %cst_11 = arith.constant 0.176776692 : f32
    %44 = vector.broadcast %cst_11 : f32 to vector<16x8xf32>
    %45 = arith.mulf %43, %44 : vector<16x8xf32>
    %46 = vector.extract_strided_slice %1 {offsets = [0, 48], sizes = [16, 8], strides = [1, 1]} : vector<16x96xbf16> to vector<16x8xbf16>
    %47 = vector.extract_strided_slice %1 {offsets = [0, 80], sizes = [16, 8], strides = [1, 1]} : vector<16x96xbf16> to vector<16x8xbf16>
    %48 = arith.truncf %45 : vector<16x8xf32> to vector<16x8xbf16>
    %cst_12 = arith.constant dense<0.000000e+00> : vector<16x16xf32>
    %49 = tpu.matmul %48, %46, %cst_12 {dimension_numbers = #tpu.dot_dimension_numbers<[1], [1], [0], [0], [0, 0, 1, 0], [], []>} : vector<16x8xbf16>, vector<16x8xbf16>, vector<16x16xf32> -> vector<16x16xf32>
    %cst_13 = arith.constant dense<0xFF800000> : vector<16xf32>
    %50 = vector.multi_reduction <maximumf>, %49, %cst_13 [1] : vector<16x16xf32> to vector<16xf32>
    %51 = vector.shape_cast %50 : vector<16xf32> to vector<16x1xf32>
    %52 = vector.broadcast %51 : vector<16x1xf32> to vector<16x16xf32>
    %53 = arith.subf %49, %52 : vector<16x16xf32>
    %54 = math.exp %53 : vector<16x16xf32>
    %cst_14 = arith.constant dense<0.000000e+00> : vector<16xf32>
    %55 = vector.multi_reduction <add>, %54, %cst_14 [1] : vector<16x16xf32> to vector<16xf32>
    %56 = vector.shape_cast %55 : vector<16xf32> to vector<16x1xf32>
    %57 = tpu.reciprocal %56 {approx = true} : vector<16x1xf32> -> vector<16x1xf32>
    %58 = vector.broadcast %57 : vector<16x1xf32> to vector<16x16xf32>
    %59 = arith.mulf %54, %58 : vector<16x16xf32>
    %60 = arith.truncf %59 : vector<16x16xf32> to vector<16x16xbf16>
    %cst_15 = arith.constant dense<0.000000e+00> : vector<16x8xf32>
    %61 = tpu.matmul %60, %47, %cst_15 {dimension_numbers = #tpu.dot_dimension_numbers<[1], [0], [0], [1], [0, 0, 1, 1], [], []>} : vector<16x16xbf16>, vector<16x8xbf16>, vector<16x8xf32> -> vector<16x8xf32>
    %62 = vector.extract_strided_slice %1 {offsets = [0, 24], sizes = [16, 8], strides = [1, 1]} : vector<16x96xbf16> to vector<16x8xbf16>
    %63 = arith.extf %62 : vector<16x8xbf16> to vector<16x8xf32>
    %cst_16 = arith.constant 0.176776692 : f32
    %64 = vector.broadcast %cst_16 : f32 to vector<16x8xf32>
    %65 = arith.mulf %63, %64 : vector<16x8xf32>
    %66 = vector.extract_strided_slice %1 {offsets = [0, 56], sizes = [16, 8], strides = [1, 1]} : vector<16x96xbf16> to vector<16x8xbf16>
    %67 = vector.extract_strided_slice %1 {offsets = [0, 88], sizes = [16, 8], strides = [1, 1]} : vector<16x96xbf16> to vector<16x8xbf16>
    %68 = arith.truncf %65 : vector<16x8xf32> to vector<16x8xbf16>
    %cst_17 = arith.constant dense<0.000000e+00> : vector<16x16xf32>
    %69 = tpu.matmul %68, %66, %cst_17 {dimension_numbers = #tpu.dot_dimension_numbers<[1], [1], [0], [0], [0, 0, 1, 0], [], []>} : vector<16x8xbf16>, vector<16x8xbf16>, vector<16x16xf32> -> vector<16x16xf32>
    %cst_18 = arith.constant dense<0xFF800000> : vector<16xf32>
    %70 = vector.multi_reduction <maximumf>, %69, %cst_18 [1] : vector<16x16xf32> to vector<16xf32>
    %71 = vector.shape_cast %70 : vector<16xf32> to vector<16x1xf32>
    %72 = vector.broadcast %71 : vector<16x1xf32> to vector<16x16xf32>
    %73 = arith.subf %69, %72 : vector<16x16xf32>
    %74 = math.exp %73 : vector<16x16xf32>
    %cst_19 = arith.constant dense<0.000000e+00> : vector<16xf32>
    %75 = vector.multi_reduction <add>, %74, %cst_19 [1] : vector<16x16xf32> to vector<16xf32>
    %76 = vector.shape_cast %75 : vector<16xf32> to vector<16x1xf32>
    %77 = tpu.reciprocal %76 {approx = true} : vector<16x1xf32> -> vector<16x1xf32>
    %78 = vector.broadcast %77 : vector<16x1xf32> to vector<16x16xf32>
    %79 = arith.mulf %74, %78 : vector<16x16xf32>
    %80 = arith.truncf %79 : vector<16x16xf32> to vector<16x16xbf16>
    %cst_20 = arith.constant dense<0.000000e+00> : vector<16x8xf32>
    %81 = tpu.matmul %80, %67, %cst_20 {dimension_numbers = #tpu.dot_dimension_numbers<[1], [0], [0], [1], [0, 0, 1, 1], [], []>} : vector<16x16xbf16>, vector<16x8xbf16>, vector<16x8xf32> -> vector<16x8xf32>
    %82 = tpu.concatenate %21, %41, %61, %81 in 1 : vector<16x8xf32>, vector<16x8xf32>, vector<16x8xf32>, vector<16x8xf32> -> vector<16x32xf32>
    %83 = arith.truncf %82 : vector<16x32xf32> to vector<16x32xbf16>
    %c0_21 = arith.constant 0 : index
    %c0_22 = arith.constant 0 : index
    %84 = vector.load %arg3[%c0_21, %c0_22] : memref<32x32xbf16, #tpu.memory_space<vmem>>, vector<32x32xbf16>
    %cst_23 = arith.constant dense<0.000000e+00> : vector<16x32xf32>
    %85 = tpu.matmul %83, %84, %cst_23 {dimension_numbers = #tpu.dot_dimension_numbers<[1], [0], [0], [1], [0, 0, 1, 1], [], []>} : vector<16x32xbf16>, vector<32x32xbf16>, vector<16x32xf32> -> vector<16x32xf32>
    %c0_24 = arith.constant 0 : index
    %c0_25 = arith.constant 0 : index
    %86 = vector.load %arg4[%c0_24, %c0_25] : memref<1x32xf32, #tpu.memory_space<vmem>>, vector<1x32xf32>
    %87 = vector.broadcast %86 : vector<1x32xf32> to vector<16x32xf32>
    %88 = arith.addf %85, %87 : vector<16x32xf32>
    %c0_26 = arith.constant 0 : index
    %c0_27 = arith.constant 0 : index
    %c0_28 = arith.constant 0 : index
    %89 = vector.load %arg2[%c0_26, %c0_27, %c0_28] : memref<1x16x32xf32, #tpu.memory_space<vmem>>, vector<1x16x32xf32>
    %90 = vector.shape_cast %89 : vector<1x16x32xf32> to vector<16x32xf32>
    %91 = arith.addf %88, %90 : vector<16x32xf32>
    %cst_29 = arith.constant dense<0.000000e+00> : vector<16xf32>
    %92 = vector.multi_reduction <add>, %91, %cst_29 [1] : vector<16x32xf32> to vector<16xf32>
    %93 = vector.shape_cast %92 : vector<16xf32> to vector<16x1xf32>
    %cst_30 = arith.constant 3.200000e+01 : f32
    %94 = vector.broadcast %cst_30 : f32 to vector<16x1xf32>
    %95 = arith.divf %93, %94 : vector<16x1xf32>
    %96 = vector.broadcast %95 : vector<16x1xf32> to vector<16x32xf32>
    %97 = arith.subf %91, %96 : vector<16x32xf32>
    %98 = arith.mulf %97, %97 : vector<16x32xf32>
    %cst_31 = arith.constant dense<0.000000e+00> : vector<16xf32>
    %99 = vector.multi_reduction <add>, %98, %cst_31 [1] : vector<16x32xf32> to vector<16xf32>
    %100 = vector.shape_cast %99 : vector<16xf32> to vector<16x1xf32>
    %cst_32 = arith.constant 3.200000e+01 : f32
    %101 = vector.broadcast %cst_32 : f32 to vector<16x1xf32>
    %102 = arith.divf %100, %101 : vector<16x1xf32>
    %103 = vector.broadcast %95 : vector<16x1xf32> to vector<16x32xf32>
    %104 = arith.subf %91, %103 : vector<16x32xf32>
    %cst_33 = arith.constant 9.99999974E-6 : f32
    %105 = vector.broadcast %cst_33 : f32 to vector<16x1xf32>
    %106 = arith.addf %102, %105 : vector<16x1xf32>
    %107 = math.rsqrt %106 : vector<16x1xf32>
    %108 = vector.broadcast %107 : vector<16x1xf32> to vector<16x32xf32>
    %109 = arith.mulf %104, %108 : vector<16x32xf32>
    %c0_34 = arith.constant 0 : index
    %c0_35 = arith.constant 0 : index
    %110 = vector.load %arg5[%c0_34, %c0_35] : memref<1x32xf32, #tpu.memory_space<vmem>>, vector<1x32xf32>
    %111 = vector.broadcast %110 : vector<1x32xf32> to vector<16x32xf32>
    %112 = arith.mulf %109, %111 : vector<16x32xf32>
    %c0_36 = arith.constant 0 : index
    %c0_37 = arith.constant 0 : index
    %113 = vector.load %arg6[%c0_36, %c0_37] : memref<1x32xf32, #tpu.memory_space<vmem>>, vector<1x32xf32>
    %114 = vector.broadcast %113 : vector<1x32xf32> to vector<16x32xf32>
    %115 = arith.addf %112, %114 : vector<16x32xf32>
    %c0_38 = arith.constant 0 : index
    %c0_39 = arith.constant 0 : index
    %c0_40 = arith.constant 0 : index
    %116 = vector.load %arg7[%c0_38, %c0_39, %c0_40] : memref<1x16x32xf32, #tpu.memory_space<vmem>>, vector<1x16x32xf32>
    %117 = vector.shape_cast %116 : vector<1x16x32xf32> to vector<16x32xf32>
    %118 = vector.shape_cast %115 : vector<16x32xf32> to vector<1x16x32xf32>
    tpu.vector_store %arg7[%c0_38, %c0_39, %c0_40], %118 {strides = array<i32>} : memref<1x16x32xf32, #tpu.memory_space<vmem>>, vector<1x16x32xf32>,
    return
  }
  func.func @transform_0(%arg0: i32) -> (i32, i32, i32) {
    %c0_i32 = arith.constant 0 : i32
    %c0_i32_0 = arith.constant 0 : i32
    %c0_i32_1 = arith.constant 0 : i32
    return %arg0, %c0_i32, %c0_i32_0 : i32, i32, i32
  }
  func.func @transform_1(%arg0: i32) -> (i32, i32, i32) {
    %c0_i32 = arith.constant 0 : i32
    %c0_i32_0 = arith.constant 0 : i32
    %c0_i32_1 = arith.constant 0 : i32
    return %arg0, %c0_i32, %c0_i32_0 : i32, i32, i32
  }
  func.func @transform_2(%arg0: i32) -> (i32, i32) {
    %c0_i32 = arith.constant 0 : i32
    %c0_i32_0 = arith.constant 0 : i32
    %c0_i32_1 = arith.constant 0 : i32
    return %c0_i32, %c0_i32_0 : i32, i32
  }
  func.func @transform_3(%arg0: i32) -> (i32, i32) {
    %c0_i32 = arith.constant 0 : i32
    %c0_i32_0 = arith.constant 0 : i32
    %c0_i32_1 = arith.constant 0 : i32
    return %c0_i32, %c0_i32_0 : i32, i32
  }
  func.func @transform_4(%arg0: i32) -> (i32, i32) {
    %c0_i32 = arith.constant 0 : i32
    %c0_i32_0 = arith.constant 0 : i32
    %c0_i32_1 = arith.constant 0 : i32
    return %c0_i32, %c0_i32_0 : i32, i32
  }
  func.func @transform_5(%arg0: i32) -> (i32, i32) {
    %c0_i32 = arith.constant 0 : i32
    %c0_i32_0 = arith.constant 0 : i32
    %c0_i32_1 = arith.constant 0 : i32
    return %c0_i32, %c0_i32_0 : i32, i32
  }
  func.func @transform_6(%arg0: i32) -> (i32, i32, i32) {
    %c0_i32 = arith.constant 0 : i32
    %c0_i32_0 = arith.constant 0 : i32
    %c0_i32_1 = arith.constant 0 : i32
    return %arg0, %c0_i32, %c0_i32_0 : i32, i32, i32
  }
}

module attributes {stable_mosaic.version = 11 : i64} {
  func.func @_ffn_ln_kernel(%arg0: i32, %arg1: memref<16x32xf32, #tpu.memory_space<vmem>>, %arg2: memref<32x64xbf16, #tpu.memory_space<vmem>>, %arg3: memref<1x64xf32, #tpu.memory_space<vmem>>, %arg4: memref<64x32xbf16, #tpu.memory_space<vmem>>, %arg5: memref<1x32xf32, #tpu.memory_space<vmem>>, %arg6: memref<1x32xf32, #tpu.memory_space<vmem>>, %arg7: memref<1x32xf32, #tpu.memory_space<vmem>>, %arg8: memref<16x32xf32, #tpu.memory_space<vmem>>) attributes {dimension_semantics = [#tpu.dimension_semantics<parallel>], iteration_bounds = array<i64: 2>, scalar_prefetch = 0 : i64, scratch_operands = 0 : i64, tpu.core_type = #tpu.core_type<tc>, window_params = [{transform_indices = @transform_0, window_bounds = array<i64: 16, 32>}, {pipeline_mode = #tpu.pipeline_mode<synchronous>, transform_indices = @transform_1, window_bounds = array<i64: 32, 64>}, {pipeline_mode = #tpu.pipeline_mode<synchronous>, transform_indices = @transform_2, window_bounds = array<i64: 1, 64>}, {pipeline_mode = #tpu.pipeline_mode<synchronous>, transform_indices = @transform_3, window_bounds = array<i64: 64, 32>}, {pipeline_mode = #tpu.pipeline_mode<synchronous>, transform_indices = @transform_4, window_bounds = array<i64: 1, 32>}, {pipeline_mode = #tpu.pipeline_mode<synchronous>, transform_indices = @transform_5, window_bounds = array<i64: 1, 32>}, {pipeline_mode = #tpu.pipeline_mode<synchronous>, transform_indices = @transform_6, window_bounds = array<i64: 1, 32>}, {transform_indices = @transform_7, window_bounds = array<i64: 16, 32>}]} {
    %c0 = arith.constant 0 : index
    %c0_0 = arith.constant 0 : index
    %0 = vector.load %arg1[%c0, %c0_0] : memref<16x32xf32, #tpu.memory_space<vmem>>, vector<16x32xf32>
    %1 = arith.truncf %0 : vector<16x32xf32> to vector<16x32xbf16>
    %c0_1 = arith.constant 0 : index
    %c0_2 = arith.constant 0 : index
    %2 = vector.load %arg2[%c0_1, %c0_2] : memref<32x64xbf16, #tpu.memory_space<vmem>>, vector<32x64xbf16>
    %cst = arith.constant dense<0.000000e+00> : vector<16x64xf32>
    %3 = tpu.matmul %1, %2, %cst {dimension_numbers = #tpu.dot_dimension_numbers<[1], [0], [0], [1], [0, 0, 1, 1], [], []>} : vector<16x32xbf16>, vector<32x64xbf16>, vector<16x64xf32> -> vector<16x64xf32>
    %c0_3 = arith.constant 0 : index
    %c0_4 = arith.constant 0 : index
    %4 = vector.load %arg3[%c0_3, %c0_4] : memref<1x64xf32, #tpu.memory_space<vmem>>, vector<1x64xf32>
    %5 = vector.broadcast %4 : vector<1x64xf32> to vector<16x64xf32>
    %6 = arith.addf %3, %5 : vector<16x64xf32>
    %cst_5 = arith.constant 0.000000e+00 : f32
    %7 = vector.broadcast %cst_5 : f32 to vector<16x64xf32>
    %8 = arith.maximumf %6, %7 : vector<16x64xf32>
    %9 = arith.truncf %8 : vector<16x64xf32> to vector<16x64xbf16>
    %c0_6 = arith.constant 0 : index
    %c0_7 = arith.constant 0 : index
    %10 = vector.load %arg4[%c0_6, %c0_7] : memref<64x32xbf16, #tpu.memory_space<vmem>>, vector<64x32xbf16>
    %cst_8 = arith.constant dense<0.000000e+00> : vector<16x32xf32>
    %11 = tpu.matmul %9, %10, %cst_8 {dimension_numbers = #tpu.dot_dimension_numbers<[1], [0], [0], [1], [0, 0, 1, 1], [], []>} : vector<16x64xbf16>, vector<64x32xbf16>, vector<16x32xf32> -> vector<16x32xf32>
    %c0_9 = arith.constant 0 : index
    %c0_10 = arith.constant 0 : index
    %12 = vector.load %arg5[%c0_9, %c0_10] : memref<1x32xf32, #tpu.memory_space<vmem>>, vector<1x32xf32>
    %13 = vector.broadcast %12 : vector<1x32xf32> to vector<16x32xf32>
    %14 = arith.addf %11, %13 : vector<16x32xf32>
    %cst_11 = arith.constant 0.000000e+00 : f32
    %15 = vector.broadcast %cst_11 : f32 to vector<16x32xf32>
    %16 = arith.maximumf %14, %15 : vector<16x32xf32>
    %17 = arith.addf %16, %0 : vector<16x32xf32>
    %cst_12 = arith.constant dense<0.000000e+00> : vector<16xf32>
    %18 = vector.multi_reduction <add>, %17, %cst_12 [1] : vector<16x32xf32> to vector<16xf32>
    %19 = vector.shape_cast %18 : vector<16xf32> to vector<16x1xf32>
    %cst_13 = arith.constant 3.200000e+01 : f32
    %20 = vector.broadcast %cst_13 : f32 to vector<16x1xf32>
    %21 = arith.divf %19, %20 : vector<16x1xf32>
    %22 = vector.broadcast %21 : vector<16x1xf32> to vector<16x32xf32>
    %23 = arith.subf %17, %22 : vector<16x32xf32>
    %24 = arith.mulf %23, %23 : vector<16x32xf32>
    %cst_14 = arith.constant dense<0.000000e+00> : vector<16xf32>
    %25 = vector.multi_reduction <add>, %24, %cst_14 [1] : vector<16x32xf32> to vector<16xf32>
    %26 = vector.shape_cast %25 : vector<16xf32> to vector<16x1xf32>
    %cst_15 = arith.constant 3.200000e+01 : f32
    %27 = vector.broadcast %cst_15 : f32 to vector<16x1xf32>
    %28 = arith.divf %26, %27 : vector<16x1xf32>
    %29 = vector.broadcast %21 : vector<16x1xf32> to vector<16x32xf32>
    %30 = arith.subf %17, %29 : vector<16x32xf32>
    %cst_16 = arith.constant 9.99999974E-6 : f32
    %31 = vector.broadcast %cst_16 : f32 to vector<16x1xf32>
    %32 = arith.addf %28, %31 : vector<16x1xf32>
    %33 = math.rsqrt %32 : vector<16x1xf32>
    %34 = vector.broadcast %33 : vector<16x1xf32> to vector<16x32xf32>
    %35 = arith.mulf %30, %34 : vector<16x32xf32>
    %c0_17 = arith.constant 0 : index
    %c0_18 = arith.constant 0 : index
    %36 = vector.load %arg6[%c0_17, %c0_18] : memref<1x32xf32, #tpu.memory_space<vmem>>, vector<1x32xf32>
    %37 = vector.broadcast %36 : vector<1x32xf32> to vector<16x32xf32>
    %38 = arith.mulf %35, %37 : vector<16x32xf32>
    %c0_19 = arith.constant 0 : index
    %c0_20 = arith.constant 0 : index
    %39 = vector.load %arg7[%c0_19, %c0_20] : memref<1x32xf32, #tpu.memory_space<vmem>>, vector<1x32xf32>
    %40 = vector.broadcast %39 : vector<1x32xf32> to vector<16x32xf32>
    %41 = arith.addf %38, %40 : vector<16x32xf32>
    %c0_21 = arith.constant 0 : index
    %c0_22 = arith.constant 0 : index
    %42 = vector.load %arg8[%c0_21, %c0_22] : memref<16x32xf32, #tpu.memory_space<vmem>>, vector<16x32xf32>
    tpu.vector_store %arg8[%c0_21, %c0_22], %41 {strides = array<i32>} : memref<16x32xf32, #tpu.memory_space<vmem>>, vector<16x32xf32>,
    return
  }
  func.func @transform_0(%arg0: i32) -> (i32, i32) {
    %c0_i32 = arith.constant 0 : i32
    %c0_i32_0 = arith.constant 0 : i32
    return %arg0, %c0_i32 : i32, i32
  }
  func.func @transform_1(%arg0: i32) -> (i32, i32) {
    %c0_i32 = arith.constant 0 : i32
    %c0_i32_0 = arith.constant 0 : i32
    %c0_i32_1 = arith.constant 0 : i32
    return %c0_i32, %c0_i32_0 : i32, i32
  }
  func.func @transform_2(%arg0: i32) -> (i32, i32) {
    %c0_i32 = arith.constant 0 : i32
    %c0_i32_0 = arith.constant 0 : i32
    %c0_i32_1 = arith.constant 0 : i32
    return %c0_i32, %c0_i32_0 : i32, i32
  }
  func.func @transform_3(%arg0: i32) -> (i32, i32) {
    %c0_i32 = arith.constant 0 : i32
    %c0_i32_0 = arith.constant 0 : i32
    %c0_i32_1 = arith.constant 0 : i32
    return %c0_i32, %c0_i32_0 : i32, i32
  }
  func.func @transform_4(%arg0: i32) -> (i32, i32) {
    %c0_i32 = arith.constant 0 : i32
    %c0_i32_0 = arith.constant 0 : i32
    %c0_i32_1 = arith.constant 0 : i32
    return %c0_i32, %c0_i32_0 : i32, i32
  }
  func.func @transform_5(%arg0: i32) -> (i32, i32) {
    %c0_i32 = arith.constant 0 : i32
    %c0_i32_0 = arith.constant 0 : i32
    %c0_i32_1 = arith.constant 0 : i32
    return %c0_i32, %c0_i32_0 : i32, i32
  }
  func.func @transform_6(%arg0: i32) -> (i32, i32) {
    %c0_i32 = arith.constant 0 : i32
    %c0_i32_0 = arith.constant 0 : i32
    %c0_i32_1 = arith.constant 0 : i32
    return %c0_i32, %c0_i32_0 : i32, i32
  }
  func.func @transform_7(%arg0: i32) -> (i32, i32) {
    %c0_i32 = arith.constant 0 : i32
    %c0_i32_0 = arith.constant 0 : i32
    return %arg0, %c0_i32 : i32, i32
  }
}

</mosaic_0001>

<llo_original>
// kernel: transformer_encoder_2d.10
$region0: #{transformer_encoder_2d.10}
  #allocation0 [shape = 'u32[]', space=smem, size = 0x4, offset = 0x4, fixed_abs, tag = 'smem constant byte address 0x4 - core index']
  #allocation1 [shape = 'u32[144,128]{1,0:T(1,128)}', space=vmem, size = 0x12000, scoped, tag = 'internal scratch']
  %s0 = inlined_call_operand.vmem [shape: f32[32,32], index: 0, kind: input, shape index: {}]
  %s1 = inlined_call_operand.vmem [shape: bf16[32,96], index: 1, kind: input, shape index: {}]
  %s2 = inlined_call_operand.vmem [shape: f32[1,96], index: 2, kind: input, shape index: {}]
  %s3 = inlined_call_operand.vmem [shape: bf16[32,96], index: 3, kind: output, shape index: {}]
  %s4 = sld [smem:[#allocation0]]
  $region45: #{transformer_encoder_2d.10} parent=0
    _
  %s6 = ssub.s32 1, %s4
  %s7 = scalar_select 0, %s6, %s4
  loop: start=0, step=1, limit=4
  $region2: #{transformer_encoder_2d.10} parent=0 // loop_pre_header
    _
  $region3: #{transformer_encoder_2d.10} parent=0 // loop_header
    %s9 = sphi 0, %s13
    %p10 = scmp.ge.s32.totalorder %s9, 4
    %s19 = sphi 0, %s21
    %s22 = sphi 0, %s19
    %s23 = sphi 0, %s22
    %s39 = sphi 0, %s23
    %s43 = sphi 0, %s43
    %s45 = sphi 0, %s43
    %s46 = sphi 0, %s45
    %s60 = sphi 0, %s46
    %s64 = sphi 0, %s64
    %s66 = sphi 0, %s64
    %s67 = sphi 0, %s66
    %s81 = sphi 0, %s67
    %s87 = sphi 0, %s89
    %s90 = sphi 0, %s87
    %s91 = sphi 0, %s90
    %s107 = sphi 0, %s91
  $region4: #{transformer_encoder_2d.10} parent=0 // loop_header_branch
    %12 = sbr.rel (%p10) target = $region8
  $region5: #{transformer_encoder_2d.10} parent=0 // loop_body
    %s14 = ssub.s32 %s9, 1
    %s15 = ssub.s32 %s9, 2
    %s16 = sadd.s32 %s9, 1
    %s17 = ssub.s32 %s9, %s16
    %p18 = scmp.eq.s32.totalorder %s17, 0
    %s20 = sadd.s32 %s19, 1
    %s21 = scalar_select %p18, %s19, %s20
    %p24 = pneg %p18
    %p25 = scmp.eq.s32.totalorder %s9, 1
    %p26 = por %p24, %p25
    %p27 = scmp.ne.s32.totalorder %s19, %s22
    %p28 = scmp.eq.s32.totalorder %s9, 0
    %p29 = por %p27, %p28
    %p30 = scmp.ne.s32.totalorder %s19, %s22
    %p31 = scmp.eq.s32.totalorder %s14, 1
    %p32 = por %p30, %p31
    %p33 = scmp.ne.s32.totalorder %s22, %s23
    %p34 = scmp.eq.s32.totalorder %s14, 0
    %p35 = por %p33, %p34
    %p36 = scmp.ne.s32.totalorder %s22, %s23
    %p37 = scmp.eq.s32.totalorder %s15, 1
    %p38 = por %p36, %p37
    %p40 = scmp.ne.s32.totalorder %s23, %s39
    %p41 = scmp.eq.s32.totalorder %s15, 0
    %p42 = por %p40, %p41
    %s44 = sadd.s32 %s43, 1
    %p47 = scmp.eq.s32.totalorder %s9, 1
    %p48 = scmp.ne.s32.totalorder %s43, %s45
    %p49 = scmp.eq.s32.totalorder %s9, 0
    %p50 = por %p48, %p49
    %p51 = scmp.ne.s32.totalorder %s43, %s45
    %p52 = scmp.eq.s32.totalorder %s14, 1
    %p53 = por %p51, %p52
    %p54 = scmp.ne.s32.totalorder %s45, %s46
    %p55 = scmp.eq.s32.totalorder %s14, 0
    %p56 = por %p54, %p55
    %p57 = scmp.ne.s32.totalorder %s45, %s46
    %p58 = scmp.eq.s32.totalorder %s15, 1
    %p59 = por %p57, %p58
    %p61 = scmp.ne.s32.totalorder %s46, %s60
    %p62 = scmp.eq.s32.totalorder %s15, 0
    %p63 = por %p61, %p62
    %s65 = sadd.s32 %s64, 1
    %p68 = scmp.eq.s32.totalorder %s9, 1
    %p69 = scmp.ne.s32.totalorder %s64, %s66
    %p70 = scmp.eq.s32.totalorder %s9, 0
    %p71 = por %p69, %p70
    %p72 = scmp.ne.s32.totalorder %s64, %s66
    %p73 = scmp.eq.s32.totalorder %s14, 1
    %p74 = por %p72, %p73
    %p75 = scmp.ne.s32.totalorder %s66, %s67
    %p76 = scmp.eq.s32.totalorder %s14, 0
    %p77 = por %p75, %p76
    %p78 = scmp.ne.s32.totalorder %s66, %s67
    %p79 = scmp.eq.s32.totalorder %s15, 1
    %p80 = por %p78, %p79
    %p82 = scmp.ne.s32.totalorder %s67, %s81
    %p83 = scmp.eq.s32.totalorder %s15, 0
    %p84 = por %p82, %p83
    %s85 = ssub.s32 %s9, %s16
    %p86 = scmp.eq.s32.totalorder %s85, 0
    %s88 = sadd.s32 %s87, 1
    %s89 = scalar_select %p86, %s87, %s88
    %p92 = pneg %p86
    %p93 = scmp.eq.s32.totalorder %s9, 1
    %p94 = por %p92, %p93
    %p95 = scmp.ne.s32.totalorder %s87, %s90
    %p96 = scmp.eq.s32.totalorder %s9, 0
    %p97 = por %p95, %p96
    %p98 = scmp.ne.s32.totalorder %s87, %s90
    %p99 = scmp.eq.s32.totalorder %s14, 1
    %p100 = por %p98, %p99
    %p101 = scmp.ne.s32.totalorder %s90, %s91
    %p102 = scmp.eq.s32.totalorder %s14, 0
    %p103 = por %p101, %p102
    %p104 = scmp.ne.s32.totalorder %s90, %s91
    %p105 = scmp.eq.s32.totalorder %s15, 1
    %p106 = por %p104, %p105
    %p108 = scmp.ne.s32.totalorder %s91, %s107
    %p109 = scmp.eq.s32.totalorder %s15, 0
    %p110 = por %p108, %p109
    %p111 = scmp.le.s32.totalorder 1, %s9
    %p112 = scmp.lt.s32.totalorder %s9, 3
    %p113 = pnand %p111, %p112
    %p114 = pneg %p113
    // Predicated region
    $region9: #{transformer_encoder_2d.10} parent=5 // pred_check
      _
    $region10: #{transformer_encoder_2d.10} parent=5 // pred_check_branch
      %116 = sbr.rel (%p113) target = $region12
    $region11: #{transformer_encoder_2d.10} parent=5 // pred_region
      %s117 = ssub.s32 %s9, 1
      // Predicated region
      $region13: #{transformer_encoder_2d.10} parent=11 // pred_check
        %p118 = pneg %p56
      $region14: #{transformer_encoder_2d.10} parent=11 // pred_check_branch
        %120 = sbr.rel (%p118) target = $region16
      $region15: #{transformer_encoder_2d.10} parent=11 // pred_region
        _
      $region16: #{transformer_encoder_2d.10} parent=11 // pred_fallthru
        _
      // Predicated region
      $region17: #{transformer_encoder_2d.10} parent=11 // pred_check
        %p121 = pneg %p77
      $region18: #{transformer_encoder_2d.10} parent=11 // pred_check_branch
        %123 = sbr.rel (%p121) target = $region20
      $region19: #{transformer_encoder_2d.10} parent=11 // pred_region
        _
      $region20: #{transformer_encoder_2d.10} parent=11 // pred_fallthru
        _
    $region12: #{transformer_encoder_2d.10} parent=5 // pred_fallthru
      _
    %p124 = scmp.lt.s32.totalorder %s9, 2
    // Predicated region
    $region21: #{transformer_encoder_2d.10} parent=5 // pred_check
      %p125 = pneg %p124
    $region22: #{transformer_encoder_2d.10} parent=5 // pred_check_branch
      %127 = sbr.rel (%p125) target = $region24
    $region23: #{transformer_encoder_2d.10} parent=5 // pred_region
      // Predicated region
      $region25: #{transformer_encoder_2d.10} parent=23 // pred_check
        %p128 = pneg %p29
      $region26: #{transformer_encoder_2d.10} parent=23 // pred_check_branch
        %130 = sbr.rel (%p128) target = $region28
      $region27: #{transformer_encoder_2d.10} parent=23 // pred_region
        %s131 = smul.u32 2, %s9
        %p132 = scmp.lt.s32.totalorder %s131, 3
        %s133 = scalar_select %p132, %s131, 3
        %s134 = smul.addr %s133, 8
        %s135 = scalar_lea.vmem %s0, %s134
        %s136 = smul.u32 2, %s9
      $region28: #{transformer_encoder_2d.10} parent=23 // pred_fallthru
        _
    $region24: #{transformer_encoder_2d.10} parent=5 // pred_fallthru
      _
    %p137 = scmp.le.s32.totalorder 1, %s9
    %p138 = scmp.lt.s32.totalorder %s9, 3
    %p139 = pnand %p137, %p138
    %p140 = pneg %p139
    // Predicated region
    $region29: #{transformer_encoder_2d.10} parent=5 // pred_check
      _
    $region30: #{transformer_encoder_2d.10} parent=5 // pred_check_branch
      %142 = sbr.rel (%p139) target = $region32
    $region31: #{transformer_encoder_2d.10} parent=5 // pred_region
      %s143 = ssub.s32 %s9, 1
      %s144 = smul.u32 2, %s14
      %p145 = scmp.lt.s32.totalorder %s144, 3
      %s146 = scalar_select %p145, %s144, 3
      %s147 = smul.addr %s146, 8
      %s148 = scalar_lea.vmem %s0, %s147
      %p149 = pneg %p35
      %p150 = pneg %p32
      %p151 = pneg %p56
      %p152 = pneg %p53
      %p153 = pneg %p77
      %p154 = pneg %p74
      %p155 = pneg %p103
      %p156 = pneg %p100
      %s157 = smul.u32 2, %s14
      %p158 = scmp.lt.s32.totalorder %s157, 3
      %s159 = scalar_select %p158, %s157, 3
      %s160 = smul.addr %s159, 4
      %s161 = scalar_lea.vmem %s3, %s160
      %s162 = smul.u32 2, %s14
      %p163 = scmp.lt.s32.totalorder %s162, 3
      %s164 = scalar_select %p163, %s162, 3
      %s165 = smul.addr %s164, 8
      %s166 = scalar_lea.vmem %s0, %s165
      %s167 = smul.u32 2, %s14
      %s168 = smul.u32 2, %s14
      %p169 = scmp.lt.s32.totalorder %s168, 3
      %s170 = scalar_select %p169, %s168, 3
      %s171 = smul.addr %s170, 4
      %s172 = scalar_lea.vmem %s3, %s171
      %s173 = smul.u32 2, %s14
      %v175 = vld [vmem:[%s166] sm:$0xff]
      %v176 = vld [vmem:[%s166 + $0x8] sm:$0xff]
      %v177 = vpack.c.bf16 %v176, %v175
      %v178 = vld [vmem:[%s1] sm:$0xf]
      %v179 = vld [vmem:[%s1 + $0x4] sm:$0xf]
      %v180 = vld [vmem:[%s1 + $0x8] sm:$0xf]
      %v181 = vld [vmem:[%s1 + $0xc] sm:$0xf]
      %v182 = vld [vmem:[%s2] sm:$0x1]
      %v184 = vlaneseq
      %v185 = vshrl.u32 %v184, 7
      %v186 = vsub.s32 0, %v185
      %v187 = vrot.slane %v182, %v186
      %v193 = vunpack.c.l.b16 %v178
      %v194 = vunpack.c.l.b16 %v179
      %v195 = vunpack.c.l.b16 %v180
      %v196 = vunpack.c.l.b16 %v181
      %v197 = vpack.c.b16 %v194, %v193
      %v198 = vpack.c.b16 %v196, %v195
      %vm201 = vcmask 261120
      %v203 = vsel %vm201, %v177, 0
      %205 = vmatprep.subr.bf16.mxu0 0
      %206 = vmatpush1.bf16.msra.mxu0 0
      %207 = vmatprep.subr.bf16.mxu0 0
      %208 = vmatpush1.bf16.msra.mxu0 0
      %209 = vmatprep.subr.bf16.mxu0 0
      %210 = vmatpush1.bf16.msra.mxu0 0
      %211 = vmatprep.subr.bf16.mxu0 0
      %212 = vmatpush1.bf16.msra.mxu0 0
      %213 = vmatprep.subr.bf16.mxu0 0
      %214 = vmatpush1.bf16.msra.mxu0 0
      %215 = vmatprep.subr.bf16.mxu0 0
      %216 = vmatpush1.bf16.msra.mxu0 0
      %217 = vmatprep.subr.bf16.mxu0 0
      %218 = vmatpush1.bf16.msra.mxu0 %v198
      %219 = vmatprep.subr.bf16.mxu0 0
      %220 = vmatpush1.bf16.msra.mxu0 %v197
      %221 = vmatprep.subr.bf16.mxu0 0
      %222 = vmatpush2.bf16.msra.mxu0 0
      %223 = vmatprep.subr.bf16.mxu0 0
      %224 = vmatpush2.bf16.msra.mxu0 0
      %225 = vmatprep.subr.bf16.mxu0 0
      %226 = vmatpush2.bf16.msra.mxu0 0
      %227 = vmatprep.subr.bf16.mxu0 0
      %228 = vmatpush2.bf16.msra.mxu0 0
      %229 = vmatprep.subr.bf16.mxu0 0
      %230 = vmatpush2.bf16.msra.mxu0 0
      %231 = vmatprep.subr.bf16.mxu0 0
      %232 = vmatpush2.bf16.msra.mxu0 0
      %233 = vmatprep.subr.bf16.mxu0 0
      %234 = vmatpush2.bf16.msra.mxu0 0
      %235 = vmatprep.subr.bf16.mxu0 0
      %236 = vmatpush2.bf16.msra.mxu0 0
      %237 = vmatprep.mubr.bf16.mxu0 0
      %238 = vmatmul.mubr.bf16.gmra.mxu0 %v203
      %v239 = vpop.f32.mrf.mxu0
      %v240 = vadd.f32 %v187, %v239
      %v241 = vpop.f32.mrf.mxu0
      %v242 = vpop.f32.mrf.mxu0
      %v243 = vadd.f32 %v187, %v242
      %v244 = vpop.f32.mrf.mxu0
      %245 = vdwg.mxu0
      %v246 = vpack.c.bf16 %v243, %v240
      %v248 = vunpack.c.l.b16 %v246
      %v249 = vunpack.c.h.b16 %v246
      %v250 = vpack.c.b16 %v248, %v248
      %v251 = vpack.c.b16 %v249, %v249
      %vm254 = vcmask 781312
      %255 = vst.msk [vmem:[%s172] sm:$0xf] %vm254, %v250
      %256 = vst.msk [vmem:[%s172 + $0x4] sm:$0xf] %vm254, %v251
      %s257 = smul.u32 2, %s14
      %p258 = scmp.lt.s32.totalorder %s257, 3
      %s259 = scalar_select %p258, %s257, 3
      %s260 = smul.addr %s259, 4
      %s261 = scalar_lea.vmem %s3, %s260
      // Predicated region
      $region33: #{transformer_encoder_2d.10} parent=31 // pred_check
        %p262 = pneg %p100
      $region34: #{transformer_encoder_2d.10} parent=31 // pred_check_branch
        %264 = sbr.rel (%p262) target = $region36
      $region35: #{transformer_encoder_2d.10} parent=31 // pred_region
        %s265 = smul.u32 2, %s14
      $region36: #{transformer_encoder_2d.10} parent=31 // pred_fallthru
        _
    $region32: #{transformer_encoder_2d.10} parent=5 // pred_fallthru
      _
    %p266 = scmp.le.s32.totalorder 2, %s9
    // Predicated region
    $region37: #{transformer_encoder_2d.10} parent=5 // pred_check
      %p267 = pneg %p266
    $region38: #{transformer_encoder_2d.10} parent=5 // pred_check_branch
      %269 = sbr.rel (%p267) target = $region40
    $region39: #{transformer_encoder_2d.10} parent=5 // pred_region
      %s270 = ssub.s32 %s9, 2
      // Predicated region
      $region41: #{transformer_encoder_2d.10} parent=39 // pred_check
        %p271 = pneg %p106
      $region42: #{transformer_encoder_2d.10} parent=39 // pred_check_branch
        %273 = sbr.rel (%p271) target = $region44
      $region43: #{transformer_encoder_2d.10} parent=39 // pred_region
        %s274 = smul.u32 2, %s15
        %p275 = scmp.lt.s32.totalorder %s274, 3
        %s276 = scalar_select %p275, %s274, 3
        %s277 = smul.addr %s276, 4
        %s278 = scalar_lea.vmem %s3, %s277
      $region44: #{transformer_encoder_2d.10} parent=39 // pred_fallthru
        _
    $region40: #{transformer_encoder_2d.10} parent=5 // pred_fallthru
      _
  $region6: #{transformer_encoder_2d.10} parent=0 // loop_footer
    %s13 = sadd.s32 1, %s9
  $region7: #{transformer_encoder_2d.10} parent=0 // loop_footer_branch
    %8 = sbr.rel target = $region3
  $region8: #{transformer_encoder_2d.10} parent=0 // loop_exit
    _

// kernel: transformer_encoder_2d.9
$region0: #{transformer_encoder_2d.9}
  #allocation0 [shape = 'u32[]', space=smem, size = 0x4, offset = 0x4, fixed_abs, tag = 'smem constant byte address 0x4 - core index']
  #allocation1 [shape = 'u32[144,128]{1,0:T(1,128)}', space=vmem, size = 0x12000, scoped, tag = 'internal scratch']
  %s0 = inlined_call_operand.vmem [shape: f32[4,16], index: 0, kind: input, shape index: {}]
  %s1 = inlined_call_operand.vmem [shape: bf16[16,16], index: 1, kind: input, shape index: {}]
  %s2 = inlined_call_operand.vmem [shape: f32[1,16], index: 2, kind: input, shape index: {}]
  %s3 = inlined_call_operand.vmem [shape: f32[4,16], index: 3, kind: output, shape index: {}]
  %s4 = sld [smem:[#allocation0]]
  $region22: #{transformer_encoder_2d.9} parent=0
    _
  %s6 = ssub.s32 1, %s4
  %s7 = scalar_select 0, %s6, %s4
  // Predicated region
  $region2: #{transformer_encoder_2d.9} parent=0 // pred_check
    _
  $region3: #{transformer_encoder_2d.9} parent=0 // pred_check_branch
    %9 = sbr.rel (0) target = $region5
  $region4: #{transformer_encoder_2d.9} parent=0 // pred_region
    _
  $region5: #{transformer_encoder_2d.9} parent=0 // pred_fallthru
    _
  // Predicated region
  $region6: #{transformer_encoder_2d.9} parent=0 // pred_check
    _
  $region7: #{transformer_encoder_2d.9} parent=0 // pred_check_branch
    %11 = sbr.rel (0) target = $region9
  $region8: #{transformer_encoder_2d.9} parent=0 // pred_region
    _
  $region9: #{transformer_encoder_2d.9} parent=0 // pred_fallthru
    _
  // Predicated region
  $region10: #{transformer_encoder_2d.9} parent=0 // pred_check
    _
  $region11: #{transformer_encoder_2d.9} parent=0 // pred_check_branch
    %13 = sbr.rel (0) target = $region13
  $region12: #{transformer_encoder_2d.9} parent=0 // pred_region
    _
  $region13: #{transformer_encoder_2d.9} parent=0 // pred_fallthru
    _
  %v15 = vld [vmem:[%s0] sm:$0xf]
  %v16 = vpack.c.bf16 %v15, %v15
  %v17 = vld [vmem:[%s1] sm:$0xf]
  %v18 = vld [vmem:[%s1 + $0x4] sm:$0xf]
  %v19 = vld [vmem:[%s2] sm:$0x1]
  %v21 = vlaneseq
  %v22 = vshrl.u32 %v21, 7
  %v23 = vsub.s32 0, %v22
  %v24 = vrot.slane %v19, %v23
  %v28 = vunpack.c.l.b16 %v17
  %v29 = vunpack.c.l.b16 %v18
  %v30 = vpack.c.b16 %v29, %v28
  %vm32 = vcmask 130048
  %v34 = vsel %vm32, %v16, 0
  %36 = vmatprep.subr.bf16.mxu0 0
  %37 = vmatpush1.bf16.msra.mxu0 0
  %38 = vmatprep.subr.bf16.mxu0 0
  %39 = vmatpush1.bf16.msra.mxu0 0
  %40 = vmatprep.subr.bf16.mxu0 0
  %41 = vmatpush1.bf16.msra.mxu0 0
  %42 = vmatprep.subr.bf16.mxu0 0
  %43 = vmatpush1.bf16.msra.mxu0 0
  %44 = vmatprep.subr.bf16.mxu0 0
  %45 = vmatpush1.bf16.msra.mxu0 0
  %46 = vmatprep.subr.bf16.mxu0 0
  %47 = vmatpush1.bf16.msra.mxu0 0
  %48 = vmatprep.subr.bf16.mxu0 0
  %49 = vmatpush1.bf16.msra.mxu0 0
  %50 = vmatprep.subr.bf16.mxu0 0
  %51 = vmatpush1.bf16.msra.mxu0 %v30
  %52 = vmatprep.subr.bf16.mxu0 0
  %53 = vmatpush2.bf16.msra.mxu0 0
  %54 = vmatprep.subr.bf16.mxu0 0
  %55 = vmatpush2.bf16.msra.mxu0 0
  %56 = vmatprep.subr.bf16.mxu0 0
  %57 = vmatpush2.bf16.msra.mxu0 0
  %58 = vmatprep.subr.bf16.mxu0 0
  %59 = vmatpush2.bf16.msra.mxu0 0
  %60 = vmatprep.subr.bf16.mxu0 0
  %61 = vmatpush2.bf16.msra.mxu0 0
  %62 = vmatprep.subr.bf16.mxu0 0
  %63 = vmatpush2.bf16.msra.mxu0 0
  %64 = vmatprep.subr.bf16.mxu0 0
  %65 = vmatpush2.bf16.msra.mxu0 0
  %66 = vmatprep.subr.bf16.mxu0 0
  %67 = vmatpush2.bf16.msra.mxu0 0
  %68 = vmatprep.mubr.bf16.mxu0 0
  %69 = vmatmul.mubr.bf16.gmra.mxu0 %v34
  %v70 = vpop.f32.mrf.mxu0
  %v71 = vadd.f32 %v24, %v70
  %v72 = vpop.f32.mrf.mxu0
  %v73 = vpop.f32.mrf.mxu0
  %v74 = vpop.f32.mrf.mxu0
  %75 = vdwg.mxu0
  %vm76 = vcmask 125952
  %77 = vst.msk [vmem:[%s3] sm:$0xf] %vm76, %v71
  // Predicated region
  $region14: #{transformer_encoder_2d.9} parent=0 // pred_check
    _
  $region15: #{transformer_encoder_2d.9} parent=0 // pred_check_branch
    %79 = sbr.rel (0) target = $region17
  $region16: #{transformer_encoder_2d.9} parent=0 // pred_region
    _
  $region17: #{transformer_encoder_2d.9} parent=0 // pred_fallthru
    _
  // Predicated region
  $region18: #{transformer_encoder_2d.9} parent=0 // pred_check
    _
  $region19: #{transformer_encoder_2d.9} parent=0 // pred_check_branch
    %81 = sbr.rel (0) target = $region21
  $region20: #{transformer_encoder_2d.9} parent=0 // pred_region
    _
  $region21: #{transformer_encoder_2d.9} parent=0 // pred_fallthru
    _

// kernel: transformer_encoder_2d.12
$region0: #{transformer_encoder_2d.12}
  #allocation0 [shape = 'u32[]', space=smem, size = 0x4, offset = 0x4, fixed_abs, tag = 'smem constant byte address 0x4 - core index']
  #allocation1 [shape = 'u32[144,128]{1,0:T(1,128)}', space=vmem, size = 0x12000, scoped, tag = 'internal scratch']
  %s0 = inlined_call_operand.vmem [shape: f32[32,32], index: 0, kind: input, shape index: {}]
  %s1 = inlined_call_operand.vmem [shape: bf16[32,64], index: 1, kind: input, shape index: {}]
  %s2 = inlined_call_operand.vmem [shape: f32[1,64], index: 2, kind: input, shape index: {}]
  %s3 = inlined_call_operand.vmem [shape: bf16[64,32], index: 3, kind: input, shape index: {}]
  %s4 = inlined_call_operand.vmem [shape: f32[1,32], index: 4, kind: input, shape index: {}]
  %s5 = inlined_call_operand.vmem [shape: f32[1,32], index: 5, kind: input, shape index: {}]
  %s6 = inlined_call_operand.vmem [shape: f32[1,32], index: 6, kind: input, shape index: {}]
  %s7 = inlined_call_operand.vmem [shape: f32[32,32], index: 7, kind: output, shape index: {}]
  %s8 = sld [smem:[#allocation0]]
  $region61: #{transformer_encoder_2d.12} parent=0
    _
  %s10 = ssub.s32 1, %s8
  %s11 = scalar_select 0, %s10, %s8
  loop: start=0, step=1, limit=4
  $region2: #{transformer_encoder_2d.12} parent=0 // loop_pre_header
    _
  $region3: #{transformer_encoder_2d.12} parent=0 // loop_header
    %s13 = sphi 0, %s17
    %p14 = scmp.ge.s32.totalorder %s13, 4
    %s23 = sphi 0, %s25
    %s26 = sphi 0, %s23
    %s27 = sphi 0, %s26
    %s43 = sphi 0, %s27
    %s47 = sphi 0, %s47
    %s49 = sphi 0, %s47
    %s50 = sphi 0, %s49
    %s64 = sphi 0, %s50
    %s68 = sphi 0, %s68
    %s70 = sphi 0, %s68
    %s71 = sphi 0, %s70
    %s85 = sphi 0, %s71
    %s89 = sphi 0, %s89
    %s91 = sphi 0, %s89
    %s92 = sphi 0, %s91
    %s106 = sphi 0, %s92
    %s110 = sphi 0, %s110
    %s112 = sphi 0, %s110
    %s113 = sphi 0, %s112
    %s127 = sphi 0, %s113
    %s131 = sphi 0, %s131
    %s133 = sphi 0, %s131
    %s134 = sphi 0, %s133
    %s148 = sphi 0, %s134
    %s152 = sphi 0, %s152
    %s154 = sphi 0, %s152
    %s155 = sphi 0, %s154
    %s169 = sphi 0, %s155
    %s175 = sphi 0, %s177
    %s178 = sphi 0, %s175
    %s179 = sphi 0, %s178
    %s195 = sphi 0, %s179
  $region4: #{transformer_encoder_2d.12} parent=0 // loop_header_branch
    %16 = sbr.rel (%p14) target = $region8
  $region5: #{transformer_encoder_2d.12} parent=0 // loop_body
    %s18 = ssub.s32 %s13, 1
    %s19 = ssub.s32 %s13, 2
    %s20 = sadd.s32 %s13, 1
    %s21 = ssub.s32 %s13, %s20
    %p22 = scmp.eq.s32.totalorder %s21, 0
    %s24 = sadd.s32 %s23, 1
    %s25 = scalar_select %p22, %s23, %s24
    %p28 = pneg %p22
    %p29 = scmp.eq.s32.totalorder %s13, 1
    %p30 = por %p28, %p29
    %p31 = scmp.ne.s32.totalorder %s23, %s26
    %p32 = scmp.eq.s32.totalorder %s13, 0
    %p33 = por %p31, %p32
    %p34 = scmp.ne.s32.totalorder %s23, %s26
    %p35 = scmp.eq.s32.totalorder %s18, 1
    %p36 = por %p34, %p35
    %p37 = scmp.ne.s32.totalorder %s26, %s27
    %p38 = scmp.eq.s32.totalorder %s18, 0
    %p39 = por %p37, %p38
    %p40 = scmp.ne.s32.totalorder %s26, %s27
    %p41 = scmp.eq.s32.totalorder %s19, 1
    %p42 = por %p40, %p41
    %p44 = scmp.ne.s32.totalorder %s27, %s43
    %p45 = scmp.eq.s32.totalorder %s19, 0
    %p46 = por %p44, %p45
    %s48 = sadd.s32 %s47, 1
    %p51 = scmp.eq.s32.totalorder %s13, 1
    %p52 = scmp.ne.s32.totalorder %s47, %s49
    %p53 = scmp.eq.s32.totalorder %s13, 0
    %p54 = por %p52, %p53
    %p55 = scmp.ne.s32.totalorder %s47, %s49
    %p56 = scmp.eq.s32.totalorder %s18, 1
    %p57 = por %p55, %p56
    %p58 = scmp.ne.s32.totalorder %s49, %s50
    %p59 = scmp.eq.s32.totalorder %s18, 0
    %p60 = por %p58, %p59
    %p61 = scmp.ne.s32.totalorder %s49, %s50
    %p62 = scmp.eq.s32.totalorder %s19, 1
    %p63 = por %p61, %p62
    %p65 = scmp.ne.s32.totalorder %s50, %s64
    %p66 = scmp.eq.s32.totalorder %s19, 0
    %p67 = por %p65, %p66
    %s69 = sadd.s32 %s68, 1
    %p72 = scmp.eq.s32.totalorder %s13, 1
    %p73 = scmp.ne.s32.totalorder %s68, %s70
    %p74 = scmp.eq.s32.totalorder %s13, 0
    %p75 = por %p73, %p74
    %p76 = scmp.ne.s32.totalorder %s68, %s70
    %p77 = scmp.eq.s32.totalorder %s18, 1
    %p78 = por %p76, %p77
    %p79 = scmp.ne.s32.totalorder %s70, %s71
    %p80 = scmp.eq.s32.totalorder %s18, 0
    %p81 = por %p79, %p80
    %p82 = scmp.ne.s32.totalorder %s70, %s71
    %p83 = scmp.eq.s32.totalorder %s19, 1
    %p84 = por %p82, %p83
    %p86 = scmp.ne.s32.totalorder %s71, %s85
    %p87 = scmp.eq.s32.totalorder %s19, 0
    %p88 = por %p86, %p87
    %s90 = sadd.s32 %s89, 1
    %p93 = scmp.eq.s32.totalorder %s13, 1
    %p94 = scmp.ne.s32.totalorder %s89, %s91
    %p95 = scmp.eq.s32.totalorder %s13, 0
    %p96 = por %p94, %p95
    %p97 = scmp.ne.s32.totalorder %s89, %s91
    %p98 = scmp.eq.s32.totalorder %s18, 1
    %p99 = por %p97, %p98
    %p100 = scmp.ne.s32.totalorder %s91, %s92
    %p101 = scmp.eq.s32.totalorder %s18, 0
    %p102 = por %p100, %p101
    %p103 = scmp.ne.s32.totalorder %s91, %s92
    %p104 = scmp.eq.s32.totalorder %s19, 1
    %p105 = por %p103, %p104
    %p107 = scmp.ne.s32.totalorder %s92, %s106
    %p108 = scmp.eq.s32.totalorder %s19, 0
    %p109 = por %p107, %p108
    %s111 = sadd.s32 %s110, 1
    %p114 = scmp.eq.s32.totalorder %s13, 1
    %p115 = scmp.ne.s32.totalorder %s110, %s112
    %p116 = scmp.eq.s32.totalorder %s13, 0
    %p117 = por %p115, %p116
    %p118 = scmp.ne.s32.totalorder %s110, %s112
    %p119 = scmp.eq.s32.totalorder %s18, 1
    %p120 = por %p118, %p119
    %p121 = scmp.ne.s32.totalorder %s112, %s113
    %p122 = scmp.eq.s32.totalorder %s18, 0
    %p123 = por %p121, %p122
    %p124 = scmp.ne.s32.totalorder %s112, %s113
    %p125 = scmp.eq.s32.totalorder %s19, 1
    %p126 = por %p124, %p125
    %p128 = scmp.ne.s32.totalorder %s113, %s127
    %p129 = scmp.eq.s32.totalorder %s19, 0
    %p130 = por %p128, %p129
    %s132 = sadd.s32 %s131, 1
    %p135 = scmp.eq.s32.totalorder %s13, 1
    %p136 = scmp.ne.s32.totalorder %s131, %s133
    %p137 = scmp.eq.s32.totalorder %s13, 0
    %p138 = por %p136, %p137
    %p139 = scmp.ne.s32.totalorder %s131, %s133
    %p140 = scmp.eq.s32.totalorder %s18, 1
    %p141 = por %p139, %p140
    %p142 = scmp.ne.s32.totalorder %s133, %s134
    %p143 = scmp.eq.s32.totalorder %s18, 0
    %p144 = por %p142, %p143
    %p145 = scmp.ne.s32.totalorder %s133, %s134
    %p146 = scmp.eq.s32.totalorder %s19, 1
    %p147 = por %p145, %p146
    %p149 = scmp.ne.s32.totalorder %s134, %s148
    %p150 = scmp.eq.s32.totalorder %s19, 0
    %p151 = por %p149, %p150
    %s153 = sadd.s32 %s152, 1
    %p156 = scmp.eq.s32.totalorder %s13, 1
    %p157 = scmp.ne.s32.totalorder %s152, %s154
    %p158 = scmp.eq.s32.totalorder %s13, 0
    %p159 = por %p157, %p158
    %p160 = scmp.ne.s32.totalorder %s152, %s154
    %p161 = scmp.eq.s32.totalorder %s18, 1
    %p162 = por %p160, %p161
    %p163 = scmp.ne.s32.totalorder %s154, %s155
    %p164 = scmp.eq.s32.totalorder %s18, 0
    %p165 = por %p163, %p164
    %p166 = scmp.ne.s32.totalorder %s154, %s155
    %p167 = scmp.eq.s32.totalorder %s19, 1
    %p168 = por %p166, %p167
    %p170 = scmp.ne.s32.totalorder %s155, %s169
    %p171 = scmp.eq.s32.totalorder %s19, 0
    %p172 = por %p170, %p171
    %s173 = ssub.s32 %s13, %s20
    %p174 = scmp.eq.s32.totalorder %s173, 0
    %s176 = sadd.s32 %s175, 1
    %s177 = scalar_select %p174, %s175, %s176
    %p180 = pneg %p174
    %p181 = scmp.eq.s32.totalorder %s13, 1
    %p182 = por %p180, %p181
    %p183 = scmp.ne.s32.totalorder %s175, %s178
    %p184 = scmp.eq.s32.totalorder %s13, 0
    %p185 = por %p183, %p184
    %p186 = scmp.ne.s32.totalorder %s175, %s178
    %p187 = scmp.eq.s32.totalorder %s18, 1
    %p188 = por %p186, %p187
    %p189 = scmp.ne.s32.totalorder %s178, %s179
    %p190 = scmp.eq.s32.totalorder %s18, 0
    %p191 = por %p189, %p190
    %p192 = scmp.ne.s32.totalorder %s178, %s179
    %p193 = scmp.eq.s32.totalorder %s19, 1
    %p194 = por %p192, %p193
    %p196 = scmp.ne.s32.totalorder %s179, %s195
    %p197 = scmp.eq.s32.totalorder %s19, 0
    %p198 = por %p196, %p197
    %p199 = scmp.le.s32.totalorder 1, %s13
    %p200 = scmp.lt.s32.totalorder %s13, 3
    %p201 = pnand %p199, %p200
    %p202 = pneg %p201
    // Predicated region
    $region9: #{transformer_encoder_2d.12} parent=5 // pred_check
      _
    $region10: #{transformer_encoder_2d.12} parent=5 // pred_check_branch
      %204 = sbr.rel (%p201) target = $region12
    $region11: #{transformer_encoder_2d.12} parent=5 // pred_region
      %s205 = ssub.s32 %s13, 1
      // Predicated region
      $region13: #{transformer_encoder_2d.12} parent=11 // pred_check
        %p206 = pneg %p60
      $region14: #{transformer_encoder_2d.12} parent=11 // pred_check_branch
        %208 = sbr.rel (%p206) target = $region16
      $region15: #{transformer_encoder_2d.12} parent=11 // pred_region
        _
      $region16: #{transformer_encoder_2d.12} parent=11 // pred_fallthru
        _
      // Predicated region
      $region17: #{transformer_encoder_2d.12} parent=11 // pred_check
        %p209 = pneg %p81
      $region18: #{transformer_encoder_2d.12} parent=11 // pred_check_branch
        %211 = sbr.rel (%p209) target = $region20
      $region19: #{transformer_encoder_2d.12} parent=11 // pred_region
        _
      $region20: #{transformer_encoder_2d.12} parent=11 // pred_fallthru
        _
      // Predicated region
      $region21: #{transformer_encoder_2d.12} parent=11 // pred_check
        %p212 = pneg %p102
      $region22: #{transformer_encoder_2d.12} parent=11 // pred_check_branch
        %214 = sbr.rel (%p212) target = $region24
      $region23: #{transformer_encoder_2d.12} parent=11 // pred_region
        _
      $region24: #{transformer_encoder_2d.12} parent=11 // pred_fallthru
        _
      // Predicated region
      $region25: #{transformer_encoder_2d.12} parent=11 // pred_check
        %p215 = pneg %p123
      $region26: #{transformer_encoder_2d.12} parent=11 // pred_check_branch
        %217 = sbr.rel (%p215) target = $region28
      $region27: #{transformer_encoder_2d.12} parent=11 // pred_region
        _
      $region28: #{transformer_encoder_2d.12} parent=11 // pred_fallthru
        _
      // Predicated region
      $region29: #{transformer_encoder_2d.12} parent=11 // pred_check
        %p218 = pneg %p144
      $region30: #{transformer_encoder_2d.12} parent=11 // pred_check_branch
        %220 = sbr.rel (%p218) target = $region32
      $region31: #{transformer_encoder_2d.12} parent=11 // pred_region
        _
      $region32: #{transformer_encoder_2d.12} parent=11 // pred_fallthru
        _
      // Predicated region
      $region33: #{transformer_encoder_2d.12} parent=11 // pred_check
        %p221 = pneg %p165
      $region34: #{transformer_encoder_2d.12} parent=11 // pred_check_branch
        %223 = sbr.rel (%p221) target = $region36
      $region35: #{transformer_encoder_2d.12} parent=11 // pred_region
        _
      $region36: #{transformer_encoder_2d.12} parent=11 // pred_fallthru
        _
    $region12: #{transformer_encoder_2d.12} parent=5 // pred_fallthru
      _
    %p224 = scmp.lt.s32.totalorder %s13, 2
    // Predicated region
    $region37: #{transformer_encoder_2d.12} parent=5 // pred_check
      %p225 = pneg %p224
    $region38: #{transformer_encoder_2d.12} parent=5 // pred_check_branch
      %227 = sbr.rel (%p225) target = $region40
    $region39: #{transformer_encoder_2d.12} parent=5 // pred_region
      // Predicated region
      $region41: #{transformer_encoder_2d.12} parent=39 // pred_check
        %p228 = pneg %p33
      $region42: #{transformer_encoder_2d.12} parent=39 // pred_check_branch
        %230 = sbr.rel (%p228) target = $region44
      $region43: #{transformer_encoder_2d.12} parent=39 // pred_region
        %s231 = smul.u32 2, %s13
        %p232 = scmp.lt.s32.totalorder %s231, 3
        %s233 = scalar_select %p232, %s231, 3
        %s234 = smul.addr %s233, 8
        %s235 = scalar_lea.vmem %s0, %s234
        %s236 = smul.u32 2, %s13
      $region44: #{transformer_encoder_2d.12} parent=39 // pred_fallthru
        _
    $region40: #{transformer_encoder_2d.12} parent=5 // pred_fallthru
      _
    %p237 = scmp.le.s32.totalorder 1, %s13
    %p238 = scmp.lt.s32.totalorder %s13, 3
    %p239 = pnand %p237, %p238
    %p240 = pneg %p239
    // Predicated region
    $region45: #{transformer_encoder_2d.12} parent=5 // pred_check
      _
    $region46: #{transformer_encoder_2d.12} parent=5 // pred_check_branch
      %242 = sbr.rel (%p239) target = $region48
    $region47: #{transformer_encoder_2d.12} parent=5 // pred_region
      %s243 = ssub.s32 %s13, 1
      %s244 = smul.u32 2, %s18
      %p245 = scmp.lt.s32.totalorder %s244, 3
      %s246 = scalar_select %p245, %s244, 3
      %s247 = smul.addr %s246, 8
      %s248 = scalar_lea.vmem %s0, %s247
      %p249 = pneg %p39
      %p250 = pneg %p36
      %p251 = pneg %p60
      %p252 = pneg %p57
      %p253 = pneg %p81
      %p254 = pneg %p78
      %p255 = pneg %p102
      %p256 = pneg %p99
      %p257 = pneg %p123
      %p258 = pneg %p120
      %p259 = pneg %p144
      %p260 = pneg %p141
      %p261 = pneg %p165
      %p262 = pneg %p162
      %p263 = pneg %p191
      %p264 = pneg %p188
      %s265 = smul.u32 2, %s18
      %p266 = scmp.lt.s32.totalorder %s265, 3
      %s267 = scalar_select %p266, %s265, 3
      %s268 = smul.addr %s267, 8
      %s269 = scalar_lea.vmem %s7, %s268
      %s270 = smul.u32 2, %s18
      %p271 = scmp.lt.s32.totalorder %s270, 3
      %s272 = scalar_select %p271, %s270, 3
      %s273 = smul.addr %s272, 8
      %s274 = scalar_lea.vmem %s0, %s273
      %s275 = smul.u32 2, %s18
      %s276 = smul.u32 2, %s18
      %p277 = scmp.lt.s32.totalorder %s276, 3
      %s278 = scalar_select %p277, %s276, 3
      %s279 = smul.addr %s278, 8
      %s280 = scalar_lea.vmem %s7, %s279
      %s281 = smul.u32 2, %s18
      %v283 = vld [vmem:[%s274] sm:$0xff]
      %v284 = vld [vmem:[%s274 + $0x8] sm:$0xff]
      %v285 = vpack.c.bf16 %v284, %v283
      %v286 = vld [vmem:[%s1] sm:$0xf]
      %v287 = vld [vmem:[%s1 + $0x4] sm:$0xf]
      %v288 = vld [vmem:[%s1 + $0x8] sm:$0xf]
      %v289 = vld [vmem:[%s1 + $0xc] sm:$0xf]
      %v290 = vld [vmem:[%s2] sm:$0x1]
      %v292 = vlaneseq
      %v293 = vshrl.u32 %v292, 7
      %v294 = vsub.s32 0, %v293
      %v295 = vrot.slane %v290, %v294
      %v301 = vunpack.c.l.b16 %v286
      %v302 = vunpack.c.l.b16 %v287
      %v303 = vunpack.c.l.b16 %v288
      %v304 = vunpack.c.l.b16 %v289
      %v305 = vpack.c.b16 %v302, %v301
      %v306 = vpack.c.b16 %v304, %v303
      %vm309 = vcmask 261120
      %v311 = vsel %vm309, %v285, 0
      %313 = vmatprep.subr.bf16.mxu0 0
      %314 = vmatpush1.bf16.msra.mxu0 0
      %315 = vmatprep.subr.bf16.mxu0 0
      %316 = vmatpush1.bf16.msra.mxu0 0
      %317 = vmatprep.subr.bf16.mxu0 0
      %318 = vmatpush1.bf16.msra.mxu0 0
      %319 = vmatprep.subr.bf16.mxu0 0
      %320 = vmatpush1.bf16.msra.mxu0 0
      %321 = vmatprep.subr.bf16.mxu0 0
      %322 = vmatpush1.bf16.msra.mxu0 0
      %323 = vmatprep.subr.bf16.mxu0 0
      %324 = vmatpush1.bf16.msra.mxu0 0
      %325 = vmatprep.subr.bf16.mxu0 0
      %326 = vmatpush1.bf16.msra.mxu0 %v306
      %327 = vmatprep.subr.bf16.mxu0 0
      %328 = vmatpush1.bf16.msra.mxu0 %v305
      %329 = vmatprep.subr.bf16.mxu0 0
      %330 = vmatpush2.bf16.msra.mxu0 0
      %331 = vmatprep.subr.bf16.mxu0 0
      %332 = vmatpush2.bf16.msra.mxu0 0
      %333 = vmatprep.subr.bf16.mxu0 0
      %334 = vmatpush2.bf16.msra.mxu0 0
      %335 = vmatprep.subr.bf16.mxu0 0
      %336 = vmatpush2.bf16.msra.mxu0 0
      %337 = vmatprep.subr.bf16.mxu0 0
      %338 = vmatpush2.bf16.msra.mxu0 0
      %339 = vmatprep.subr.bf16.mxu0 0
      %340 = vmatpush2.bf16.msra.mxu0 0
      %341 = vmatprep.subr.bf16.mxu0 0
      %342 = vmatpush2.bf16.msra.mxu0 0
      %343 = vmatprep.subr.bf16.mxu0 0
      %344 = vmatpush2.bf16.msra.mxu0 0
      %345 = vmatprep.mubr.bf16.mxu0 0
      %346 = vmatmul.mubr.bf16.gmra.mxu0 %v311
      %v347 = vpop.f32.mrf.mxu0
      %v348 = vadd.f32 %v295, %v347
      %v349 = vpop.f32.mrf.mxu0
      %v350 = vpop.f32.mrf.mxu0
      %v351 = vadd.f32 %v295, %v350
      %v352 = vpop.f32.mrf.mxu0
      %353 = vdwg.mxu0
      %v354 = vmax.f32 %v348, 0.0
      %v355 = vmax.f32 %v351, 0.0
      %v356 = vpack.c.bf16 %v355, %v354
      %v357 = vld [vmem:[%s3] sm:$0xf]
      %v358 = vld [vmem:[%s3 + $0x4] sm:$0xf]
      %v359 = vld [vmem:[%s3 + $0x8] sm:$0xf]
      %v360 = vld [vmem:[%s3 + $0xc] sm:$0xf]
      %v361 = vld [vmem:[%s3 + $0x10] sm:$0xf]
      %v362 = vld [vmem:[%s3 + $0x14] sm:$0xf]
      %v363 = vld [vmem:[%s3 + $0x18] sm:$0xf]
      %v364 = vld [vmem:[%s3 + $0x1c] sm:$0xf]
      %v365 = vld [vmem:[%s4] sm:$0x1]
      %v367 = vlaneseq
      %v368 = vshrl.u32 %v367, 7
      %v369 = vsub.s32 0, %v368
      %v370 = vrot.slane %v365, %v369
      %v380 = vunpack.c.l.b16 %v357
      %v381 = vunpack.c.l.b16 %v358
      %v382 = vunpack.c.l.b16 %v359
      %v383 = vunpack.c.l.b16 %v360
      %v384 = vunpack.c.l.b16 %v361
      %v385 = vunpack.c.l.b16 %v362
      %v386 = vunpack.c.l.b16 %v363
      %v387 = vunpack.c.l.b16 %v364
      %v388 = vpack.c.b16 %v381, %v380
      %v389 = vpack.c.b16 %v383, %v382
      %v390 = vpack.c.b16 %v385, %v384
      %v391 = vpack.c.b16 %v387, %v386
      %vm396 = vcmask 523264
      %v398 = vsel %vm396, %v356, 0
      %400 = vmatprep.subr.bf16.mxu0 0
      %401 = vmatpush1.bf16.msra.mxu0 0
      %402 = vmatprep.subr.bf16.mxu0 0
      %403 = vmatpush1.bf16.msra.mxu0 0
      %404 = vmatprep.subr.bf16.mxu0 0
      %405 = vmatpush1.bf16.msra.mxu0 0
      %406 = vmatprep.subr.bf16.mxu0 0
      %407 = vmatpush1.bf16.msra.mxu0 0
      %408 = vmatprep.subr.bf16.mxu0 0
      %409 = vmatpush1.bf16.msra.mxu0 %v391
      %410 = vmatprep.subr.bf16.mxu0 0
      %411 = vmatpush1.bf16.msra.mxu0 %v390
      %412 = vmatprep.subr.bf16.mxu0 0
      %413 = vmatpush1.bf16.msra.mxu0 %v389
      %414 = vmatprep.subr.bf16.mxu0 0
      %415 = vmatpush1.bf16.msra.mxu0 %v388
      %416 = vmatprep.subr.bf16.mxu0 0
      %417 = vmatpush2.bf16.msra.mxu0 0
      %418 = vmatprep.subr.bf16.mxu0 0
      %419 = vmatpush2.bf16.msra.mxu0 0
      %420 = vmatprep.subr.bf16.mxu0 0
      %421 = vmatpush2.bf16.msra.mxu0 0
      %422 = vmatprep.subr.bf16.mxu0 0
      %423 = vmatpush2.bf16.msra.mxu0 0
      %424 = vmatprep.subr.bf16.mxu0 0
      %425 = vmatpush2.bf16.msra.mxu0 0
      %426 = vmatprep.subr.bf16.mxu0 0
      %427 = vmatpush2.bf16.msra.mxu0 0
      %428 = vmatprep.subr.bf16.mxu0 0
      %429 = vmatpush2.bf16.msra.mxu0 0
      %430 = vmatprep.subr.bf16.mxu0 0
      %431 = vmatpush2.bf16.msra.mxu0 0
      %432 = vmatprep.mubr.bf16.mxu0 0
      %433 = vmatmul.mubr.bf16.gmra.mxu0 %v398
      %v434 = vpop.f32.mrf.mxu0
      %v435 = vadd.f32 %v370, %v434
      %v436 = vpop.f32.mrf.mxu0
      %v437 = vpop.f32.mrf.mxu0
      %v438 = vadd.f32 %v370, %v437
      %v439 = vpop.f32.mrf.mxu0
      %440 = vdwg.mxu0
      %v441 = vmax.f32 %v435, 0.0
      %v442 = vmax.f32 %v438, 0.0
      %v443 = vadd.f32 %v441, %v283
      %v444 = vadd.f32 %v442, %v284
      %v445 = vsel %vm309, %v443, 0.0
      %446 = vadd.xlane.f32.xlu0 %v445
      %v447 = vpop.xlane.xlu0 %446
      %v448 = vsel %vm309, %v444, 0.0
      %449 = vadd.xlane.f32.xlu0 %v448
      %v450 = vpop.xlane.xlu0 %449
      %v451 = vrcp.pop 32.0
      %v452 = vmul.f32 %v447, %v451
      %v453 = vmul.f32 %v450, %v451
      %v454 = vsub.f32 %v443, %v452
      %v455 = vsub.f32 %v444, %v453
      %v456 = vmul.f32 %v454, %v454
      %v457 = vmul.f32 %v455, %v455
      %v458 = vsel %vm309, %v456, 0.0
      %459 = vadd.xlane.f32.xlu0 %v458
      %v460 = vpop.xlane.xlu0 %459
      %v461 = vsel %vm309, %v457, 0.0
      %462 = vadd.xlane.f32.xlu0 %v461
      %v463 = vpop.xlane.xlu0 %462
      %v464 = vmul.f32 %v460, %v451
      %v465 = vmul.f32 %v463, %v451
      %v466 = vadd.f32 %v464, 1e-05
      %v467 = vadd.f32 %v465, 1e-05
      %v468 = vrsqrt.pop %v466
      %v469 = vrsqrt.pop %v467
      %v470 = vmul.f32 %v454, %v468
      %v471 = vmul.f32 %v455, %v469
      %v472 = vld [vmem:[%s5] sm:$0x1]
      %v474 = vlaneseq
      %v475 = vshrl.u32 %v474, 7
      %v476 = vsub.s32 0, %v475
      %v477 = vrot.slane %v472, %v476
      %v479 = vmul.f32 %v470, %v477
      %v480 = vmul.f32 %v471, %v477
      %v481 = vld [vmem:[%s6] sm:$0x1]
      %v483 = vlaneseq
      %v484 = vshrl.u32 %v483, 7
      %v485 = vsub.s32 0, %v484
      %v486 = vrot.slane %v481, %v485
      %v488 = vadd.f32 %v479, %v486
      %v489 = vadd.f32 %v480, %v486
      %490 = vst.msk [vmem:[%s280] sm:$0xff] %vm309, %v488
      %491 = vst.msk [vmem:[%s280 + $0x8] sm:$0xff] %vm309, %v489
      %s492 = smul.u32 2, %s18
      %p493 = scmp.lt.s32.totalorder %s492, 3
      %s494 = scalar_select %p493, %s492, 3
      %s495 = smul.addr %s494, 8
      %s496 = scalar_lea.vmem %s7, %s495
      // Predicated region
      $region49: #{transformer_encoder_2d.12} parent=47 // pred_check
        %p497 = pneg %p188
      $region50: #{transformer_encoder_2d.12} parent=47 // pred_check_branch
        %499 = sbr.rel (%p497) target = $region52
      $region51: #{transformer_encoder_2d.12} parent=47 // pred_region
        %s500 = smul.u32 2, %s18
      $region52: #{transformer_encoder_2d.12} parent=47 // pred_fallthru
        _
    $region48: #{transformer_encoder_2d.12} parent=5 // pred_fallthru
      _
    %p501 = scmp.le.s32.totalorder 2, %s13
    // Predicated region
    $region53: #{transformer_encoder_2d.12} parent=5 // pred_check
      %p502 = pneg %p501
    $region54: #{transformer_encoder_2d.12} parent=5 // pred_check_branch
      %504 = sbr.rel (%p502) target = $region56
    $region55: #{transformer_encoder_2d.12} parent=5 // pred_region
      %s505 = ssub.s32 %s13, 2
      // Predicated region
      $region57: #{transformer_encoder_2d.12} parent=55 // pred_check
        %p506 = pneg %p194
      $region58: #{transformer_encoder_2d.12} parent=55 // pred_check_branch
        %508 = sbr.rel (%p506) target = $region60
      $region59: #{transformer_encoder_2d.12} parent=55 // pred_region
        %s509 = smul.u32 2, %s19
        %p510 = scmp.lt.s32.totalorder %s509, 3
        %s511 = scalar_select %p510, %s509, 3
        %s512 = smul.addr %s511, 8
        %s513 = scalar_lea.vmem %s7, %s512
      $region60: #{transformer_encoder_2d.12} parent=55 // pred_fallthru
        _
    $region56: #{transformer_encoder_2d.12} parent=5 // pred_fallthru
      _
  $region6: #{transformer_encoder_2d.12} parent=0 // loop_footer
    %s17 = sadd.s32 1, %s13
  $region7: #{transformer_encoder_2d.12} parent=0 // loop_footer_branch
    %12 = sbr.rel target = $region3
  $region8: #{transformer_encoder_2d.12} parent=0 // loop_exit
    _

// kernel: transformer_encoder_2d.11
$region0: #{transformer_encoder_2d.11}
  #allocation0 [shape = 'u32[]', space=smem, size = 0x4, offset = 0x4, fixed_abs, tag = 'smem constant byte address 0x4 - core index']
  #allocation1 [shape = 'u32[144,128]{1,0:T(1,128)}', space=vmem, size = 0x12000, scoped, tag = 'internal scratch']
  %s0 = inlined_call_operand.vmem [shape: bf16[2,16,96], index: 0, kind: input, shape index: {}]
  %s1 = inlined_call_operand.vmem [shape: f32[2,16,32], index: 1, kind: input, shape index: {}]
  %s2 = inlined_call_operand.vmem [shape: bf16[32,32], index: 2, kind: input, shape index: {}]
  %s3 = inlined_call_operand.vmem [shape: f32[1,32], index: 3, kind: input, shape index: {}]
  %s4 = inlined_call_operand.vmem [shape: f32[1,32], index: 4, kind: input, shape index: {}]
  %s5 = inlined_call_operand.vmem [shape: f32[1,32], index: 5, kind: input, shape index: {}]
  %s6 = inlined_call_operand.vmem [shape: f32[2,16,32], index: 6, kind: output, shape index: {}]
  %s7 = sld [smem:[#allocation0]]
  $region57: #{transformer_encoder_2d.11} parent=0
    _
  %s9 = ssub.s32 1, %s7
  %s10 = scalar_select 0, %s9, %s7
  loop: start=0, step=1, limit=4
  $region2: #{transformer_encoder_2d.11} parent=0 // loop_pre_header
    _
  $region3: #{transformer_encoder_2d.11} parent=0 // loop_header
    %s12 = sphi 0, %s16
    %p13 = scmp.ge.s32.totalorder %s12, 4
    %s22 = sphi 0, %s24
    %s25 = sphi 0, %s22
    %s26 = sphi 0, %s25
    %s42 = sphi 0, %s26
    %s48 = sphi 0, %s50
    %s51 = sphi 0, %s48
    %s52 = sphi 0, %s51
    %s68 = sphi 0, %s52
    %s72 = sphi 0, %s72
    %s74 = sphi 0, %s72
    %s75 = sphi 0, %s74
    %s89 = sphi 0, %s75
    %s93 = sphi 0, %s93
    %s95 = sphi 0, %s93
    %s96 = sphi 0, %s95
    %s110 = sphi 0, %s96
    %s114 = sphi 0, %s114
    %s116 = sphi 0, %s114
    %s117 = sphi 0, %s116
    %s131 = sphi 0, %s117
    %s135 = sphi 0, %s135
    %s137 = sphi 0, %s135
    %s138 = sphi 0, %s137
    %s152 = sphi 0, %s138
    %s158 = sphi 0, %s160
    %s161 = sphi 0, %s158
    %s162 = sphi 0, %s161
    %s178 = sphi 0, %s162
  $region4: #{transformer_encoder_2d.11} parent=0 // loop_header_branch
    %15 = sbr.rel (%p13) target = $region8
  $region5: #{transformer_encoder_2d.11} parent=0 // loop_body
    %s17 = ssub.s32 %s12, 1
    %s18 = ssub.s32 %s12, 2
    %s19 = sadd.s32 %s12, 1
    %s20 = ssub.s32 %s12, %s19
    %p21 = scmp.eq.s32.totalorder %s20, 0
    %s23 = sadd.s32 %s22, 1
    %s24 = scalar_select %p21, %s22, %s23
    %p27 = pneg %p21
    %p28 = scmp.eq.s32.totalorder %s12, 1
    %p29 = por %p27, %p28
    %p30 = scmp.ne.s32.totalorder %s22, %s25
    %p31 = scmp.eq.s32.totalorder %s12, 0
    %p32 = por %p30, %p31
    %p33 = scmp.ne.s32.totalorder %s22, %s25
    %p34 = scmp.eq.s32.totalorder %s17, 1
    %p35 = por %p33, %p34
    %p36 = scmp.ne.s32.totalorder %s25, %s26
    %p37 = scmp.eq.s32.totalorder %s17, 0
    %p38 = por %p36, %p37
    %p39 = scmp.ne.s32.totalorder %s25, %s26
    %p40 = scmp.eq.s32.totalorder %s18, 1
    %p41 = por %p39, %p40
    %p43 = scmp.ne.s32.totalorder %s26, %s42
    %p44 = scmp.eq.s32.totalorder %s18, 0
    %p45 = por %p43, %p44
    %s46 = ssub.s32 %s12, %s19
    %p47 = scmp.eq.s32.totalorder %s46, 0
    %s49 = sadd.s32 %s48, 1
    %s50 = scalar_select %p47, %s48, %s49
    %p53 = pneg %p47
    %p54 = scmp.eq.s32.totalorder %s12, 1
    %p55 = por %p53, %p54
    %p56 = scmp.ne.s32.totalorder %s48, %s51
    %p57 = scmp.eq.s32.totalorder %s12, 0
    %p58 = por %p56, %p57
    %p59 = scmp.ne.s32.totalorder %s48, %s51
    %p60 = scmp.eq.s32.totalorder %s17, 1
    %p61 = por %p59, %p60
    %p62 = scmp.ne.s32.totalorder %s51, %s52
    %p63 = scmp.eq.s32.totalorder %s17, 0
    %p64 = por %p62, %p63
    %p65 = scmp.ne.s32.totalorder %s51, %s52
    %p66 = scmp.eq.s32.totalorder %s18, 1
    %p67 = por %p65, %p66
    %p69 = scmp.ne.s32.totalorder %s52, %s68
    %p70 = scmp.eq.s32.totalorder %s18, 0
    %p71 = por %p69, %p70
    %s73 = sadd.s32 %s72, 1
    %p76 = scmp.eq.s32.totalorder %s12, 1
    %p77 = scmp.ne.s32.totalorder %s72, %s74
    %p78 = scmp.eq.s32.totalorder %s12, 0
    %p79 = por %p77, %p78
    %p80 = scmp.ne.s32.totalorder %s72, %s74
    %p81 = scmp.eq.s32.totalorder %s17, 1
    %p82 = por %p80, %p81
    %p83 = scmp.ne.s32.totalorder %s74, %s75
    %p84 = scmp.eq.s32.totalorder %s17, 0
    %p85 = por %p83, %p84
    %p86 = scmp.ne.s32.totalorder %s74, %s75
    %p87 = scmp.eq.s32.totalorder %s18, 1
    %p88 = por %p86, %p87
    %p90 = scmp.ne.s32.totalorder %s75, %s89
    %p91 = scmp.eq.s32.totalorder %s18, 0
    %p92 = por %p90, %p91
    %s94 = sadd.s32 %s93, 1
    %p97 = scmp.eq.s32.totalorder %s12, 1
    %p98 = scmp.ne.s32.totalorder %s93, %s95
    %p99 = scmp.eq.s32.totalorder %s12, 0
    %p100 = por %p98, %p99
    %p101 = scmp.ne.s32.totalorder %s93, %s95
    %p102 = scmp.eq.s32.totalorder %s17, 1
    %p103 = por %p101, %p102
    %p104 = scmp.ne.s32.totalorder %s95, %s96
    %p105 = scmp.eq.s32.totalorder %s17, 0
    %p106 = por %p104, %p105
    %p107 = scmp.ne.s32.totalorder %s95, %s96
    %p108 = scmp.eq.s32.totalorder %s18, 1
    %p109 = por %p107, %p108
    %p111 = scmp.ne.s32.totalorder %s96, %s110
    %p112 = scmp.eq.s32.totalorder %s18, 0
    %p113 = por %p111, %p112
    %s115 = sadd.s32 %s114, 1
    %p118 = scmp.eq.s32.totalorder %s12, 1
    %p119 = scmp.ne.s32.totalorder %s114, %s116
    %p120 = scmp.eq.s32.totalorder %s12, 0
    %p121 = por %p119, %p120
    %p122 = scmp.ne.s32.totalorder %s114, %s116
    %p123 = scmp.eq.s32.totalorder %s17, 1
    %p124 = por %p122, %p123
    %p125 = scmp.ne.s32.totalorder %s116, %s117
    %p126 = scmp.eq.s32.totalorder %s17, 0
    %p127 = por %p125, %p126
    %p128 = scmp.ne.s32.totalorder %s116, %s117
    %p129 = scmp.eq.s32.totalorder %s18, 1
    %p130 = por %p128, %p129
    %p132 = scmp.ne.s32.totalorder %s117, %s131
    %p133 = scmp.eq.s32.totalorder %s18, 0
    %p134 = por %p132, %p133
    %s136 = sadd.s32 %s135, 1
    %p139 = scmp.eq.s32.totalorder %s12, 1
    %p140 = scmp.ne.s32.totalorder %s135, %s137
    %p141 = scmp.eq.s32.totalorder %s12, 0
    %p142 = por %p140, %p141
    %p143 = scmp.ne.s32.totalorder %s135, %s137
    %p144 = scmp.eq.s32.totalorder %s17, 1
    %p145 = por %p143, %p144
    %p146 = scmp.ne.s32.totalorder %s137, %s138
    %p147 = scmp.eq.s32.totalorder %s17, 0
    %p148 = por %p146, %p147
    %p149 = scmp.ne.s32.totalorder %s137, %s138
    %p150 = scmp.eq.s32.totalorder %s18, 1
    %p151 = por %p149, %p150
    %p153 = scmp.ne.s32.totalorder %s138, %s152
    %p154 = scmp.eq.s32.totalorder %s18, 0
    %p155 = por %p153, %p154
    %s156 = ssub.s32 %s12, %s19
    %p157 = scmp.eq.s32.totalorder %s156, 0
    %s159 = sadd.s32 %s158, 1
    %s160 = scalar_select %p157, %s158, %s159
    %p163 = pneg %p157
    %p164 = scmp.eq.s32.totalorder %s12, 1
    %p165 = por %p163, %p164
    %p166 = scmp.ne.s32.totalorder %s158, %s161
    %p167 = scmp.eq.s32.totalorder %s12, 0
    %p168 = por %p166, %p167
    %p169 = scmp.ne.s32.totalorder %s158, %s161
    %p170 = scmp.eq.s32.totalorder %s17, 1
    %p171 = por %p169, %p170
    %p172 = scmp.ne.s32.totalorder %s161, %s162
    %p173 = scmp.eq.s32.totalorder %s17, 0
    %p174 = por %p172, %p173
    %p175 = scmp.ne.s32.totalorder %s161, %s162
    %p176 = scmp.eq.s32.totalorder %s18, 1
    %p177 = por %p175, %p176
    %p179 = scmp.ne.s32.totalorder %s162, %s178
    %p180 = scmp.eq.s32.totalorder %s18, 0
    %p181 = por %p179, %p180
    %p182 = scmp.le.s32.totalorder 1, %s12
    %p183 = scmp.lt.s32.totalorder %s12, 3
    %p184 = pnand %p182, %p183
    %p185 = pneg %p184
    // Predicated region
    $region9: #{transformer_encoder_2d.11} parent=5 // pred_check
      _
    $region10: #{transformer_encoder_2d.11} parent=5 // pred_check_branch
      %187 = sbr.rel (%p184) target = $region12
    $region11: #{transformer_encoder_2d.11} parent=5 // pred_region
      %s188 = ssub.s32 %s12, 1
      // Predicated region
      $region13: #{transformer_encoder_2d.11} parent=11 // pred_check
        %p189 = pneg %p85
      $region14: #{transformer_encoder_2d.11} parent=11 // pred_check_branch
        %191 = sbr.rel (%p189) target = $region16
      $region15: #{transformer_encoder_2d.11} parent=11 // pred_region
        _
      $region16: #{transformer_encoder_2d.11} parent=11 // pred_fallthru
        _
      // Predicated region
      $region17: #{transformer_encoder_2d.11} parent=11 // pred_check
        %p192 = pneg %p106
      $region18: #{transformer_encoder_2d.11} parent=11 // pred_check_branch
        %194 = sbr.rel (%p192) target = $region20
      $region19: #{transformer_encoder_2d.11} parent=11 // pred_region
        _
      $region20: #{transformer_encoder_2d.11} parent=11 // pred_fallthru
        _
      // Predicated region
      $region21: #{transformer_encoder_2d.11} parent=11 // pred_check
        %p195 = pneg %p127
      $region22: #{transformer_encoder_2d.11} parent=11 // pred_check_branch
        %197 = sbr.rel (%p195) target = $region24
      $region23: #{transformer_encoder_2d.11} parent=11 // pred_region
        _
      $region24: #{transformer_encoder_2d.11} parent=11 // pred_fallthru
        _
      // Predicated region
      $region25: #{transformer_encoder_2d.11} parent=11 // pred_check
        %p198 = pneg %p148
      $region26: #{transformer_encoder_2d.11} parent=11 // pred_check_branch
        %200 = sbr.rel (%p198) target = $region28
      $region27: #{transformer_encoder_2d.11} parent=11 // pred_region
        _
      $region28: #{transformer_encoder_2d.11} parent=11 // pred_fallthru
        _
    $region12: #{transformer_encoder_2d.11} parent=5 // pred_fallthru
      _
    %p201 = scmp.lt.s32.totalorder %s12, 2
    // Predicated region
    $region29: #{transformer_encoder_2d.11} parent=5 // pred_check
      %p202 = pneg %p201
    $region30: #{transformer_encoder_2d.11} parent=5 // pred_check_branch
      %204 = sbr.rel (%p202) target = $region32
    $region31: #{transformer_encoder_2d.11} parent=5 // pred_region
      // Predicated region
      $region33: #{transformer_encoder_2d.11} parent=31 // pred_check
        %p205 = pneg %p32
      $region34: #{transformer_encoder_2d.11} parent=31 // pred_check_branch
        %207 = sbr.rel (%p205) target = $region36
      $region35: #{transformer_encoder_2d.11} parent=31 // pred_region
        %p208 = scmp.lt.s32.totalorder %s12, 1
        %s209 = scalar_select %p208, %s12, 1
        %s210 = smul.addr %s209, 2
        %s211 = smul.addr %s210, 4
        %s212 = scalar_lea.vmem %s0, %s211
      $region36: #{transformer_encoder_2d.11} parent=31 // pred_fallthru
        _
      // Predicated region
      $region37: #{transformer_encoder_2d.11} parent=31 // pred_check
        %p213 = pneg %p58
      $region38: #{transformer_encoder_2d.11} parent=31 // pred_check_branch
        %215 = sbr.rel (%p213) target = $region40
      $region39: #{transformer_encoder_2d.11} parent=31 // pred_region
        %p216 = scmp.lt.s32.totalorder %s12, 1
        %s217 = scalar_select %p216, %s12, 1
        %s218 = smul.addr %s217, 2
        %s219 = smul.addr %s218, 8
        %s220 = scalar_lea.vmem %s1, %s219
      $region40: #{transformer_encoder_2d.11} parent=31 // pred_fallthru
        _
    $region32: #{transformer_encoder_2d.11} parent=5 // pred_fallthru
      _
    %p221 = scmp.le.s32.totalorder 1, %s12
    %p222 = scmp.lt.s32.totalorder %s12, 3
    %p223 = pnand %p221, %p222
    %p224 = pneg %p223
    // Predicated region
    $region41: #{transformer_encoder_2d.11} parent=5 // pred_check
      _
    $region42: #{transformer_encoder_2d.11} parent=5 // pred_check_branch
      %226 = sbr.rel (%p223) target = $region44
    $region43: #{transformer_encoder_2d.11} parent=5 // pred_region
      %s227 = ssub.s32 %s12, 1
      %p228 = scmp.lt.s32.totalorder %s17, 1
      %s229 = scalar_select %p228, %s17, 1
      %s230 = smul.addr %s229, 2
      %s231 = smul.addr %s230, 4
      %s232 = scalar_lea.vmem %s0, %s231
      %p233 = pneg %p38
      %p234 = pneg %p35
      %p235 = scmp.lt.s32.totalorder %s17, 1
      %s236 = scalar_select %p235, %s17, 1
      %s237 = smul.addr %s236, 2
      %s238 = smul.addr %s237, 8
      %s239 = scalar_lea.vmem %s1, %s238
      %p240 = pneg %p64
      %p241 = pneg %p61
      %p242 = pneg %p85
      %p243 = pneg %p82
      %p244 = pneg %p106
      %p245 = pneg %p103
      %p246 = pneg %p127
      %p247 = pneg %p124
      %p248 = pneg %p148
      %p249 = pneg %p145
      %p250 = pneg %p174
      %p251 = pneg %p171
      %p252 = scmp.lt.s32.totalorder %s17, 1
      %s253 = scalar_select %p252, %s17, 1
      %s254 = smul.addr %s253, 2
      %s255 = smul.addr %s254, 8
      %s256 = scalar_lea.vmem %s6, %s255
      %p257 = scmp.lt.s32.totalorder %s17, 1
      %s258 = scalar_select %p257, %s17, 1
      %s259 = smul.addr %s258, 2
      %s260 = smul.addr %s259, 4
      %s261 = scalar_lea.vmem %s0, %s260
      %p262 = scmp.lt.s32.totalorder %s17, 1
      %s263 = scalar_select %p262, %s17, 1
      %s264 = smul.addr %s263, 2
      %s265 = smul.addr %s264, 8
      %s266 = scalar_lea.vmem %s1, %s265
      %p267 = scmp.lt.s32.totalorder %s17, 1
      %s268 = scalar_select %p267, %s17, 1
      %s269 = smul.addr %s268, 2
      %s270 = smul.addr %s269, 8
      %s271 = scalar_lea.vmem %s6, %s270
      %v273 = vld [vmem:[%s261] sm:$0xf]
      %v274 = vld [vmem:[%s261 + $0x4] sm:$0xf]
      %v275 = vunpack.c.l.bf16 %v273
      %v276 = vunpack.c.l.bf16 %v274
      %v277 = vmul.f32 %v275, 0.17677669
      %v278 = vmul.f32 %v276, 0.17677669
      %v279 = vpack.c.bf16 %v278, %v277
      %v282 = vunpack.c.l.b16 %v273
      %v283 = vunpack.c.l.b16 %v274
      %v284 = vpack.c.b16 %v283, %v282
      %285 = vrot.lane.b32.xlu0 %v284, 96
      %v286 = vpop.permute.xlu0 %285
      %vm287 = vcmask 64512
      %v289 = vsel %vm287, %v279, 0
      %v292 = vsel %vm287, %v286, 0
      %294 = vmatprep.subr.bf16.mxu0 0
      %295 = vmatpush1.bf16.xpose.msra.mxu0 0
      %296 = vmatprep.subr.bf16.mxu0 0
      %297 = vmatpush1.bf16.xpose.msra.mxu0 0
      %298 = vmatprep.subr.bf16.mxu0 0
      %299 = vmatpush1.bf16.xpose.msra.mxu0 0
      %300 = vmatprep.subr.bf16.mxu0 0
      %301 = vmatpush1.bf16.xpose.msra.mxu0 0
      %302 = vmatprep.subr.bf16.mxu0 0
      %303 = vmatpush1.bf16.xpose.msra.mxu0 0
      %304 = vmatprep.subr.bf16.mxu0 0
      %305 = vmatpush1.bf16.xpose.msra.mxu0 0
      %306 = vmatprep.subr.bf16.mxu0 0
      %307 = vmatpush1.bf16.xpose.msra.mxu0 0
      %308 = vmatprep.subr.bf16.mxu0 0
      %309 = vmatpush1.bf16.xpose.msra.mxu0 %v292
      %310 = vmatprep.subr.bf16.mxu0 0
      %311 = vmatpush2.bf16.xpose.msra.mxu0 0
      %312 = vmatprep.subr.bf16.mxu0 0
      %313 = vmatpush2.bf16.xpose.msra.mxu0 0
      %314 = vmatprep.subr.bf16.mxu0 0
      %315 = vmatpush2.bf16.xpose.msra.mxu0 0
      %316 = vmatprep.subr.bf16.mxu0 0
      %317 = vmatpush2.bf16.xpose.msra.mxu0 0
      %318 = vmatprep.subr.bf16.mxu0 0
      %319 = vmatpush2.bf16.xpose.msra.mxu0 0
      %320 = vmatprep.subr.bf16.mxu0 0
      %321 = vmatpush2.bf16.xpose.msra.mxu0 0
      %322 = vmatprep.subr.bf16.mxu0 0
      %323 = vmatpush2.bf16.xpose.msra.mxu0 0
      %324 = vmatprep.subr.bf16.mxu0 0
      %325 = vmatpush2.bf16.xpose.msra.mxu0 0
      %326 = vmatprep.mubr.bf16.mxu0 0
      %327 = vmatmul.mubr.bf16.gmra.mxu0 %v289
      %v328 = vpop.f32.mrf.mxu0
      %v329 = vadd.f32 0.0, %v328
      %v330 = vpop.f32.mrf.mxu0
      %v331 = vpop.f32.mrf.mxu0
      %v332 = vadd.f32 0.0, %v331
      %v333 = vpop.f32.mrf.mxu0
      %334 = vdwg.mxu0
      %vm335 = vcmask 130048
      %v336 = vsel %vm335, %v329, -inf
      %337 = vmax.xlane.f32.xlu0 %v336
      %v338 = vpop.xlane.xlu0 %337
      %v339 = vsel %vm335, %v332, -inf
      %340 = vmax.xlane.f32.xlu0 %v339
      %v341 = vpop.xlane.xlu0 %340
      %v342 = vsub.f32 %v329, %v338
      %v343 = vsub.f32 %v332, %v341
      %v344 = vmul.f32 %v342, 1.442695
      %v345 = vpow.pop %v344
      %v346 = vmul.f32 %v343, 1.442695
      %v347 = vpow.pop %v346
      %v348 = vsel %vm335, %v345, 0.0
      %349 = vadd.xlane.f32.xlu0 %v348
      %v350 = vpop.xlane.xlu0 %349
      %v351 = vsel %vm335, %v347, 0.0
      %352 = vadd.xlane.f32.xlu0 %v351
      %v353 = vpop.xlane.xlu0 %352
      %v354 = vrcp.pop %v350
      %v355 = vrcp.pop %v353
      %v356 = vmul.f32 %v345, %v354
      %v357 = vmul.f32 %v347, %v355
      %v358 = vpack.c.bf16 %v357, %v356
      %359 = vrot.lane.b32.xlu0 %v284, 64
      %v360 = vpop.permute.xlu0 %359
      %v363 = vsel %vm335, %v358, 0
      %365 = vmatprep.subr.bf16.mxu0 0
      %366 = vmatpush1.bf16.msra.mxu0 0
      %367 = vmatprep.subr.bf16.mxu0 0
      %368 = vmatpush1.bf16.msra.mxu0 0
      %369 = vmatprep.subr.bf16.mxu0 0
      %370 = vmatpush1.bf16.msra.mxu0 0
      %371 = vmatprep.subr.bf16.mxu0 0
      %372 = vmatpush1.bf16.msra.mxu0 0
      %373 = vmatprep.subr.bf16.mxu0 0
      %374 = vmatpush1.bf16.msra.mxu0 0
      %375 = vmatprep.subr.bf16.mxu0 0
      %376 = vmatpush1.bf16.msra.mxu0 0
      %377 = vmatprep.subr.bf16.mxu0 0
      %378 = vmatpush1.bf16.msra.mxu0 0
      %379 = vmatprep.subr.bf16.mxu0 0
      %380 = vmatpush1.bf16.msra.mxu0 %v360
      %381 = vmatprep.subr.bf16.mxu0 0
      %382 = vmatpush2.bf16.msra.mxu0 0
      %383 = vmatprep.subr.bf16.mxu0 0
      %384 = vmatpush2.bf16.msra.mxu0 0
      %385 = vmatprep.subr.bf16.mxu0 0
      %386 = vmatpush2.bf16.msra.mxu0 0
      %387 = vmatprep.subr.bf16.mxu0 0
      %388 = vmatpush2.bf16.msra.mxu0 0
      %389 = vmatprep.subr.bf16.mxu0 0
      %390 = vmatpush2.bf16.msra.mxu0 0
      %391 = vmatprep.subr.bf16.mxu0 0
      %392 = vmatpush2.bf16.msra.mxu0 0
      %393 = vmatprep.subr.bf16.mxu0 0
      %394 = vmatpush2.bf16.msra.mxu0 0
      %395 = vmatprep.subr.bf16.mxu0 0
      %396 = vmatpush2.bf16.msra.mxu0 0
      %397 = vmatprep.mubr.bf16.mxu0 0
      %398 = vmatmul.mubr.bf16.gmra.mxu0 %v363
      %v399 = vpop.f32.mrf.mxu0
      %v400 = vadd.f32 0.0, %v399
      %v401 = vpop.f32.mrf.mxu0
      %v402 = vpop.f32.mrf.mxu0
      %v403 = vadd.f32 0.0, %v402
      %v404 = vpop.f32.mrf.mxu0
      %405 = vdwg.mxu0
      %407 = vrot.lane.b32.xlu0 %v279, 120
      %v408 = vpop.permute.xlu0 %407
      %409 = vrot.lane.b32.xlu0 %v284, 88
      %v410 = vpop.permute.xlu0 %409
      %v412 = vsel %vm287, %v408, 0
      %v415 = vsel %vm287, %v410, 0
      %417 = vmatprep.subr.bf16.mxu0 0
      %418 = vmatpush1.bf16.xpose.msra.mxu0 0
      %419 = vmatprep.subr.bf16.mxu0 0
      %420 = vmatpush1.bf16.xpose.msra.mxu0 0
      %421 = vmatprep.subr.bf16.mxu0 0
      %422 = vmatpush1.bf16.xpose.msra.mxu0 0
      %423 = vmatprep.subr.bf16.mxu0 0
      %424 = vmatpush1.bf16.xpose.msra.mxu0 0
      %425 = vmatprep.subr.bf16.mxu0 0
      %426 = vmatpush1.bf16.xpose.msra.mxu0 0
      %427 = vmatprep.subr.bf16.mxu0 0
      %428 = vmatpush1.bf16.xpose.msra.mxu0 0
      %429 = vmatprep.subr.bf16.mxu0 0
      %430 = vmatpush1.bf16.xpose.msra.mxu0 0
      %431 = vmatprep.subr.bf16.mxu0 0
      %432 = vmatpush1.bf16.xpose.msra.mxu0 %v415
      %433 = vmatprep.subr.bf16.mxu0 0
      %434 = vmatpush2.bf16.xpose.msra.mxu0 0
      %435 = vmatprep.subr.bf16.mxu0 0
      %436 = vmatpush2.bf16.xpose.msra.mxu0 0
      %437 = vmatprep.subr.bf16.mxu0 0
      %438 = vmatpush2.bf16.xpose.msra.mxu0 0
      %439 = vmatprep.subr.bf16.mxu0 0
      %440 = vmatpush2.bf16.xpose.msra.mxu0 0
      %441 = vmatprep.subr.bf16.mxu0 0
      %442 = vmatpush2.bf16.xpose.msra.mxu0 0
      %443 = vmatprep.subr.bf16.mxu0 0
      %444 = vmatpush2.bf16.xpose.msra.mxu0 0
      %445 = vmatprep.subr.bf16.mxu0 0
      %446 = vmatpush2.bf16.xpose.msra.mxu0 0
      %447 = vmatprep.subr.bf16.mxu0 0
      %448 = vmatpush2.bf16.xpose.msra.mxu0 0
      %449 = vmatprep.mubr.bf16.mxu0 0
      %450 = vmatmul.mubr.bf16.gmra.mxu0 %v412
      %v451 = vpop.f32.mrf.mxu0
      %v452 = vadd.f32 0.0, %v451
      %v453 = vpop.f32.mrf.mxu0
      %v454 = vpop.f32.mrf.mxu0
      %v455 = vadd.f32 0.0, %v454
      %v456 = vpop.f32.mrf.mxu0
      %457 = vdwg.mxu0
      %v458 = vsel %vm335, %v452, -inf
      %459 = vmax.xlane.f32.xlu0 %v458
      %v460 = vpop.xlane.xlu0 %459
      %v461 = vsel %vm335, %v455, -inf
      %462 = vmax.xlane.f32.xlu0 %v461
      %v463 = vpop.xlane.xlu0 %462
      %v464 = vsub.f32 %v452, %v460
      %v465 = vsub.f32 %v455, %v463
      %v466 = vmul.f32 %v464, 1.442695
      %v467 = vpow.pop %v466
      %v468 = vmul.f32 %v465, 1.442695
      %v469 = vpow.pop %v468
      %v470 = vsel %vm335, %v467, 0.0
      %471 = vadd.xlane.f32.xlu0 %v470
      %v472 = vpop.xlane.xlu0 %471
      %v473 = vsel %vm335, %v469, 0.0
      %474 = vadd.xlane.f32.xlu0 %v473
      %v475 = vpop.xlane.xlu0 %474
      %v476 = vrcp.pop %v472
      %v477 = vrcp.pop %v475
      %v478 = vmul.f32 %v467, %v476
      %v479 = vmul.f32 %v469, %v477
      %v480 = vpack.c.bf16 %v479, %v478
      %481 = vrot.lane.b32.xlu0 %v284, 56
      %v482 = vpop.permute.xlu0 %481
      %v485 = vsel %vm335, %v480, 0
      %487 = vmatprep.subr.bf16.mxu0 0
      %488 = vmatpush1.bf16.msra.mxu0 0
      %489 = vmatprep.subr.bf16.mxu0 0
      %490 = vmatpush1.bf16.msra.mxu0 0
      %491 = vmatprep.subr.bf16.mxu0 0
      %492 = vmatpush1.bf16.msra.mxu0 0
      %493 = vmatprep.subr.bf16.mxu0 0
      %494 = vmatpush1.bf16.msra.mxu0 0
      %495 = vmatprep.subr.bf16.mxu0 0
      %496 = vmatpush1.bf16.msra.mxu0 0
      %497 = vmatprep.subr.bf16.mxu0 0
      %498 = vmatpush1.bf16.msra.mxu0 0
      %499 = vmatprep.subr.bf16.mxu0 0
      %500 = vmatpush1.bf16.msra.mxu0 0
      %501 = vmatprep.subr.bf16.mxu0 0
      %502 = vmatpush1.bf16.msra.mxu0 %v482
      %503 = vmatprep.subr.bf16.mxu0 0
      %504 = vmatpush2.bf16.msra.mxu0 0
      %505 = vmatprep.subr.bf16.mxu0 0
      %506 = vmatpush2.bf16.msra.mxu0 0
      %507 = vmatprep.subr.bf16.mxu0 0
      %508 = vmatpush2.bf16.msra.mxu0 0
      %509 = vmatprep.subr.bf16.mxu0 0
      %510 = vmatpush2.bf16.msra.mxu0 0
      %511 = vmatprep.subr.bf16.mxu0 0
      %512 = vmatpush2.bf16.msra.mxu0 0
      %513 = vmatprep.subr.bf16.mxu0 0
      %514 = vmatpush2.bf16.msra.mxu0 0
      %515 = vmatprep.subr.bf16.mxu0 0
      %516 = vmatpush2.bf16.msra.mxu0 0
      %517 = vmatprep.subr.bf16.mxu0 0
      %518 = vmatpush2.bf16.msra.mxu0 0
      %519 = vmatprep.mubr.bf16.mxu0 0
      %520 = vmatmul.mubr.bf16.gmra.mxu0 %v485
      %v521 = vpop.f32.mrf.mxu0
      %v522 = vadd.f32 0.0, %v521
      %v523 = vpop.f32.mrf.mxu0
      %v524 = vpop.f32.mrf.mxu0
      %v525 = vadd.f32 0.0, %v524
      %v526 = vpop.f32.mrf.mxu0
      %527 = vdwg.mxu0
      %528 = vrot.lane.b32.xlu0 %v279, 112
      %v529 = vpop.permute.xlu0 %528
      %530 = vrot.lane.b32.xlu0 %v284, 80
      %v531 = vpop.permute.xlu0 %530
      %v533 = vsel %vm287, %v529, 0
      %v536 = vsel %vm287, %v531, 0
      %538 = vmatprep.subr.bf16.mxu0 0
      %539 = vmatpush1.bf16.xpose.msra.mxu0 0
      %540 = vmatprep.subr.bf16.mxu0 0
      %541 = vmatpush1.bf16.xpose.msra.mxu0 0
      %542 = vmatprep.subr.bf16.mxu0 0
      %543 = vmatpush1.bf16.xpose.msra.mxu0 0
      %544 = vmatprep.subr.bf16.mxu0 0
      %545 = vmatpush1.bf16.xpose.msra.mxu0 0
      %546 = vmatprep.subr.bf16.mxu0 0
      %547 = vmatpush1.bf16.xpose.msra.mxu0 0
      %548 = vmatprep.subr.bf16.mxu0 0
      %549 = vmatpush1.bf16.xpose.msra.mxu0 0
      %550 = vmatprep.subr.bf16.mxu0 0
      %551 = vmatpush1.bf16.xpose.msra.mxu0 0
      %552 = vmatprep.subr.bf16.mxu0 0
      %553 = vmatpush1.bf16.xpose.msra.mxu0 %v536
      %554 = vmatprep.subr.bf16.mxu0 0
      %555 = vmatpush2.bf16.xpose.msra.mxu0 0
      %556 = vmatprep.subr.bf16.mxu0 0
      %557 = vmatpush2.bf16.xpose.msra.mxu0 0
      %558 = vmatprep.subr.bf16.mxu0 0
      %559 = vmatpush2.bf16.xpose.msra.mxu0 0
      %560 = vmatprep.subr.bf16.mxu0 0
      %561 = vmatpush2.bf16.xpose.msra.mxu0 0
      %562 = vmatprep.subr.bf16.mxu0 0
      %563 = vmatpush2.bf16.xpose.msra.mxu0 0
      %564 = vmatprep.subr.bf16.mxu0 0
      %565 = vmatpush2.bf16.xpose.msra.mxu0 0
      %566 = vmatprep.subr.bf16.mxu0 0
      %567 = vmatpush2.bf16.xpose.msra.mxu0 0
      %568 = vmatprep.subr.bf16.mxu0 0
      %569 = vmatpush2.bf16.xpose.msra.mxu0 0
      %570 = vmatprep.mubr.bf16.mxu0 0
      %571 = vmatmul.mubr.bf16.gmra.mxu0 %v533
      %v572 = vpop.f32.mrf.mxu0
      %v573 = vadd.f32 0.0, %v572
      %v574 = vpop.f32.mrf.mxu0
      %v575 = vpop.f32.mrf.mxu0
      %v576 = vadd.f32 0.0, %v575
      %v577 = vpop.f32.mrf.mxu0
      %578 = vdwg.mxu0
      %v579 = vsel %vm335, %v573, -inf
      %580 = vmax.xlane.f32.xlu0 %v579
      %v581 = vpop.xlane.xlu0 %580
      %v582 = vsel %vm335, %v576, -inf
      %583 = vmax.xlane.f32.xlu0 %v582
      %v584 = vpop.xlane.xlu0 %583
      %v585 = vsub.f32 %v573, %v581
      %v586 = vsub.f32 %v576, %v584
      %v587 = vmul.f32 %v585, 1.442695
      %v588 = vpow.pop %v587
      %v589 = vmul.f32 %v586, 1.442695
      %v590 = vpow.pop %v589
      %v591 = vsel %vm335, %v588, 0.0
      %592 = vadd.xlane.f32.xlu0 %v591
      %v593 = vpop.xlane.xlu0 %592
      %v594 = vsel %vm335, %v590, 0.0
      %595 = vadd.xlane.f32.xlu0 %v594
      %v596 = vpop.xlane.xlu0 %595
      %v597 = vrcp.pop %v593
      %v598 = vrcp.pop %v596
      %v599 = vmul.f32 %v588, %v597
      %v600 = vmul.f32 %v590, %v598
      %v601 = vpack.c.bf16 %v600, %v599
      %602 = vrot.lane.b32.xlu0 %v284, 48
      %v603 = vpop.permute.xlu0 %602
      %v606 = vsel %vm335, %v601, 0
      %608 = vmatprep.subr.bf16.mxu0 0
      %609 = vmatpush1.bf16.msra.mxu0 0
      %610 = vmatprep.subr.bf16.mxu0 0
      %611 = vmatpush1.bf16.msra.mxu0 0
      %612 = vmatprep.subr.bf16.mxu0 0
      %613 = vmatpush1.bf16.msra.mxu0 0
      %614 = vmatprep.subr.bf16.mxu0 0
      %615 = vmatpush1.bf16.msra.mxu0 0
      %616 = vmatprep.subr.bf16.mxu0 0
      %617 = vmatpush1.bf16.msra.mxu0 0
      %618 = vmatprep.subr.bf16.mxu0 0
      %619 = vmatpush1.bf16.msra.mxu0 0
      %620 = vmatprep.subr.bf16.mxu0 0
      %621 = vmatpush1.bf16.msra.mxu0 0
      %622 = vmatprep.subr.bf16.mxu0 0
      %623 = vmatpush1.bf16.msra.mxu0 %v603
      %624 = vmatprep.subr.bf16.mxu0 0
      %625 = vmatpush2.bf16.msra.mxu0 0
      %626 = vmatprep.subr.bf16.mxu0 0
      %627 = vmatpush2.bf16.msra.mxu0 0
      %628 = vmatprep.subr.bf16.mxu0 0
      %629 = vmatpush2.bf16.msra.mxu0 0
      %630 = vmatprep.subr.bf16.mxu0 0
      %631 = vmatpush2.bf16.msra.mxu0 0
      %632 = vmatprep.subr.bf16.mxu0 0
      %633 = vmatpush2.bf16.msra.mxu0 0
      %634 = vmatprep.subr.bf16.mxu0 0
      %635 = vmatpush2.bf16.msra.mxu0 0
      %636 = vmatprep.subr.bf16.mxu0 0
      %637 = vmatpush2.bf16.msra.mxu0 0
      %638 = vmatprep.subr.bf16.mxu0 0
      %639 = vmatpush2.bf16.msra.mxu0 0
      %640 = vmatprep.mubr.bf16.mxu0 0
      %641 = vmatmul.mubr.bf16.gmra.mxu0 %v606
      %v642 = vpop.f32.mrf.mxu0
      %v643 = vadd.f32 0.0, %v642
      %v644 = vpop.f32.mrf.mxu0
      %v645 = vpop.f32.mrf.mxu0
      %v646 = vadd.f32 0.0, %v645
      %v647 = vpop.f32.mrf.mxu0
      %648 = vdwg.mxu0
      %649 = vrot.lane.b32.xlu0 %v279, 104
      %v650 = vpop.permute.xlu0 %649
      %651 = vrot.lane.b32.xlu0 %v284, 72
      %v652 = vpop.permute.xlu0 %651
      %v654 = vsel %vm287, %v650, 0
      %v657 = vsel %vm287, %v652, 0
      %659 = vmatprep.subr.bf16.mxu0 0
      %660 = vmatpush1.bf16.xpose.msra.mxu0 0
      %661 = vmatprep.subr.bf16.mxu0 0
      %662 = vmatpush1.bf16.xpose.msra.mxu0 0
      %663 = vmatprep.subr.bf16.mxu0 0
      %664 = vmatpush1.bf16.xpose.msra.mxu0 0
      %665 = vmatprep.subr.bf16.mxu0 0
      %666 = vmatpush1.bf16.xpose.msra.mxu0 0
      %667 = vmatprep.subr.bf16.mxu0 0
      %668 = vmatpush1.bf16.xpose.msra.mxu0 0
      %669 = vmatprep.subr.bf16.mxu0 0
      %670 = vmatpush1.bf16.xpose.msra.mxu0 0
      %671 = vmatprep.subr.bf16.mxu0 0
      %672 = vmatpush1.bf16.xpose.msra.mxu0 0
      %673 = vmatprep.subr.bf16.mxu0 0
      %674 = vmatpush1.bf16.xpose.msra.mxu0 %v657
      %675 = vmatprep.subr.bf16.mxu0 0
      %676 = vmatpush2.bf16.xpose.msra.mxu0 0
      %677 = vmatprep.subr.bf16.mxu0 0
      %678 = vmatpush2.bf16.xpose.msra.mxu0 0
      %679 = vmatprep.subr.bf16.mxu0 0
      %680 = vmatpush2.bf16.xpose.msra.mxu0 0
      %681 = vmatprep.subr.bf16.mxu0 0
      %682 = vmatpush2.bf16.xpose.msra.mxu0 0
      %683 = vmatprep.subr.bf16.mxu0 0
      %684 = vmatpush2.bf16.xpose.msra.mxu0 0
      %685 = vmatprep.subr.bf16.mxu0 0
      %686 = vmatpush2.bf16.xpose.msra.mxu0 0
      %687 = vmatprep.subr.bf16.mxu0 0
      %688 = vmatpush2.bf16.xpose.msra.mxu0 0
      %689 = vmatprep.subr.bf16.mxu0 0
      %690 = vmatpush2.bf16.xpose.msra.mxu0 0
      %691 = vmatprep.mubr.bf16.mxu0 0
      %692 = vmatmul.mubr.bf16.gmra.mxu0 %v654
      %v693 = vpop.f32.mrf.mxu0
      %v694 = vadd.f32 0.0, %v693
      %v695 = vpop.f32.mrf.mxu0
      %v696 = vpop.f32.mrf.mxu0
      %v697 = vadd.f32 0.0, %v696
      %v698 = vpop.f32.mrf.mxu0
      %699 = vdwg.mxu0
      %v700 = vsel %vm335, %v694, -inf
      %701 = vmax.xlane.f32.xlu0 %v700
      %v702 = vpop.xlane.xlu0 %701
      %v703 = vsel %vm335, %v697, -inf
      %704 = vmax.xlane.f32.xlu0 %v703
      %v705 = vpop.xlane.xlu0 %704
      %v706 = vsub.f32 %v694, %v702
      %v707 = vsub.f32 %v697, %v705
      %v708 = vmul.f32 %v706, 1.442695
      %v709 = vpow.pop %v708
      %v710 = vmul.f32 %v707, 1.442695
      %v711 = vpow.pop %v710
      %v712 = vsel %vm335, %v709, 0.0
      %713 = vadd.xlane.f32.xlu0 %v712
      %v714 = vpop.xlane.xlu0 %713
      %v715 = vsel %vm335, %v711, 0.0
      %716 = vadd.xlane.f32.xlu0 %v715
      %v717 = vpop.xlane.xlu0 %716
      %v718 = vrcp.pop %v714
      %v719 = vrcp.pop %v717
      %v720 = vmul.f32 %v709, %v718
      %v721 = vmul.f32 %v711, %v719
      %v722 = vpack.c.bf16 %v721, %v720
      %723 = vrot.lane.b32.xlu0 %v284, 40
      %v724 = vpop.permute.xlu0 %723
      %v727 = vsel %vm335, %v722, 0
      %729 = vmatprep.subr.bf16.mxu0 0
      %730 = vmatpush1.bf16.msra.mxu0 0
      %731 = vmatprep.subr.bf16.mxu0 0
      %732 = vmatpush1.bf16.msra.mxu0 0
      %733 = vmatprep.subr.bf16.mxu0 0
      %734 = vmatpush1.bf16.msra.mxu0 0
      %735 = vmatprep.subr.bf16.mxu0 0
      %736 = vmatpush1.bf16.msra.mxu0 0
      %737 = vmatprep.subr.bf16.mxu0 0
      %738 = vmatpush1.bf16.msra.mxu0 0
      %739 = vmatprep.subr.bf16.mxu0 0
      %740 = vmatpush1.bf16.msra.mxu0 0
      %741 = vmatprep.subr.bf16.mxu0 0
      %742 = vmatpush1.bf16.msra.mxu0 0
      %743 = vmatprep.subr.bf16.mxu0 0
      %744 = vmatpush1.bf16.msra.mxu0 %v724
      %745 = vmatprep.subr.bf16.mxu0 0
      %746 = vmatpush2.bf16.msra.mxu0 0
      %747 = vmatprep.subr.bf16.mxu0 0
      %748 = vmatpush2.bf16.msra.mxu0 0
      %749 = vmatprep.subr.bf16.mxu0 0
      %750 = vmatpush2.bf16.msra.mxu0 0
      %751 = vmatprep.subr.bf16.mxu0 0
      %752 = vmatpush2.bf16.msra.mxu0 0
      %753 = vmatprep.subr.bf16.mxu0 0
      %754 = vmatpush2.bf16.msra.mxu0 0
      %755 = vmatprep.subr.bf16.mxu0 0
      %756 = vmatpush2.bf16.msra.mxu0 0
      %757 = vmatprep.subr.bf16.mxu0 0
      %758 = vmatpush2.bf16.msra.mxu0 0
      %759 = vmatprep.subr.bf16.mxu0 0
      %760 = vmatpush2.bf16.msra.mxu0 0
      %761 = vmatprep.mubr.bf16.mxu0 0
      %762 = vmatmul.mubr.bf16.gmra.mxu0 %v727
      %v763 = vpop.f32.mrf.mxu0
      %v764 = vadd.f32 0.0, %v763
      %v765 = vpop.f32.mrf.mxu0
      %v766 = vpop.f32.mrf.mxu0
      %v767 = vadd.f32 0.0, %v766
      %v768 = vpop.f32.mrf.mxu0
      %769 = vdwg.mxu0
      %772 = vrot.lane.b32.xlu0 %v522, 8
      %v773 = vpop.permute.xlu0 %772
      %774 = vrot.lane.b32.xlu0 %v525, 8
      %v775 = vpop.permute.xlu0 %774
      %780 = vrot.lane.b32.xlu0 %v643, 16
      %v781 = vpop.permute.xlu0 %780
      %782 = vrot.lane.b32.xlu0 %v646, 16
      %v783 = vpop.permute.xlu0 %782
      %788 = vrot.lane.b32.xlu0 %v764, 24
      %v789 = vpop.permute.xlu0 %788
      %790 = vrot.lane.b32.xlu0 %v767, 24
      %v791 = vpop.permute.xlu0 %790
      %v794 = vsel %vm287, %v400, %v773
      %v795 = vsel %vm287, %v403, %v775
      %v796 = vsel %vm335, %v794, %v781
      %v797 = vsel %vm335, %v795, %v783
      %vm798 = vcmask 195584
      %v799 = vsel %vm798, %v796, %v789
      %v800 = vsel %vm798, %v797, %v791
      %v801 = vpack.c.bf16 %v800, %v799
      %v802 = vld [vmem:[%s2] sm:$0xf]
      %v803 = vld [vmem:[%s2 + $0x4] sm:$0xf]
      %v804 = vld [vmem:[%s2 + $0x8] sm:$0xf]
      %v805 = vld [vmem:[%s2 + $0xc] sm:$0xf]
      %v806 = vld [vmem:[%s3] sm:$0x1]
      %v808 = vlaneseq
      %v809 = vshrl.u32 %v808, 7
      %v810 = vsub.s32 0, %v809
      %v811 = vrot.slane %v806, %v810
      %v817 = vunpack.c.l.b16 %v802
      %v818 = vunpack.c.l.b16 %v803
      %v819 = vunpack.c.l.b16 %v804
      %v820 = vunpack.c.l.b16 %v805
      %v821 = vpack.c.b16 %v818, %v817
      %v822 = vpack.c.b16 %v820, %v819
      %vm825 = vcmask 261120
      %v827 = vsel %vm825, %v801, 0
      %829 = vmatprep.subr.bf16.mxu0 0
      %830 = vmatpush1.bf16.msra.mxu0 0
      %831 = vmatprep.subr.bf16.mxu0 0
      %832 = vmatpush1.bf16.msra.mxu0 0
      %833 = vmatprep.subr.bf16.mxu0 0
      %834 = vmatpush1.bf16.msra.mxu0 0
      %835 = vmatprep.subr.bf16.mxu0 0
      %836 = vmatpush1.bf16.msra.mxu0 0
      %837 = vmatprep.subr.bf16.mxu0 0
      %838 = vmatpush1.bf16.msra.mxu0 0
      %839 = vmatprep.subr.bf16.mxu0 0
      %840 = vmatpush1.bf16.msra.mxu0 0
      %841 = vmatprep.subr.bf16.mxu0 0
      %842 = vmatpush1.bf16.msra.mxu0 %v822
      %843 = vmatprep.subr.bf16.mxu0 0
      %844 = vmatpush1.bf16.msra.mxu0 %v821
      %845 = vmatprep.subr.bf16.mxu0 0
      %846 = vmatpush2.bf16.msra.mxu0 0
      %847 = vmatprep.subr.bf16.mxu0 0
      %848 = vmatpush2.bf16.msra.mxu0 0
      %849 = vmatprep.subr.bf16.mxu0 0
      %850 = vmatpush2.bf16.msra.mxu0 0
      %851 = vmatprep.subr.bf16.mxu0 0
      %852 = vmatpush2.bf16.msra.mxu0 0
      %853 = vmatprep.subr.bf16.mxu0 0
      %854 = vmatpush2.bf16.msra.mxu0 0
      %855 = vmatprep.subr.bf16.mxu0 0
      %856 = vmatpush2.bf16.msra.mxu0 0
      %857 = vmatprep.subr.bf16.mxu0 0
      %858 = vmatpush2.bf16.msra.mxu0 0
      %859 = vmatprep.subr.bf16.mxu0 0
      %860 = vmatpush2.bf16.msra.mxu0 0
      %861 = vmatprep.mubr.bf16.mxu0 0
      %862 = vmatmul.mubr.bf16.gmra.mxu0 %v827
      %v863 = vpop.f32.mrf.mxu0
      %v864 = vadd.f32 %v811, %v863
      %v865 = vpop.f32.mrf.mxu0
      %v866 = vpop.f32.mrf.mxu0
      %v867 = vadd.f32 %v811, %v866
      %v868 = vpop.f32.mrf.mxu0
      %869 = vdwg.mxu0
      %v870 = vld [vmem:[%s266] sm:$0xff]
      %v871 = vld [vmem:[%s266 + $0x8] sm:$0xff]
      %v872 = vadd.f32 %v864, %v870
      %v873 = vadd.f32 %v867, %v871
      %v874 = vsel %vm825, %v872, 0.0
      %875 = vadd.xlane.f32.xlu0 %v874
      %v876 = vpop.xlane.xlu0 %875
      %v877 = vsel %vm825, %v873, 0.0
      %878 = vadd.xlane.f32.xlu0 %v877
      %v879 = vpop.xlane.xlu0 %878
      %v880 = vrcp.pop 32.0
      %v881 = vmul.f32 %v876, %v880
      %v882 = vmul.f32 %v879, %v880
      %v883 = vsub.f32 %v872, %v881
      %v884 = vsub.f32 %v873, %v882
      %v885 = vmul.f32 %v883, %v883
      %v886 = vmul.f32 %v884, %v884
      %v887 = vsel %vm825, %v885, 0.0
      %888 = vadd.xlane.f32.xlu0 %v887
      %v889 = vpop.xlane.xlu0 %888
      %v890 = vsel %vm825, %v886, 0.0
      %891 = vadd.xlane.f32.xlu0 %v890
      %v892 = vpop.xlane.xlu0 %891
      %v893 = vmul.f32 %v889, %v880
      %v894 = vmul.f32 %v892, %v880
      %v895 = vadd.f32 %v893, 1e-05
      %v896 = vadd.f32 %v894, 1e-05
      %v897 = vrsqrt.pop %v895
      %v898 = vrsqrt.pop %v896
      %v899 = vmul.f32 %v883, %v897
      %v900 = vmul.f32 %v884, %v898
      %v901 = vld [vmem:[%s4] sm:$0x1]
      %v903 = vlaneseq
      %v904 = vshrl.u32 %v903, 7
      %v905 = vsub.s32 0, %v904
      %v906 = vrot.slane %v901, %v905
      %v908 = vmul.f32 %v899, %v906
      %v909 = vmul.f32 %v900, %v906
      %v910 = vld [vmem:[%s5] sm:$0x1]
      %v912 = vlaneseq
      %v913 = vshrl.u32 %v912, 7
      %v914 = vsub.s32 0, %v913
      %v915 = vrot.slane %v910, %v914
      %v917 = vadd.f32 %v908, %v915
      %v918 = vadd.f32 %v909, %v915
      %919 = vst.msk [vmem:[%s271] sm:$0xff] %vm825, %v917
      %920 = vst.msk [vmem:[%s271 + $0x8] sm:$0xff] %vm825, %v918
      %p921 = scmp.lt.s32.totalorder %s17, 1
      %s922 = scalar_select %p921, %s17, 1
      %s923 = smul.addr %s922, 2
      %s924 = smul.addr %s923, 8
      %s925 = scalar_lea.vmem %s6, %s924
      // Predicated region
      $region45: #{transformer_encoder_2d.11} parent=43 // pred_check
        %p926 = pneg %p171
      $region46: #{transformer_encoder_2d.11} parent=43 // pred_check_branch
        %928 = sbr.rel (%p926) target = $region48
      $region47: #{transformer_encoder_2d.11} parent=43 // pred_region
        _
      $region48: #{transformer_encoder_2d.11} parent=43 // pred_fallthru
        _
    $region44: #{transformer_encoder_2d.11} parent=5 // pred_fallthru
      _
    %p929 = scmp.le.s32.totalorder 2, %s12
    // Predicated region
    $region49: #{transformer_encoder_2d.11} parent=5 // pred_check
      %p930 = pneg %p929
    $region50: #{transformer_encoder_2d.11} parent=5 // pred_check_branch
      %932 = sbr.rel (%p930) target = $region52
    $region51: #{transformer_encoder_2d.11} parent=5 // pred_region
      %s933 = ssub.s32 %s12, 2
      // Predicated region
      $region53: #{transformer_encoder_2d.11} parent=51 // pred_check
        %p934 = pneg %p177
      $region54: #{transformer_encoder_2d.11} parent=51 // pred_check_branch
        %936 = sbr.rel (%p934) target = $region56
      $region55: #{transformer_encoder_2d.11} parent=51 // pred_region
        %p937 = scmp.lt.s32.totalorder %s18, 1
        %s938 = scalar_select %p937, %s18, 1
        %s939 = smul.addr %s938, 2
        %s940 = smul.addr %s939, 8
        %s941 = scalar_lea.vmem %s6, %s940
      $region56: #{transformer_encoder_2d.11} parent=51 // pred_fallthru
        _
    $region52: #{transformer_encoder_2d.11} parent=5 // pred_fallthru
      _
  $region6: #{transformer_encoder_2d.11} parent=0 // loop_footer
    %s16 = sadd.s32 1, %s12
  $region7: #{transformer_encoder_2d.11} parent=0 // loop_footer_branch
    %11 = sbr.rel target = $region3
  $region8: #{transformer_encoder_2d.11} parent=0 // loop_exit
    _

// kernel: transformer_encoder_2d.15
$region0: #{transformer_encoder_2d.15}
  #allocation0 [shape = 'u32[]', space=smem, size = 0x4, offset = 0x4, fixed_abs, tag = 'smem constant byte address 0x4 - core index']
  #allocation1 [shape = 'u32[144,128]{1,0:T(1,128)}', space=vmem, size = 0x12000, scoped, tag = 'internal scratch']
  %s0 = inlined_call_operand.vmem [shape: f32[32,32], index: 0, kind: input, shape index: {}]
  %s1 = inlined_call_operand.vmem [shape: bf16[32,64], index: 1, kind: input, shape index: {}]
  %s2 = inlined_call_operand.vmem [shape: f32[1,64], index: 2, kind: input, shape index: {}]
  %s3 = inlined_call_operand.vmem [shape: bf16[64,32], index: 3, kind: input, shape index: {}]
  %s4 = inlined_call_operand.vmem [shape: f32[1,32], index: 4, kind: input, shape index: {}]
  %s5 = inlined_call_operand.vmem [shape: f32[1,32], index: 5, kind: input, shape index: {}]
  %s6 = inlined_call_operand.vmem [shape: f32[1,32], index: 6, kind: input, shape index: {}]
  %s7 = inlined_call_operand.hbm [shape: f32[32,32], index: 7, kind: output, shape index: {}]
  %s8 = sld [smem:[#allocation0]]
  $region61: #{transformer_encoder_2d.15} parent=0
    _
  %s10 = ssub.s32 1, %s8
  %s11 = scalar_select 0, %s10, %s8
  $region1: #{transformer_encoder_2d.15} parent=0
    #allocation2 [shape = 'u8[16384]{0}', space=vmem, size = 0x4000, scoped, tag = 'output window, operand 0']
    #allocation3 [shape = 's32[2]{0}', space=sflag, size = 0x8, scoped, tag = 'scoped memory for transformer_encoder_2d.15']
    %12 = vsyncpa [#allocation3], 0
    %s13 = scalar_lea.sflag [#allocation3], 1
    %14 = vsyncpa %s13, 0
    loop: start=0, step=1, limit=4
    $region2: #{transformer_encoder_2d.15} parent=1 // loop_pre_header
      _
    $region3: #{transformer_encoder_2d.15} parent=1 // loop_header
      %s16 = sphi 0, %s20
      %p17 = scmp.ge.s32.totalorder %s16, 4
      %s26 = sphi 0, %s28
      %s29 = sphi 0, %s26
      %s30 = sphi 0, %s29
      %s46 = sphi 0, %s30
      %s50 = sphi 0, %s50
      %s52 = sphi 0, %s50
      %s53 = sphi 0, %s52
      %s67 = sphi 0, %s53
      %s71 = sphi 0, %s71
      %s73 = sphi 0, %s71
      %s74 = sphi 0, %s73
      %s88 = sphi 0, %s74
      %s92 = sphi 0, %s92
      %s94 = sphi 0, %s92
      %s95 = sphi 0, %s94
      %s109 = sphi 0, %s95
      %s113 = sphi 0, %s113
      %s115 = sphi 0, %s113
      %s116 = sphi 0, %s115
      %s130 = sphi 0, %s116
      %s134 = sphi 0, %s134
      %s136 = sphi 0, %s134
      %s137 = sphi 0, %s136
      %s151 = sphi 0, %s137
      %s155 = sphi 0, %s155
      %s157 = sphi 0, %s155
      %s158 = sphi 0, %s157
      %s172 = sphi 0, %s158
      %s178 = sphi 0, %s180
      %s181 = sphi 0, %s178
      %s182 = sphi 0, %s181
      %s198 = sphi 0, %s182
    $region4: #{transformer_encoder_2d.15} parent=1 // loop_header_branch
      %19 = sbr.rel (%p17) target = $region8
    $region5: #{transformer_encoder_2d.15} parent=1 // loop_body
      %s21 = ssub.s32 %s16, 1
      %s22 = ssub.s32 %s16, 2
      %s23 = sadd.s32 %s16, 1
      %s24 = ssub.s32 %s16, %s23
      %p25 = scmp.eq.s32.totalorder %s24, 0
      %s27 = sadd.s32 %s26, 1
      %s28 = scalar_select %p25, %s26, %s27
      %p31 = pneg %p25
      %p32 = scmp.eq.s32.totalorder %s16, 1
      %p33 = por %p31, %p32
      %p34 = scmp.ne.s32.totalorder %s26, %s29
      %p35 = scmp.eq.s32.totalorder %s16, 0
      %p36 = por %p34, %p35
      %p37 = scmp.ne.s32.totalorder %s26, %s29
      %p38 = scmp.eq.s32.totalorder %s21, 1
      %p39 = por %p37, %p38
      %p40 = scmp.ne.s32.totalorder %s29, %s30
      %p41 = scmp.eq.s32.totalorder %s21, 0
      %p42 = por %p40, %p41
      %p43 = scmp.ne.s32.totalorder %s29, %s30
      %p44 = scmp.eq.s32.totalorder %s22, 1
      %p45 = por %p43, %p44
      %p47 = scmp.ne.s32.totalorder %s30, %s46
      %p48 = scmp.eq.s32.totalorder %s22, 0
      %p49 = por %p47, %p48
      %s51 = sadd.s32 %s50, 1
      %p54 = scmp.eq.s32.totalorder %s16, 1
      %p55 = scmp.ne.s32.totalorder %s50, %s52
      %p56 = scmp.eq.s32.totalorder %s16, 0
      %p57 = por %p55, %p56
      %p58 = scmp.ne.s32.totalorder %s50, %s52
      %p59 = scmp.eq.s32.totalorder %s21, 1
      %p60 = por %p58, %p59
      %p61 = scmp.ne.s32.totalorder %s52, %s53
      %p62 = scmp.eq.s32.totalorder %s21, 0
      %p63 = por %p61, %p62
      %p64 = scmp.ne.s32.totalorder %s52, %s53
      %p65 = scmp.eq.s32.totalorder %s22, 1
      %p66 = por %p64, %p65
      %p68 = scmp.ne.s32.totalorder %s53, %s67
      %p69 = scmp.eq.s32.totalorder %s22, 0
      %p70 = por %p68, %p69
      %s72 = sadd.s32 %s71, 1
      %p75 = scmp.eq.s32.totalorder %s16, 1
      %p76 = scmp.ne.s32.totalorder %s71, %s73
      %p77 = scmp.eq.s32.totalorder %s16, 0
      %p78 = por %p76, %p77
      %p79 = scmp.ne.s32.totalorder %s71, %s73
      %p80 = scmp.eq.s32.totalorder %s21, 1
      %p81 = por %p79, %p80
      %p82 = scmp.ne.s32.totalorder %s73, %s74
      %p83 = scmp.eq.s32.totalorder %s21, 0
      %p84 = por %p82, %p83
      %p85 = scmp.ne.s32.totalorder %s73, %s74
      %p86 = scmp.eq.s32.totalorder %s22, 1
      %p87 = por %p85, %p86
      %p89 = scmp.ne.s32.totalorder %s74, %s88
      %p90 = scmp.eq.s32.totalorder %s22, 0
      %p91 = por %p89, %p90
      %s93 = sadd.s32 %s92, 1
      %p96 = scmp.eq.s32.totalorder %s16, 1
      %p97 = scmp.ne.s32.totalorder %s92, %s94
      %p98 = scmp.eq.s32.totalorder %s16, 0
      %p99 = por %p97, %p98
      %p100 = scmp.ne.s32.totalorder %s92, %s94
      %p101 = scmp.eq.s32.totalorder %s21, 1
      %p102 = por %p100, %p101
      %p103 = scmp.ne.s32.totalorder %s94, %s95
      %p104 = scmp.eq.s32.totalorder %s21, 0
      %p105 = por %p103, %p104
      %p106 = scmp.ne.s32.totalorder %s94, %s95
      %p107 = scmp.eq.s32.totalorder %s22, 1
      %p108 = por %p106, %p107
      %p110 = scmp.ne.s32.totalorder %s95, %s109
      %p111 = scmp.eq.s32.totalorder %s22, 0
      %p112 = por %p110, %p111
      %s114 = sadd.s32 %s113, 1
      %p117 = scmp.eq.s32.totalorder %s16, 1
      %p118 = scmp.ne.s32.totalorder %s113, %s115
      %p119 = scmp.eq.s32.totalorder %s16, 0
      %p120 = por %p118, %p119
      %p121 = scmp.ne.s32.totalorder %s113, %s115
      %p122 = scmp.eq.s32.totalorder %s21, 1
      %p123 = por %p121, %p122
      %p124 = scmp.ne.s32.totalorder %s115, %s116
      %p125 = scmp.eq.s32.totalorder %s21, 0
      %p126 = por %p124, %p125
      %p127 = scmp.ne.s32.totalorder %s115, %s116
      %p128 = scmp.eq.s32.totalorder %s22, 1
      %p129 = por %p127, %p128
      %p131 = scmp.ne.s32.totalorder %s116, %s130
      %p132 = scmp.eq.s32.totalorder %s22, 0
      %p133 = por %p131, %p132
      %s135 = sadd.s32 %s134, 1
      %p138 = scmp.eq.s32.totalorder %s16, 1
      %p139 = scmp.ne.s32.totalorder %s134, %s136
      %p140 = scmp.eq.s32.totalorder %s16, 0
      %p141 = por %p139, %p140
      %p142 = scmp.ne.s32.totalorder %s134, %s136
      %p143 = scmp.eq.s32.totalorder %s21, 1
      %p144 = por %p142, %p143
      %p145 = scmp.ne.s32.totalorder %s136, %s137
      %p146 = scmp.eq.s32.totalorder %s21, 0
      %p147 = por %p145, %p146
      %p148 = scmp.ne.s32.totalorder %s136, %s137
      %p149 = scmp.eq.s32.totalorder %s22, 1
      %p150 = por %p148, %p149
      %p152 = scmp.ne.s32.totalorder %s137, %s151
      %p153 = scmp.eq.s32.totalorder %s22, 0
      %p154 = por %p152, %p153
      %s156 = sadd.s32 %s155, 1
      %p159 = scmp.eq.s32.totalorder %s16, 1
      %p160 = scmp.ne.s32.totalorder %s155, %s157
      %p161 = scmp.eq.s32.totalorder %s16, 0
      %p162 = por %p160, %p161
      %p163 = scmp.ne.s32.totalorder %s155, %s157
      %p164 = scmp.eq.s32.totalorder %s21, 1
      %p165 = por %p163, %p164
      %p166 = scmp.ne.s32.totalorder %s157, %s158
      %p167 = scmp.eq.s32.totalorder %s21, 0
      %p168 = por %p166, %p167
      %p169 = scmp.ne.s32.totalorder %s157, %s158
      %p170 = scmp.eq.s32.totalorder %s22, 1
      %p171 = por %p169, %p170
      %p173 = scmp.ne.s32.totalorder %s158, %s172
      %p174 = scmp.eq.s32.totalorder %s22, 0
      %p175 = por %p173, %p174
      %s176 = ssub.s32 %s16, %s23
      %p177 = scmp.eq.s32.totalorder %s176, 0
      %s179 = sadd.s32 %s178, 1
      %s180 = scalar_select %p177, %s178, %s179
      %p183 = pneg %p177
      %p184 = scmp.eq.s32.totalorder %s16, 1
      %p185 = por %p183, %p184
      %p186 = scmp.ne.s32.totalorder %s178, %s181
      %p187 = scmp.eq.s32.totalorder %s16, 0
      %p188 = por %p186, %p187
      %p189 = scmp.ne.s32.totalorder %s178, %s181
      %p190 = scmp.eq.s32.totalorder %s21, 1
      %p191 = por %p189, %p190
      %p192 = scmp.ne.s32.totalorder %s181, %s182
      %p193 = scmp.eq.s32.totalorder %s21, 0
      %p194 = por %p192, %p193
      %p195 = scmp.ne.s32.totalorder %s181, %s182
      %p196 = scmp.eq.s32.totalorder %s22, 1
      %p197 = por %p195, %p196
      %p199 = scmp.ne.s32.totalorder %s182, %s198
      %p200 = scmp.eq.s32.totalorder %s22, 0
      %p201 = por %p199, %p200
      %p202 = scmp.le.s32.totalorder 1, %s16
      %p203 = scmp.lt.s32.totalorder %s16, 3
      %p204 = pnand %p202, %p203
      %p205 = pneg %p204
      // Predicated region
      $region9: #{transformer_encoder_2d.15} parent=5 // pred_check
        _
      $region10: #{transformer_encoder_2d.15} parent=5 // pred_check_branch
        %207 = sbr.rel (%p204) target = $region12
      $region11: #{transformer_encoder_2d.15} parent=5 // pred_region
        %s208 = ssub.s32 %s16, 1
        // Predicated region
        $region13: #{transformer_encoder_2d.15} parent=11 // pred_check
          %p209 = pneg %p63
        $region14: #{transformer_encoder_2d.15} parent=11 // pred_check_branch
          %211 = sbr.rel (%p209) target = $region16
        $region15: #{transformer_encoder_2d.15} parent=11 // pred_region
          _
        $region16: #{transformer_encoder_2d.15} parent=11 // pred_fallthru
          _
        // Predicated region
        $region17: #{transformer_encoder_2d.15} parent=11 // pred_check
          %p212 = pneg %p84
        $region18: #{transformer_encoder_2d.15} parent=11 // pred_check_branch
          %214 = sbr.rel (%p212) target = $region20
        $region19: #{transformer_encoder_2d.15} parent=11 // pred_region
          _
        $region20: #{transformer_encoder_2d.15} parent=11 // pred_fallthru
          _
        // Predicated region
        $region21: #{transformer_encoder_2d.15} parent=11 // pred_check
          %p215 = pneg %p105
        $region22: #{transformer_encoder_2d.15} parent=11 // pred_check_branch
          %217 = sbr.rel (%p215) target = $region24
        $region23: #{transformer_encoder_2d.15} parent=11 // pred_region
          _
        $region24: #{transformer_encoder_2d.15} parent=11 // pred_fallthru
          _
        // Predicated region
        $region25: #{transformer_encoder_2d.15} parent=11 // pred_check
          %p218 = pneg %p126
        $region26: #{transformer_encoder_2d.15} parent=11 // pred_check_branch
          %220 = sbr.rel (%p218) target = $region28
        $region27: #{transformer_encoder_2d.15} parent=11 // pred_region
          _
        $region28: #{transformer_encoder_2d.15} parent=11 // pred_fallthru
          _
        // Predicated region
        $region29: #{transformer_encoder_2d.15} parent=11 // pred_check
          %p221 = pneg %p147
        $region30: #{transformer_encoder_2d.15} parent=11 // pred_check_branch
          %223 = sbr.rel (%p221) target = $region32
        $region31: #{transformer_encoder_2d.15} parent=11 // pred_region
          _
        $region32: #{transformer_encoder_2d.15} parent=11 // pred_fallthru
          _
        // Predicated region
        $region33: #{transformer_encoder_2d.15} parent=11 // pred_check
          %p224 = pneg %p168
        $region34: #{transformer_encoder_2d.15} parent=11 // pred_check_branch
          %226 = sbr.rel (%p224) target = $region36
        $region35: #{transformer_encoder_2d.15} parent=11 // pred_region
          _
        $region36: #{transformer_encoder_2d.15} parent=11 // pred_fallthru
          _
      $region12: #{transformer_encoder_2d.15} parent=5 // pred_fallthru
        _
      %p227 = scmp.lt.s32.totalorder %s16, 2
      // Predicated region
      $region37: #{transformer_encoder_2d.15} parent=5 // pred_check
        %p228 = pneg %p227
      $region38: #{transformer_encoder_2d.15} parent=5 // pred_check_branch
        %230 = sbr.rel (%p228) target = $region40
      $region39: #{transformer_encoder_2d.15} parent=5 // pred_region
        // Predicated region
        $region41: #{transformer_encoder_2d.15} parent=39 // pred_check
          %p231 = pneg %p36
        $region42: #{transformer_encoder_2d.15} parent=39 // pred_check_branch
          %233 = sbr.rel (%p231) target = $region44
        $region43: #{transformer_encoder_2d.15} parent=39 // pred_region
          %s234 = smul.u32 2, %s16
          %p235 = scmp.lt.s32.totalorder %s234, 3
          %s236 = scalar_select %p235, %s234, 3
          %s237 = smul.addr %s236, 8
          %s238 = scalar_lea.vmem %s0, %s237
          %s239 = smul.u32 2, %s16
        $region44: #{transformer_encoder_2d.15} parent=39 // pred_fallthru
          _
      $region40: #{transformer_encoder_2d.15} parent=5 // pred_fallthru
        _
      %p240 = scmp.le.s32.totalorder 1, %s16
      %p241 = scmp.lt.s32.totalorder %s16, 3
      %p242 = pnand %p240, %p241
      %p243 = pneg %p242
      // Predicated region
      $region45: #{transformer_encoder_2d.15} parent=5 // pred_check
        _
      $region46: #{transformer_encoder_2d.15} parent=5 // pred_check_branch
        %245 = sbr.rel (%p242) target = $region48
      $region47: #{transformer_encoder_2d.15} parent=5 // pred_region
        %s246 = ssub.s32 %s16, 1
        %s247 = smul.u32 2, %s21
        %p248 = scmp.lt.s32.totalorder %s247, 3
        %s249 = scalar_select %p248, %s247, 3
        %s250 = smul.addr %s249, 8
        %s251 = scalar_lea.vmem %s0, %s250
        %p252 = pneg %p42
        %p253 = pneg %p39
        %p254 = pneg %p63
        %p255 = pneg %p60
        %p256 = pneg %p84
        %p257 = pneg %p81
        %p258 = pneg %p105
        %p259 = pneg %p102
        %p260 = pneg %p126
        %p261 = pneg %p123
        %p262 = pneg %p147
        %p263 = pneg %p144
        %p264 = pneg %p168
        %p265 = pneg %p165
        %p266 = pneg %p194
        %p267 = pneg %p191
        %s268 = sand.u32 %s181, 1
        %s269 = scalar_lea.sflag [#allocation3], %s268
        %s270 = sand.u32 %s181, 1
        %s271 = smul.addr %s270, 16
        %s272 = scalar_lea.vmem [#allocation2], %s271
        %s273 = smul.u32 2, %s21
        %p274 = scmp.lt.s32.totalorder %s273, 3
        %s275 = scalar_select %p274, %s273, 3
        %s276 = smul.addr %s275, 8
        %s277 = scalar_lea.vmem %s0, %s276
        %s278 = smul.u32 2, %s21
        %s279 = smul.u32 2, %s21
        %v281 = vld [vmem:[%s277] sm:$0xff]
        %v282 = vld [vmem:[%s277 + $0x8] sm:$0xff]
        %v283 = vpack.c.bf16 %v282, %v281
        %v284 = vld [vmem:[%s1] sm:$0xf]
        %v285 = vld [vmem:[%s1 + $0x4] sm:$0xf]
        %v286 = vld [vmem:[%s1 + $0x8] sm:$0xf]
        %v287 = vld [vmem:[%s1 + $0xc] sm:$0xf]
        %v288 = vld [vmem:[%s2] sm:$0x1]
        %v290 = vlaneseq
        %v291 = vshrl.u32 %v290, 7
        %v292 = vsub.s32 0, %v291
        %v293 = vrot.slane %v288, %v292
        %v299 = vunpack.c.l.b16 %v284
        %v300 = vunpack.c.l.b16 %v285
        %v301 = vunpack.c.l.b16 %v286
        %v302 = vunpack.c.l.b16 %v287
        %v303 = vpack.c.b16 %v300, %v299
        %v304 = vpack.c.b16 %v302, %v301
        %vm307 = vcmask 261120
        %v309 = vsel %vm307, %v283, 0
        %311 = vmatprep.subr.bf16.mxu0 0
        %312 = vmatpush1.bf16.msra.mxu0 0
        %313 = vmatprep.subr.bf16.mxu0 0
        %314 = vmatpush1.bf16.msra.mxu0 0
        %315 = vmatprep.subr.bf16.mxu0 0
        %316 = vmatpush1.bf16.msra.mxu0 0
        %317 = vmatprep.subr.bf16.mxu0 0
        %318 = vmatpush1.bf16.msra.mxu0 0
        %319 = vmatprep.subr.bf16.mxu0 0
        %320 = vmatpush1.bf16.msra.mxu0 0
        %321 = vmatprep.subr.bf16.mxu0 0
        %322 = vmatpush1.bf16.msra.mxu0 0
        %323 = vmatprep.subr.bf16.mxu0 0
        %324 = vmatpush1.bf16.msra.mxu0 %v304
        %325 = vmatprep.subr.bf16.mxu0 0
        %326 = vmatpush1.bf16.msra.mxu0 %v303
        %327 = vmatprep.subr.bf16.mxu0 0
        %328 = vmatpush2.bf16.msra.mxu0 0
        %329 = vmatprep.subr.bf16.mxu0 0
        %330 = vmatpush2.bf16.msra.mxu0 0
        %331 = vmatprep.subr.bf16.mxu0 0
        %332 = vmatpush2.bf16.msra.mxu0 0
        %333 = vmatprep.subr.bf16.mxu0 0
        %334 = vmatpush2.bf16.msra.mxu0 0
        %335 = vmatprep.subr.bf16.mxu0 0
        %336 = vmatpush2.bf16.msra.mxu0 0
        %337 = vmatprep.subr.bf16.mxu0 0
        %338 = vmatpush2.bf16.msra.mxu0 0
        %339 = vmatprep.subr.bf16.mxu0 0
        %340 = vmatpush2.bf16.msra.mxu0 0
        %341 = vmatprep.subr.bf16.mxu0 0
        %342 = vmatpush2.bf16.msra.mxu0 0
        %343 = vmatprep.mubr.bf16.mxu0 0
        %344 = vmatmul.mubr.bf16.gmra.mxu0 %v309
        %v345 = vpop.f32.mrf.mxu0
        %v346 = vadd.f32 %v293, %v345
        %v347 = vpop.f32.mrf.mxu0
        %v348 = vpop.f32.mrf.mxu0
        %v349 = vadd.f32 %v293, %v348
        %v350 = vpop.f32.mrf.mxu0
        %351 = vdwg.mxu0
        %v352 = vmax.f32 %v346, 0.0
        %v353 = vmax.f32 %v349, 0.0
        %v354 = vpack.c.bf16 %v353, %v352
        %v355 = vld [vmem:[%s3] sm:$0xf]
        %v356 = vld [vmem:[%s3 + $0x4] sm:$0xf]
        %v357 = vld [vmem:[%s3 + $0x8] sm:$0xf]
        %v358 = vld [vmem:[%s3 + $0xc] sm:$0xf]
        %v359 = vld [vmem:[%s3 + $0x10] sm:$0xf]
        %v360 = vld [vmem:[%s3 + $0x14] sm:$0xf]
        %v361 = vld [vmem:[%s3 + $0x18] sm:$0xf]
        %v362 = vld [vmem:[%s3 + $0x1c] sm:$0xf]
        %v363 = vld [vmem:[%s4] sm:$0x1]
        %v365 = vlaneseq
        %v366 = vshrl.u32 %v365, 7
        %v367 = vsub.s32 0, %v366
        %v368 = vrot.slane %v363, %v367
        %v378 = vunpack.c.l.b16 %v355
        %v379 = vunpack.c.l.b16 %v356
        %v380 = vunpack.c.l.b16 %v357
        %v381 = vunpack.c.l.b16 %v358
        %v382 = vunpack.c.l.b16 %v359
        %v383 = vunpack.c.l.b16 %v360
        %v384 = vunpack.c.l.b16 %v361
        %v385 = vunpack.c.l.b16 %v362
        %v386 = vpack.c.b16 %v379, %v378
        %v387 = vpack.c.b16 %v381, %v380
        %v388 = vpack.c.b16 %v383, %v382
        %v389 = vpack.c.b16 %v385, %v384
        %vm394 = vcmask 523264
        %v396 = vsel %vm394, %v354, 0
        %398 = vmatprep.subr.bf16.mxu0 0
        %399 = vmatpush1.bf16.msra.mxu0 0
        %400 = vmatprep.subr.bf16.mxu0 0
        %401 = vmatpush1.bf16.msra.mxu0 0
        %402 = vmatprep.subr.bf16.mxu0 0
        %403 = vmatpush1.bf16.msra.mxu0 0
        %404 = vmatprep.subr.bf16.mxu0 0
        %405 = vmatpush1.bf16.msra.mxu0 0
        %406 = vmatprep.subr.bf16.mxu0 0
        %407 = vmatpush1.bf16.msra.mxu0 %v389
        %408 = vmatprep.subr.bf16.mxu0 0
        %409 = vmatpush1.bf16.msra.mxu0 %v388
        %410 = vmatprep.subr.bf16.mxu0 0
        %411 = vmatpush1.bf16.msra.mxu0 %v387
        %412 = vmatprep.subr.bf16.mxu0 0
        %413 = vmatpush1.bf16.msra.mxu0 %v386
        %414 = vmatprep.subr.bf16.mxu0 0
        %415 = vmatpush2.bf16.msra.mxu0 0
        %416 = vmatprep.subr.bf16.mxu0 0
        %417 = vmatpush2.bf16.msra.mxu0 0
        %418 = vmatprep.subr.bf16.mxu0 0
        %419 = vmatpush2.bf16.msra.mxu0 0
        %420 = vmatprep.subr.bf16.mxu0 0
        %421 = vmatpush2.bf16.msra.mxu0 0
        %422 = vmatprep.subr.bf16.mxu0 0
        %423 = vmatpush2.bf16.msra.mxu0 0
        %424 = vmatprep.subr.bf16.mxu0 0
        %425 = vmatpush2.bf16.msra.mxu0 0
        %426 = vmatprep.subr.bf16.mxu0 0
        %427 = vmatpush2.bf16.msra.mxu0 0
        %428 = vmatprep.subr.bf16.mxu0 0
        %429 = vmatpush2.bf16.msra.mxu0 0
        %430 = vmatprep.mubr.bf16.mxu0 0
        %431 = vmatmul.mubr.bf16.gmra.mxu0 %v396
        %v432 = vpop.f32.mrf.mxu0
        %v433 = vadd.f32 %v368, %v432
        %v434 = vpop.f32.mrf.mxu0
        %v435 = vpop.f32.mrf.mxu0
        %v436 = vadd.f32 %v368, %v435
        %v437 = vpop.f32.mrf.mxu0
        %438 = vdwg.mxu0
        %v439 = vmax.f32 %v433, 0.0
        %v440 = vmax.f32 %v436, 0.0
        %v441 = vadd.f32 %v439, %v281
        %v442 = vadd.f32 %v440, %v282
        %v443 = vsel %vm307, %v441, 0.0
        %444 = vadd.xlane.f32.xlu0 %v443
        %v445 = vpop.xlane.xlu0 %444
        %v446 = vsel %vm307, %v442, 0.0
        %447 = vadd.xlane.f32.xlu0 %v446
        %v448 = vpop.xlane.xlu0 %447
        %v449 = vrcp.pop 32.0
        %v450 = vmul.f32 %v445, %v449
        %v451 = vmul.f32 %v448, %v449
        %v452 = vsub.f32 %v441, %v450
        %v453 = vsub.f32 %v442, %v451
        %v454 = vmul.f32 %v452, %v452
        %v455 = vmul.f32 %v453, %v453
        %v456 = vsel %vm307, %v454, 0.0
        %457 = vadd.xlane.f32.xlu0 %v456
        %v458 = vpop.xlane.xlu0 %457
        %v459 = vsel %vm307, %v455, 0.0
        %460 = vadd.xlane.f32.xlu0 %v459
        %v461 = vpop.xlane.xlu0 %460
        %v462 = vmul.f32 %v458, %v449
        %v463 = vmul.f32 %v461, %v449
        %v464 = vadd.f32 %v462, 1e-05
        %v465 = vadd.f32 %v463, 1e-05
        %v466 = vrsqrt.pop %v464
        %v467 = vrsqrt.pop %v465
        %v468 = vmul.f32 %v452, %v466
        %v469 = vmul.f32 %v453, %v467
        %v470 = vld [vmem:[%s5] sm:$0x1]
        %v472 = vlaneseq
        %v473 = vshrl.u32 %v472, 7
        %v474 = vsub.s32 0, %v473
        %v475 = vrot.slane %v470, %v474
        %v477 = vmul.f32 %v468, %v475
        %v478 = vmul.f32 %v469, %v475
        %v479 = vld [vmem:[%s6] sm:$0x1]
        %v481 = vlaneseq
        %v482 = vshrl.u32 %v481, 7
        %v483 = vsub.s32 0, %v482
        %v484 = vrot.slane %v479, %v483
        %v486 = vadd.f32 %v477, %v484
        %v487 = vadd.f32 %v478, %v484
        %488 = vst.msk [vmem:[%s272] sm:$0xff] %vm307, %v486
        %489 = vst.msk [vmem:[%s272 + $0x8] sm:$0xff] %vm307, %v487
        %s490 = sand.u32 %s181, 1
        %s491 = scalar_lea.sflag [#allocation3], %s490
        %s492 = sand.u32 %s181, 1
        %s493 = smul.addr %s492, 16
        %s494 = scalar_lea.vmem [#allocation2], %s493
        // Predicated region
        $region49: #{transformer_encoder_2d.15} parent=47 // pred_check
          %p495 = pneg %p191
        $region50: #{transformer_encoder_2d.15} parent=47 // pred_check_branch
          %497 = sbr.rel (%p495) target = $region52
        $region51: #{transformer_encoder_2d.15} parent=47 // pred_region
          %s498 = smul.u32 2, %s21
          %s500 = ssub.s32 256, 256
          %501 = vsyncadd %s491, %s500
          %s502 = smul.addr %s498, 128
          %s503 = scalar_lea.hbm %s7, %s502
          %s504 = sshll.u32 %s494, 4
          %s505 = int_to_ptr.vmem [resolvable:$true] %s504
          %510 = dma.vmem_to_hbm [thread:$0]  %s505, 256, %s503, %s491, 128, 128, 8
        $region52: #{transformer_encoder_2d.15} parent=47 // pred_fallthru
          _
      $region48: #{transformer_encoder_2d.15} parent=5 // pred_fallthru
        _
      %p511 = scmp.le.s32.totalorder 2, %s16
      // Predicated region
      $region53: #{transformer_encoder_2d.15} parent=5 // pred_check
        %p512 = pneg %p511
      $region54: #{transformer_encoder_2d.15} parent=5 // pred_check_branch
        %514 = sbr.rel (%p512) target = $region56
      $region55: #{transformer_encoder_2d.15} parent=5 // pred_region
        %s515 = ssub.s32 %s16, 2
        // Predicated region
        $region57: #{transformer_encoder_2d.15} parent=55 // pred_check
          %p516 = pneg %p197
        $region58: #{transformer_encoder_2d.15} parent=55 // pred_check_branch
          %518 = sbr.rel (%p516) target = $region60
        $region59: #{transformer_encoder_2d.15} parent=55 // pred_region
          %s519 = sand.u32 %s182, 1
          %s520 = scalar_lea.sflag [#allocation3], %s519
          %s521 = sand.u32 %s182, 1
          %s522 = smul.addr %s521, 16
          %s523 = scalar_lea.vmem [#allocation2], %s522
          %524 = dma.done %s520, 256
        $region60: #{transformer_encoder_2d.15} parent=55 // pred_fallthru
          _
      $region56: #{transformer_encoder_2d.15} parent=5 // pred_fallthru
        _
    $region6: #{transformer_encoder_2d.15} parent=1 // loop_footer
      %s20 = sadd.s32 1, %s16
    $region7: #{transformer_encoder_2d.15} parent=1 // loop_footer_branch
      %15 = sbr.rel target = $region3
    $region8: #{transformer_encoder_2d.15} parent=1 // loop_exit
      _
    %525 = vsyncpa [#allocation3], 1
    %s526 = scalar_lea.sflag [#allocation3], 1
    %527 = vsyncpa %s526, 1

</llo_original>
